<compile_context>
chip_gen: v7x
topology: tpu7x:2x2x1
jax: 0.10.0
libtpu: 0.0.40
codegen_flags: <defaults>
</compile_context>

<pallas_src>
import functools

import jax
import jax.numpy as jnp
from jax.experimental import pallas as pl
from jax.experimental.pallas import tpu as pltpu


def _mlp_kernel(x_ref, w1_ref, b1_ref, w2_ref, b2_ref,
                w3_ref, b3_ref, w4_ref, b4_ref, o_ref):
    bf16 = jnp.bfloat16
    # Layer 1: (blk, 13) @ (13, 128) -> f32 accumulate, +b, relu
    h = jnp.dot(x_ref[...], w1_ref[...], preferred_element_type=jnp.float32)
    h = jnp.maximum(h + b1_ref[...], 0.0)
    # Layer 2: (blk, 128) @ (128, 256)
    h = jnp.dot(h.astype(bf16), w2_ref[...], preferred_element_type=jnp.float32)
    h = jnp.maximum(h + b2_ref[...], 0.0)
    # Layer 3: (blk, 256) @ (256, 128)
    h = jnp.dot(h.astype(bf16), w3_ref[...], preferred_element_type=jnp.float32)
    h = jnp.maximum(h + b3_ref[...], 0.0)            # (blk, 128) f32
    # Layer 4 (128 -> 1): VPU multiply + lane reduction (keeps the MXU free,
    # avoids an N=1 pass), bias + relu in the epilogue, written lane-dense.
    r = jnp.sum(h * w4_ref[...], axis=-1)            # (blk,)
    r = jnp.maximum(r[None, :] + b4_ref[...], 0.0)   # (1, blk)
    o_ref[...] = r.astype(o_ref.dtype)


def _round_up(n, m):
    return ((n + m - 1) // m) * m


@functools.partial(jax.jit, static_argnames=("block_b",))
def grid_des_forward(x, params, *, block_b=1024):
    """Pallas implementation of GridDES.forward.  x: (B, 13) f32 -> (B, 1) f32."""
    w1, b1, w2, b2, w3, b3, w4, b4 = params
    B, F = x.shape
    assert F == 13

    # Lane-dense batch tile: multiple of 128, capped at block_b; pad B up to a
    # whole number of tiles instead of asserting divisibility.
    blk = min(_round_up(block_b, 128), _round_up(B, 128))
    Bp = _round_up(B, blk)
    n_blocks = Bp // blk

    xp = jnp.pad(x, ((0, Bp - B), (0, 0))).astype(jnp.bfloat16)
    w1b, w2b, w3b = (w.astype(jnp.bfloat16) for w in (w1, w2, w3))

    def rep(shape):
        # full weight/bias array, same block every grid step (never re-fetched)
        return pl.BlockSpec(shape, lambda i: (0, 0))

    flops = 2 * Bp * (13 * 128 + 128 * 256 + 256 * 128 + 128)
    bytes_accessed = (xp.size * 2 + Bp * 4
                      + (w1b.size + w2b.size + w3b.size) * 2
                      + (w4.size + b1.size + b2.size + b3.size + b4.size) * 4)

    out = pl.pallas_call(
        _mlp_kernel,
        out_shape=jax.ShapeDtypeStruct((1, Bp), jnp.float32),
        grid_spec=pltpu.PrefetchScalarGridSpec(
            num_scalar_prefetch=0,
            grid=(n_blocks,),
            in_specs=[
                pl.BlockSpec((blk, 13), lambda i: (i, 0)),
                rep((13, 128)), rep((1, 128)),
                rep((128, 256)), rep((1, 256)),
                rep((256, 128)), rep((1, 128)),
                rep((1, 128)), rep((1, 1)),
            ],
            out_specs=pl.BlockSpec((1, blk), lambda i: (0, i)),
        ),
        compiler_params=pltpu.CompilerParams(
            dimension_semantics=("parallel",)),
        cost_estimate=pl.CostEstimate(
            flops=flops, transcendentals=0, bytes_accessed=bytes_accessed),
    )(xp, w1b, b1, w2b, b2, w3b, b3, w4, b4)

    return out[0, :B].reshape(B, 1)


def init_params(key):
    """Deterministic xavier_normal_(gain=1.414) weights, zero biases.

    w1..w3 are stored (in_features, out_features) for the kernel's x @ W
    layout; w4 is kept as the PyTorch-style (1, 128) row used by the VPU
    epilogue.  (xavier_normal_ is symmetric in fan_in/fan_out, so the
    distribution matches the PyTorch init exactly.)
    """
    gain = 1.414
    dims = [(13, 128), (128, 256), (256, 128), (128, 1)]
    params = []
    for li, (fan_in, fan_out) in enumerate(dims):
        key, sub = jax.random.split(key)
        std = gain * (2.0 / (fan_in + fan_out)) ** 0.5
        w = std * jax.random.normal(sub, (fan_in, fan_out), dtype=jnp.float32)
        if li == 3:
            w = w.T                      # (1, 128) row for the VPU reduction
        b = jnp.zeros((1, fan_out), dtype=jnp.float32)
        params.extend([w, b])
    return tuple(params)


def reference_forward(x, params):
    w1, b1, w2, b2, w3, b3, w4, b4 = params
    h = jnp.maximum(x @ w1 + b1, 0.0)
    h = jnp.maximum(h @ w2 + b2, 0.0)
    h = jnp.maximum(h @ w3 + b3, 0.0)
    h = jnp.maximum(h @ w4.T + b4, 0.0)   # w4 stored as (1, 128) row
    return h


if __name__ == "__main__":
    key = jax.random.PRNGKey(0)
    key, xkey = jax.random.split(key)

    B = 300  # deliberately NOT a multiple of the tile: exercises pad/cdiv path
    x = jax.random.normal(xkey, (B, 13), dtype=jnp.float32)
    params = init_params(key)

    ref = reference_forward(x, params)

    out_default = jax.block_until_ready(grid_des_forward(x, params))            # blk=384, grid=1
    out_tiled = jax.block_until_ready(grid_des_forward(x, params, block_b=128))  # blk=128, grid=3

    for out in (out_default, out_tiled):
        assert out.shape == (B, 1), out.shape
        # bf16 weights/activations with f32 accumulation -> loosened tolerance
        err = float(jnp.max(jnp.abs(out - ref)))
        assert jnp.allclose(out, ref, atol=5e-2, rtol=5e-2), f"mismatch vs reference (max abs err {err})"

    print("KERNEL_OK")
</pallas_src>

<mosaic_0001>
module attributes {stable_mosaic.version = 11 : i64} {
  func.func @_mlp_kernel(%arg0: i32, %arg1: memref<384x13xbf16, #tpu.memory_space<vmem>>, %arg2: memref<13x128xbf16, #tpu.memory_space<vmem>>, %arg3: memref<1x128xf32, #tpu.memory_space<vmem>>, %arg4: memref<128x256xbf16, #tpu.memory_space<vmem>>, %arg5: memref<1x256xf32, #tpu.memory_space<vmem>>, %arg6: memref<256x128xbf16, #tpu.memory_space<vmem>>, %arg7: memref<1x128xf32, #tpu.memory_space<vmem>>, %arg8: memref<1x128xf32, #tpu.memory_space<vmem>>, %arg9: memref<1x1xf32, #tpu.memory_space<vmem>>, %arg10: memref<1x384xf32, #tpu.memory_space<vmem>>) attributes {dimension_semantics = [#tpu.dimension_semantics<parallel>], iteration_bounds = array<i64: 1>, scalar_prefetch = 0 : i64, scratch_operands = 0 : i64, tpu.core_type = #tpu.core_type<tc>, window_params = [{transform_indices = @transform_0, window_bounds = array<i64: 384, 13>}, {pipeline_mode = #tpu.pipeline_mode<synchronous>, transform_indices = @transform_1, window_bounds = array<i64: 13, 128>}, {pipeline_mode = #tpu.pipeline_mode<synchronous>, transform_indices = @transform_2, window_bounds = array<i64: 1, 128>}, {pipeline_mode = #tpu.pipeline_mode<synchronous>, transform_indices = @transform_3, window_bounds = array<i64: 128, 256>}, {pipeline_mode = #tpu.pipeline_mode<synchronous>, transform_indices = @transform_4, window_bounds = array<i64: 1, 256>}, {pipeline_mode = #tpu.pipeline_mode<synchronous>, transform_indices = @transform_5, window_bounds = array<i64: 256, 128>}, {pipeline_mode = #tpu.pipeline_mode<synchronous>, transform_indices = @transform_6, window_bounds = array<i64: 1, 128>}, {pipeline_mode = #tpu.pipeline_mode<synchronous>, transform_indices = @transform_7, window_bounds = array<i64: 1, 128>}, {pipeline_mode = #tpu.pipeline_mode<synchronous>, transform_indices = @transform_8, window_bounds = array<i64: 1, 1>}, {transform_indices = @transform_9, window_bounds = array<i64: 1, 384>}]} {
    %c0 = arith.constant 0 : index
    %c0_0 = arith.constant 0 : index
    %0 = vector.load %arg1[%c0, %c0_0] : memref<384x13xbf16, #tpu.memory_space<vmem>>, vector<384x13xbf16>
    %c0_1 = arith.constant 0 : index
    %c0_2 = arith.constant 0 : index
    %1 = vector.load %arg2[%c0_1, %c0_2] : memref<13x128xbf16, #tpu.memory_space<vmem>>, vector<13x128xbf16>
    %cst = arith.constant dense<0.000000e+00> : vector<384x128xf32>
    %2 = tpu.matmul %0, %1, %cst {dimension_numbers = #tpu.dot_dimension_numbers<[1], [0], [0], [1], [0, 0, 1, 1], [], []>} : vector<384x13xbf16>, vector<13x128xbf16>, vector<384x128xf32> -> vector<384x128xf32>
    %c0_3 = arith.constant 0 : index
    %c0_4 = arith.constant 0 : index
    %3 = vector.load %arg3[%c0_3, %c0_4] : memref<1x128xf32, #tpu.memory_space<vmem>>, vector<1x128xf32>
    %4 = vector.broadcast %3 : vector<1x128xf32> to vector<384x128xf32>
    %5 = arith.addf %2, %4 : vector<384x128xf32>
    %cst_5 = arith.constant 0.000000e+00 : f32
    %6 = vector.broadcast %cst_5 : f32 to vector<384x128xf32>
    %7 = arith.maximumf %5, %6 : vector<384x128xf32>
    %8 = arith.truncf %7 : vector<384x128xf32> to vector<384x128xbf16>
    %c0_6 = arith.constant 0 : index
    %c0_7 = arith.constant 0 : index
    %9 = vector.load %arg4[%c0_6, %c0_7] : memref<128x256xbf16, #tpu.memory_space<vmem>>, vector<128x256xbf16>
    %cst_8 = arith.constant dense<0.000000e+00> : vector<384x256xf32>
    %10 = tpu.matmul %8, %9, %cst_8 {dimension_numbers = #tpu.dot_dimension_numbers<[1], [0], [0], [1], [0, 0, 1, 1], [], []>} : vector<384x128xbf16>, vector<128x256xbf16>, vector<384x256xf32> -> vector<384x256xf32>
    %c0_9 = arith.constant 0 : index
    %c0_10 = arith.constant 0 : index
    %11 = vector.load %arg5[%c0_9, %c0_10] : memref<1x256xf32, #tpu.memory_space<vmem>>, vector<1x256xf32>
    %12 = vector.broadcast %11 : vector<1x256xf32> to vector<384x256xf32>
    %13 = arith.addf %10, %12 : vector<384x256xf32>
    %cst_11 = arith.constant 0.000000e+00 : f32
    %14 = vector.broadcast %cst_11 : f32 to vector<384x256xf32>
    %15 = arith.maximumf %13, %14 : vector<384x256xf32>
    %16 = arith.truncf %15 : vector<384x256xf32> to vector<384x256xbf16>
    %c0_12 = arith.constant 0 : index
    %c0_13 = arith.constant 0 : index
    %17 = vector.load %arg6[%c0_12, %c0_13] : memref<256x128xbf16, #tpu.memory_space<vmem>>, vector<256x128xbf16>
    %cst_14 = arith.constant dense<0.000000e+00> : vector<384x128xf32>
    %18 = tpu.matmul %16, %17, %cst_14 {dimension_numbers = #tpu.dot_dimension_numbers<[1], [0], [0], [1], [0, 0, 1, 1], [], []>} : vector<384x256xbf16>, vector<256x128xbf16>, vector<384x128xf32> -> vector<384x128xf32>
    %c0_15 = arith.constant 0 : index
    %c0_16 = arith.constant 0 : index
    %19 = vector.load %arg7[%c0_15, %c0_16] : memref<1x128xf32, #tpu.memory_space<vmem>>, vector<1x128xf32>
    %20 = vector.broadcast %19 : vector<1x128xf32> to vector<384x128xf32>
    %21 = arith.addf %18, %20 : vector<384x128xf32>
    %cst_17 = arith.constant 0.000000e+00 : f32
    %22 = vector.broadcast %cst_17 : f32 to vector<384x128xf32>
    %23 = arith.maximumf %21, %22 : vector<384x128xf32>
    %c0_18 = arith.constant 0 : index
    %c0_19 = arith.constant 0 : index
    %24 = vector.load %arg8[%c0_18, %c0_19] : memref<1x128xf32, #tpu.memory_space<vmem>>, vector<1x128xf32>
    %25 = vector.broadcast %24 : vector<1x128xf32> to vector<384x128xf32>
    %26 = arith.mulf %23, %25 : vector<384x128xf32>
    %cst_20 = arith.constant dense<0.000000e+00> : vector<384xf32>
    %27 = vector.multi_reduction <add>, %26, %cst_20 [1] : vector<384x128xf32> to vector<384xf32>
    %28 = vector.shape_cast %27 : vector<384xf32> to vector<1x384xf32>
    %c0_21 = arith.constant 0 : index
    %c0_22 = arith.constant 0 : index
    %29 = vector.load %arg9[%c0_21, %c0_22] : memref<1x1xf32, #tpu.memory_space<vmem>>, vector<1x1xf32>
    %30 = vector.broadcast %29 : vector<1x1xf32> to vector<1x384xf32>
    %31 = arith.addf %28, %30 : vector<1x384xf32>
    %cst_23 = arith.constant 0.000000e+00 : f32
    %32 = vector.broadcast %cst_23 : f32 to vector<1x384xf32>
    %33 = arith.maximumf %31, %32 : vector<1x384xf32>
    %c0_24 = arith.constant 0 : index
    %c0_25 = arith.constant 0 : index
    %34 = vector.load %arg10[%c0_24, %c0_25] : memref<1x384xf32, #tpu.memory_space<vmem>>, vector<1x384xf32>
    tpu.vector_store %arg10[%c0_24, %c0_25], %33 {strides = array<i32>} : memref<1x384xf32, #tpu.memory_space<vmem>>, vector<1x384xf32>,
    return
  }
  func.func @transform_0(%arg0: i32) -> (i32, i32) {
    %c0_i32 = arith.constant 0 : i32
    %c0_i32_0 = arith.constant 0 : i32
    return %arg0, %c0_i32 : i32, i32
  }
  func.func @transform_1(%arg0: i32) -> (i32, i32) {
    %c0_i32 = arith.constant 0 : i32
    %c0_i32_0 = arith.constant 0 : i32
    %c0_i32_1 = arith.constant 0 : i32
    return %c0_i32, %c0_i32_0 : i32, i32
  }
  func.func @transform_2(%arg0: i32) -> (i32, i32) {
    %c0_i32 = arith.constant 0 : i32
    %c0_i32_0 = arith.constant 0 : i32
    %c0_i32_1 = arith.constant 0 : i32
    return %c0_i32, %c0_i32_0 : i32, i32
  }
  func.func @transform_3(%arg0: i32) -> (i32, i32) {
    %c0_i32 = arith.constant 0 : i32
    %c0_i32_0 = arith.constant 0 : i32
    %c0_i32_1 = arith.constant 0 : i32
    return %c0_i32, %c0_i32_0 : i32, i32
  }
  func.func @transform_4(%arg0: i32) -> (i32, i32) {
    %c0_i32 = arith.constant 0 : i32
    %c0_i32_0 = arith.constant 0 : i32
    %c0_i32_1 = arith.constant 0 : i32
    return %c0_i32, %c0_i32_0 : i32, i32
  }
  func.func @transform_5(%arg0: i32) -> (i32, i32) {
    %c0_i32 = arith.constant 0 : i32
    %c0_i32_0 = arith.constant 0 : i32
    %c0_i32_1 = arith.constant 0 : i32
    return %c0_i32, %c0_i32_0 : i32, i32
  }
  func.func @transform_6(%arg0: i32) -> (i32, i32) {
    %c0_i32 = arith.constant 0 : i32
    %c0_i32_0 = arith.constant 0 : i32
    %c0_i32_1 = arith.constant 0 : i32
    return %c0_i32, %c0_i32_0 : i32, i32
  }
  func.func @transform_7(%arg0: i32) -> (i32, i32) {
    %c0_i32 = arith.constant 0 : i32
    %c0_i32_0 = arith.constant 0 : i32
    %c0_i32_1 = arith.constant 0 : i32
    return %c0_i32, %c0_i32_0 : i32, i32
  }
  func.func @transform_8(%arg0: i32) -> (i32, i32) {
    %c0_i32 = arith.constant 0 : i32
    %c0_i32_0 = arith.constant 0 : i32
    %c0_i32_1 = arith.constant 0 : i32
    return %c0_i32, %c0_i32_0 : i32, i32
  }
  func.func @transform_9(%arg0: i32) -> (i32, i32) {
    %c0_i32 = arith.constant 0 : i32
    %c0_i32_0 = arith.constant 0 : i32
    return %c0_i32, %arg0 : i32, i32
  }
}

</mosaic_0001>

<llo_original>
// kernel: grid_des_forward.1
$region0: #{grid_des_forward.1}
  #allocation0 [shape = 'u32[]', space=smem, size = 0x4, offset = 0x4, fixed_abs, tag = 'smem constant byte address 0x4 - core index']
  #allocation1 [shape = 'u32[144,128]{1,0:T(1,128)}', space=vmem, size = 0x12000, scoped, tag = 'internal scratch']
  #allocation2 [shape = 'f32[1,1]{1,0:T(1,128)S(1)}', space=vmem, size = 0x200, scoped, tag = 'scoped memory for grid_des_forward.1']
  %s0 = inlined_call_operand.vmem [shape: bf16[384,13], index: 0, kind: input, shape index: {}]
  %s1 = inlined_call_operand.vmem [shape: bf16[13,128], index: 1, kind: input, shape index: {}]
  %s2 = inlined_call_operand.vmem [shape: f32[1,128], index: 2, kind: input, shape index: {}]
  %s3 = inlined_call_operand.vmem [shape: bf16[128,256], index: 3, kind: input, shape index: {}]
  %s4 = inlined_call_operand.vmem [shape: f32[1,256], index: 4, kind: input, shape index: {}]
  %s5 = inlined_call_operand.vmem [shape: bf16[256,128], index: 5, kind: input, shape index: {}]
  %s6 = inlined_call_operand.vmem [shape: f32[1,128], index: 6, kind: input, shape index: {}]
  %s7 = inlined_call_operand.vmem [shape: f32[1,128], index: 7, kind: input, shape index: {}]
  %s8 = inlined_call_operand.<no memory space> [shape: f32[1,1], index: 8, kind: input, shape index: {}]
  %s9 = inlined_call_operand.vmem [shape: f32[1,384], index: 9, kind: output, shape index: {}]
  %s10 = sld [smem:[#allocation0]]
  $region46: #{grid_des_forward.1} parent=0
    _
  %s12 = ssub.s32 1, %s10
  %s13 = scalar_select 0, %s12, %s10
  %v14 = vstv %s8
  %15 = vst [vmem:[#allocation2] sm:$0x1] %v14
  // Predicated region
  $region2: #{grid_des_forward.1} parent=0 // pred_check
    _
  $region3: #{grid_des_forward.1} parent=0 // pred_check_branch
    %17 = sbr.rel (0) target = $region5
  $region4: #{grid_des_forward.1} parent=0 // pred_region
    _
  $region5: #{grid_des_forward.1} parent=0 // pred_fallthru
    _
  // Predicated region
  $region6: #{grid_des_forward.1} parent=0 // pred_check
    _
  $region7: #{grid_des_forward.1} parent=0 // pred_check_branch
    %19 = sbr.rel (0) target = $region9
  $region8: #{grid_des_forward.1} parent=0 // pred_region
    _
  $region9: #{grid_des_forward.1} parent=0 // pred_fallthru
    _
  // Predicated region
  $region10: #{grid_des_forward.1} parent=0 // pred_check
    _
  $region11: #{grid_des_forward.1} parent=0 // pred_check_branch
    %21 = sbr.rel (0) target = $region13
  $region12: #{grid_des_forward.1} parent=0 // pred_region
    _
  $region13: #{grid_des_forward.1} parent=0 // pred_fallthru
    _
  // Predicated region
  $region14: #{grid_des_forward.1} parent=0 // pred_check
    _
  $region15: #{grid_des_forward.1} parent=0 // pred_check_branch
    %23 = sbr.rel (0) target = $region17
  $region16: #{grid_des_forward.1} parent=0 // pred_region
    _
  $region17: #{grid_des_forward.1} parent=0 // pred_fallthru
    _
  // Predicated region
  $region18: #{grid_des_forward.1} parent=0 // pred_check
    _
  $region19: #{grid_des_forward.1} parent=0 // pred_check_branch
    %25 = sbr.rel (0) target = $region21
  $region20: #{grid_des_forward.1} parent=0 // pred_region
    _
  $region21: #{grid_des_forward.1} parent=0 // pred_fallthru
    _
  // Predicated region
  $region22: #{grid_des_forward.1} parent=0 // pred_check
    _
  $region23: #{grid_des_forward.1} parent=0 // pred_check_branch
    %27 = sbr.rel (0) target = $region25
  $region24: #{grid_des_forward.1} parent=0 // pred_region
    _
  $region25: #{grid_des_forward.1} parent=0 // pred_fallthru
    _
  // Predicated region
  $region26: #{grid_des_forward.1} parent=0 // pred_check
    _
  $region27: #{grid_des_forward.1} parent=0 // pred_check_branch
    %29 = sbr.rel (0) target = $region29
  $region28: #{grid_des_forward.1} parent=0 // pred_region
    _
  $region29: #{grid_des_forward.1} parent=0 // pred_fallthru
    _
  // Predicated region
  $region30: #{grid_des_forward.1} parent=0 // pred_check
    _
  $region31: #{grid_des_forward.1} parent=0 // pred_check_branch
    %31 = sbr.rel (0) target = $region33
  $region32: #{grid_des_forward.1} parent=0 // pred_region
    _
  $region33: #{grid_des_forward.1} parent=0 // pred_fallthru
    _
  // Predicated region
  $region34: #{grid_des_forward.1} parent=0 // pred_check
    _
  $region35: #{grid_des_forward.1} parent=0 // pred_check_branch
    %33 = sbr.rel (0) target = $region37
  $region36: #{grid_des_forward.1} parent=0 // pred_region
    _
  $region37: #{grid_des_forward.1} parent=0 // pred_fallthru
    _
  %v35 = vld [vmem:[%s0] sm:$0xf]
  %v36 = vld [vmem:[%s0 + $0x4] sm:$0xf]
  %v37 = vld [vmem:[%s0 + $0x8] sm:$0xf]
  %v38 = vld [vmem:[%s0 + $0xc] sm:$0xf]
  %v39 = vld [vmem:[%s0 + $0x10] sm:$0xf]
  %v40 = vld [vmem:[%s0 + $0x14] sm:$0xf]
  %v41 = vld [vmem:[%s0 + $0x18] sm:$0xf]
  %v42 = vld [vmem:[%s0 + $0x1c] sm:$0xf]
  %v43 = vld [vmem:[%s0 + $0x20] sm:$0xf]
  %v44 = vld [vmem:[%s0 + $0x24] sm:$0xf]
  %v45 = vld [vmem:[%s0 + $0x28] sm:$0xf]
  %v46 = vld [vmem:[%s0 + $0x2c] sm:$0xf]
  %v47 = vld [vmem:[%s0 + $0x30] sm:$0xf]
  %v48 = vld [vmem:[%s0 + $0x34] sm:$0xf]
  %v49 = vld [vmem:[%s0 + $0x38] sm:$0xf]
  %v50 = vld [vmem:[%s0 + $0x3c] sm:$0xf]
  %v51 = vld [vmem:[%s0 + $0x40] sm:$0xf]
  %v52 = vld [vmem:[%s0 + $0x44] sm:$0xf]
  %v53 = vld [vmem:[%s0 + $0x48] sm:$0xf]
  %v54 = vld [vmem:[%s0 + $0x4c] sm:$0xf]
  %v55 = vld [vmem:[%s0 + $0x50] sm:$0xf]
  %v56 = vld [vmem:[%s0 + $0x54] sm:$0xf]
  %v57 = vld [vmem:[%s0 + $0x58] sm:$0xf]
  %v58 = vld [vmem:[%s0 + $0x5c] sm:$0xf]
  %v59 = vld [vmem:[%s0 + $0x60] sm:$0xf]
  %v60 = vld [vmem:[%s0 + $0x64] sm:$0xf]
  %v61 = vld [vmem:[%s0 + $0x68] sm:$0xf]
  %v62 = vld [vmem:[%s0 + $0x6c] sm:$0xf]
  %v63 = vld [vmem:[%s0 + $0x70] sm:$0xf]
  %v64 = vld [vmem:[%s0 + $0x74] sm:$0xf]
  %v65 = vld [vmem:[%s0 + $0x78] sm:$0xf]
  %v66 = vld [vmem:[%s0 + $0x7c] sm:$0xf]
  %v67 = vld [vmem:[%s0 + $0x80] sm:$0xf]
  %v68 = vld [vmem:[%s0 + $0x84] sm:$0xf]
  %v69 = vld [vmem:[%s0 + $0x88] sm:$0xf]
  %v70 = vld [vmem:[%s0 + $0x8c] sm:$0xf]
  %v71 = vld [vmem:[%s0 + $0x90] sm:$0xf]
  %v72 = vld [vmem:[%s0 + $0x94] sm:$0xf]
  %v73 = vld [vmem:[%s0 + $0x98] sm:$0xf]
  %v74 = vld [vmem:[%s0 + $0x9c] sm:$0xf]
  %v75 = vld [vmem:[%s0 + $0xa0] sm:$0xf]
  %v76 = vld [vmem:[%s0 + $0xa4] sm:$0xf]
  %v77 = vld [vmem:[%s0 + $0xa8] sm:$0xf]
  %v78 = vld [vmem:[%s0 + $0xac] sm:$0xf]
  %v79 = vld [vmem:[%s0 + $0xb0] sm:$0xf]
  %v80 = vld [vmem:[%s0 + $0xb4] sm:$0xf]
  %v81 = vld [vmem:[%s0 + $0xb8] sm:$0xf]
  %v82 = vld [vmem:[%s0 + $0xbc] sm:$0xf]
  %v83 = vld [vmem:[%s1] sm:$0xf]
  %v84 = vld [vmem:[%s1 + $0x4] sm:$0x7]
  %v85 = vld [vmem:[%s2] sm:$0x1]
  %v87 = vlaneseq
  %v88 = vshrl.u32 %v87, 7
  %v89 = vsub.s32 0, %v88
  %v90 = vrot.slane %v85, %v89
  %v140 = vunpack.c.l.b16 %v35
  %v141 = vunpack.c.l.b16 %v36
  %v142 = vunpack.c.l.b16 %v37
  %v143 = vunpack.c.l.b16 %v38
  %v144 = vunpack.c.l.b16 %v39
  %v145 = vunpack.c.l.b16 %v40
  %v146 = vunpack.c.l.b16 %v41
  %v147 = vunpack.c.l.b16 %v42
  %v148 = vunpack.c.l.b16 %v43
  %v149 = vunpack.c.l.b16 %v44
  %v150 = vunpack.c.l.b16 %v45
  %v151 = vunpack.c.l.b16 %v46
  %v152 = vunpack.c.l.b16 %v47
  %v153 = vunpack.c.l.b16 %v48
  %v154 = vunpack.c.l.b16 %v49
  %v155 = vunpack.c.l.b16 %v50
  %v156 = vunpack.c.l.b16 %v51
  %v157 = vunpack.c.l.b16 %v52
  %v158 = vunpack.c.l.b16 %v53
  %v159 = vunpack.c.l.b16 %v54
  %v160 = vunpack.c.l.b16 %v55
  %v161 = vunpack.c.l.b16 %v56
  %v162 = vunpack.c.l.b16 %v57
  %v163 = vunpack.c.l.b16 %v58
  %v164 = vunpack.c.l.b16 %v59
  %v165 = vunpack.c.l.b16 %v60
  %v166 = vunpack.c.l.b16 %v61
  %v167 = vunpack.c.l.b16 %v62
  %v168 = vunpack.c.l.b16 %v63
  %v169 = vunpack.c.l.b16 %v64
  %v170 = vunpack.c.l.b16 %v65
  %v171 = vunpack.c.l.b16 %v66
  %v172 = vunpack.c.l.b16 %v67
  %v173 = vunpack.c.l.b16 %v68
  %v174 = vunpack.c.l.b16 %v69
  %v175 = vunpack.c.l.b16 %v70
  %v176 = vunpack.c.l.b16 %v71
  %v177 = vunpack.c.l.b16 %v72
  %v178 = vunpack.c.l.b16 %v73
  %v179 = vunpack.c.l.b16 %v74
  %v180 = vunpack.c.l.b16 %v75
  %v181 = vunpack.c.l.b16 %v76
  %v182 = vunpack.c.l.b16 %v77
  %v183 = vunpack.c.l.b16 %v78
  %v184 = vunpack.c.l.b16 %v79
  %v185 = vunpack.c.l.b16 %v80
  %v186 = vunpack.c.l.b16 %v81
  %v187 = vunpack.c.l.b16 %v82
  %v188 = vpack.c.b16 %v141, %v140
  %v189 = vpack.c.b16 %v143, %v142
  %v190 = vpack.c.b16 %v145, %v144
  %v191 = vpack.c.b16 %v147, %v146
  %v192 = vpack.c.b16 %v149, %v148
  %v193 = vpack.c.b16 %v151, %v150
  %v194 = vpack.c.b16 %v153, %v152
  %v195 = vpack.c.b16 %v155, %v154
  %v196 = vpack.c.b16 %v157, %v156
  %v197 = vpack.c.b16 %v159, %v158
  %v198 = vpack.c.b16 %v161, %v160
  %v199 = vpack.c.b16 %v163, %v162
  %v200 = vpack.c.b16 %v165, %v164
  %v201 = vpack.c.b16 %v167, %v166
  %v202 = vpack.c.b16 %v169, %v168
  %v203 = vpack.c.b16 %v171, %v170
  %v204 = vpack.c.b16 %v173, %v172
  %v205 = vpack.c.b16 %v175, %v174
  %v206 = vpack.c.b16 %v177, %v176
  %v207 = vpack.c.b16 %v179, %v178
  %v208 = vpack.c.b16 %v181, %v180
  %v209 = vpack.c.b16 %v183, %v182
  %v210 = vpack.c.b16 %v185, %v184
  %v211 = vpack.c.b16 %v187, %v186
  %v214 = vunpack.c.l.b16 %v83
  %v215 = vunpack.c.l.b16 %v84
  %v216 = vpack.c.b16 %v215, %v214
  %vm217 = vcmask 105472
  %v219 = vsel %vm217, %v188, 0
  %v222 = vsel %vm217, %v189, 0
  %v225 = vsel %vm217, %v190, 0
  %v228 = vsel %vm217, %v191, 0
  %v231 = vsel %vm217, %v192, 0
  %v234 = vsel %vm217, %v193, 0
  %v237 = vsel %vm217, %v194, 0
  %v240 = vsel %vm217, %v195, 0
  %v243 = vsel %vm217, %v196, 0
  %v246 = vsel %vm217, %v197, 0
  %v249 = vsel %vm217, %v198, 0
  %v252 = vsel %vm217, %v199, 0
  %v255 = vsel %vm217, %v200, 0
  %v258 = vsel %vm217, %v201, 0
  %v261 = vsel %vm217, %v202, 0
  %v264 = vsel %vm217, %v203, 0
  %v267 = vsel %vm217, %v204, 0
  %v270 = vsel %vm217, %v205, 0
  %v273 = vsel %vm217, %v206, 0
  %v276 = vsel %vm217, %v207, 0
  %v279 = vsel %vm217, %v208, 0
  %v282 = vsel %vm217, %v209, 0
  %v285 = vsel %vm217, %v210, 0
  %v288 = vsel %vm217, %v211, 0
  %vm290 = vcmask 1045504
  %vm291 = vcmask 1046528
  %v292 = vsel %vm290, 4294967295, 65535
  %v293 = vsel %vm291, %v292, 0
  %v295 = vand.u32 %v216, %v293
  %297 = vmatprep.subr.bf16.mxu0 0
  %298 = vmatpush1.bf16.msra.mxu0 %v295
  %299 = vmatprep.subr.bf16.mxu0 0
  %300 = vmatpush1.bf16.msra.mxu0 0
  %301 = vmatprep.subr.bf16.mxu0 0
  %302 = vmatpush1.bf16.msra.mxu0 0
  %303 = vmatprep.subr.bf16.mxu0 0
  %304 = vmatpush1.bf16.msra.mxu0 0
  %305 = vmatprep.subr.bf16.mxu0 0
  %306 = vmatpush1.bf16.msra.mxu0 0
  %307 = vmatprep.subr.bf16.mxu0 0
  %308 = vmatpush1.bf16.msra.mxu0 0
  %309 = vmatprep.subr.bf16.mxu0 0
  %310 = vmatpush1.bf16.msra.mxu0 0
  %311 = vmatprep.subr.bf16.mxu0 0
  %312 = vmatpush1.bf16.msra.mxu0 0
  %313 = vmatprep.subr.bf16.mxu0 0
  %314 = vmatpush1.bf16.msra.mxu0 0
  %315 = vmatprep.subr.bf16.mxu0 0
  %316 = vmatpush1.bf16.msra.mxu0 0
  %317 = vmatprep.subr.bf16.mxu0 0
  %318 = vmatpush1.bf16.msra.mxu0 0
  %319 = vmatprep.subr.bf16.mxu0 0
  %320 = vmatpush1.bf16.msra.mxu0 0
  %321 = vmatprep.subr.bf16.mxu0 0
  %322 = vmatpush1.bf16.msra.mxu0 0
  %323 = vmatprep.subr.bf16.mxu0 0
  %324 = vmatpush1.bf16.msra.mxu0 0
  %325 = vmatprep.subr.bf16.mxu0 0
  %326 = vmatpush1.bf16.msra.mxu0 0
  %327 = vmatprep.subr.bf16.mxu0 0
  %328 = vmatpush1.bf16.msra.mxu0 0
  %329 = vmatprep.mubr.bf16.mxu0 0
  %330 = vmatmul.mubr.bf16.gmra.mrb[0].mxu0 %v219
  %v331 = vpop.f32.mrb[0].mxu0
  %v332 = vadd.f32 %v90, %v331
  %v333 = vpop.f32.mrb[0].mxu0
  %v334 = vpop.f32.mrb[0].mxu0
  %v335 = vadd.f32 %v90, %v334
  %v336 = vpop.f32.mrb[0].mxu0
  %337 = vmatprep.mubr.bf16.mxu0 0
  %338 = vmatmul.mubr.bf16.gmra.mrb[0].mxu0 %v222
  %v339 = vpop.f32.mrb[0].mxu0
  %v340 = vadd.f32 %v90, %v339
  %v341 = vpop.f32.mrb[0].mxu0
  %v342 = vpop.f32.mrb[0].mxu0
  %v343 = vadd.f32 %v90, %v342
  %v344 = vpop.f32.mrb[0].mxu0
  %345 = vmatprep.mubr.bf16.mxu0 0
  %346 = vmatmul.mubr.bf16.gmra.mrb[0].mxu0 %v225
  %v347 = vpop.f32.mrb[0].mxu0
  %v348 = vadd.f32 %v90, %v347
  %v349 = vpop.f32.mrb[0].mxu0
  %v350 = vpop.f32.mrb[0].mxu0
  %v351 = vadd.f32 %v90, %v350
  %v352 = vpop.f32.mrb[0].mxu0
  %353 = vmatprep.mubr.bf16.mxu0 0
  %354 = vmatmul.mubr.bf16.gmra.mrb[0].mxu0 %v228
  %v355 = vpop.f32.mrb[0].mxu0
  %v356 = vadd.f32 %v90, %v355
  %v357 = vpop.f32.mrb[0].mxu0
  %v358 = vpop.f32.mrb[0].mxu0
  %v359 = vadd.f32 %v90, %v358
  %v360 = vpop.f32.mrb[0].mxu0
  %361 = vmatprep.mubr.bf16.mxu0 0
  %362 = vmatmul.mubr.bf16.gmra.mrb[0].mxu0 %v231
  %v363 = vpop.f32.mrb[0].mxu0
  %v364 = vadd.f32 %v90, %v363
  %v365 = vpop.f32.mrb[0].mxu0
  %v366 = vpop.f32.mrb[0].mxu0
  %v367 = vadd.f32 %v90, %v366
  %v368 = vpop.f32.mrb[0].mxu0
  %369 = vmatprep.mubr.bf16.mxu0 0
  %370 = vmatmul.mubr.bf16.gmra.mrb[0].mxu0 %v234
  %v371 = vpop.f32.mrb[0].mxu0
  %v372 = vadd.f32 %v90, %v371
  %v373 = vpop.f32.mrb[0].mxu0
  %v374 = vpop.f32.mrb[0].mxu0
  %v375 = vadd.f32 %v90, %v374
  %v376 = vpop.f32.mrb[0].mxu0
  %377 = vmatprep.mubr.bf16.mxu0 0
  %378 = vmatmul.mubr.bf16.gmra.mrb[0].mxu0 %v237
  %v379 = vpop.f32.mrb[0].mxu0
  %v380 = vadd.f32 %v90, %v379
  %v381 = vpop.f32.mrb[0].mxu0
  %v382 = vpop.f32.mrb[0].mxu0
  %v383 = vadd.f32 %v90, %v382
  %v384 = vpop.f32.mrb[0].mxu0
  %385 = vmatprep.mubr.bf16.mxu0 0
  %386 = vmatmul.mubr.bf16.gmra.mrb[0].mxu0 %v240
  %v387 = vpop.f32.mrb[0].mxu0
  %v388 = vadd.f32 %v90, %v387
  %v389 = vpop.f32.mrb[0].mxu0
  %v390 = vpop.f32.mrb[0].mxu0
  %v391 = vadd.f32 %v90, %v390
  %v392 = vpop.f32.mrb[0].mxu0
  %393 = vmatprep.mubr.bf16.mxu0 0
  %394 = vmatmul.mubr.bf16.gmra.mrb[0].mxu0 %v243
  %v395 = vpop.f32.mrb[0].mxu0
  %v396 = vadd.f32 %v90, %v395
  %v397 = vpop.f32.mrb[0].mxu0
  %v398 = vpop.f32.mrb[0].mxu0
  %v399 = vadd.f32 %v90, %v398
  %v400 = vpop.f32.mrb[0].mxu0
  %401 = vmatprep.mubr.bf16.mxu0 0
  %402 = vmatmul.mubr.bf16.gmra.mrb[0].mxu0 %v246
  %v403 = vpop.f32.mrb[0].mxu0
  %v404 = vadd.f32 %v90, %v403
  %v405 = vpop.f32.mrb[0].mxu0
  %v406 = vpop.f32.mrb[0].mxu0
  %v407 = vadd.f32 %v90, %v406
  %v408 = vpop.f32.mrb[0].mxu0
  %409 = vmatprep.mubr.bf16.mxu0 0
  %410 = vmatmul.mubr.bf16.gmra.mrb[0].mxu0 %v249
  %v411 = vpop.f32.mrb[0].mxu0
  %v412 = vadd.f32 %v90, %v411
  %v413 = vpop.f32.mrb[0].mxu0
  %v414 = vpop.f32.mrb[0].mxu0
  %v415 = vadd.f32 %v90, %v414
  %v416 = vpop.f32.mrb[0].mxu0
  %417 = vmatprep.mubr.bf16.mxu0 0
  %418 = vmatmul.mubr.bf16.gmra.mrb[0].mxu0 %v252
  %v419 = vpop.f32.mrb[0].mxu0
  %v420 = vadd.f32 %v90, %v419
  %v421 = vpop.f32.mrb[0].mxu0
  %v422 = vpop.f32.mrb[0].mxu0
  %v423 = vadd.f32 %v90, %v422
  %v424 = vpop.f32.mrb[0].mxu0
  %425 = vmatprep.mubr.bf16.mxu0 0
  %426 = vmatmul.mubr.bf16.gmra.mrb[0].mxu0 %v255
  %v427 = vpop.f32.mrb[0].mxu0
  %v428 = vadd.f32 %v90, %v427
  %v429 = vpop.f32.mrb[0].mxu0
  %v430 = vpop.f32.mrb[0].mxu0
  %v431 = vadd.f32 %v90, %v430
  %v432 = vpop.f32.mrb[0].mxu0
  %433 = vmatprep.mubr.bf16.mxu0 0
  %434 = vmatmul.mubr.bf16.gmra.mrb[0].mxu0 %v258
  %v435 = vpop.f32.mrb[0].mxu0
  %v436 = vadd.f32 %v90, %v435
  %v437 = vpop.f32.mrb[0].mxu0
  %v438 = vpop.f32.mrb[0].mxu0
  %v439 = vadd.f32 %v90, %v438
  %v440 = vpop.f32.mrb[0].mxu0
  %441 = vmatprep.mubr.bf16.mxu0 0
  %442 = vmatmul.mubr.bf16.gmra.mrb[0].mxu0 %v261
  %v443 = vpop.f32.mrb[0].mxu0
  %v444 = vadd.f32 %v90, %v443
  %v445 = vpop.f32.mrb[0].mxu0
  %v446 = vpop.f32.mrb[0].mxu0
  %v447 = vadd.f32 %v90, %v446
  %v448 = vpop.f32.mrb[0].mxu0
  %449 = vmatprep.mubr.bf16.mxu0 0
  %450 = vmatmul.mubr.bf16.gmra.mrb[0].mxu0 %v264
  %v451 = vpop.f32.mrb[0].mxu0
  %v452 = vadd.f32 %v90, %v451
  %v453 = vpop.f32.mrb[0].mxu0
  %v454 = vpop.f32.mrb[0].mxu0
  %v455 = vadd.f32 %v90, %v454
  %v456 = vpop.f32.mrb[0].mxu0
  %457 = vmatprep.mubr.bf16.mxu0 0
  %458 = vmatmul.mubr.bf16.gmra.mrb[0].mxu0 %v267
  %v459 = vpop.f32.mrb[0].mxu0
  %v460 = vadd.f32 %v90, %v459
  %v461 = vpop.f32.mrb[0].mxu0
  %v462 = vpop.f32.mrb[0].mxu0
  %v463 = vadd.f32 %v90, %v462
  %v464 = vpop.f32.mrb[0].mxu0
  %465 = vmatprep.mubr.bf16.mxu0 0
  %466 = vmatmul.mubr.bf16.gmra.mrb[0].mxu0 %v270
  %v467 = vpop.f32.mrb[0].mxu0
  %v468 = vadd.f32 %v90, %v467
  %v469 = vpop.f32.mrb[0].mxu0
  %v470 = vpop.f32.mrb[0].mxu0
  %v471 = vadd.f32 %v90, %v470
  %v472 = vpop.f32.mrb[0].mxu0
  %473 = vmatprep.mubr.bf16.mxu0 0
  %474 = vmatmul.mubr.bf16.gmra.mrb[0].mxu0 %v273
  %v475 = vpop.f32.mrb[0].mxu0
  %v476 = vadd.f32 %v90, %v475
  %v477 = vpop.f32.mrb[0].mxu0
  %v478 = vpop.f32.mrb[0].mxu0
  %v479 = vadd.f32 %v90, %v478
  %v480 = vpop.f32.mrb[0].mxu0
  %481 = vmatprep.mubr.bf16.mxu0 0
  %482 = vmatmul.mubr.bf16.gmra.mrb[0].mxu0 %v276
  %v483 = vpop.f32.mrb[0].mxu0
  %v484 = vadd.f32 %v90, %v483
  %v485 = vpop.f32.mrb[0].mxu0
  %v486 = vpop.f32.mrb[0].mxu0
  %v487 = vadd.f32 %v90, %v486
  %v488 = vpop.f32.mrb[0].mxu0
  %489 = vmatprep.mubr.bf16.mxu0 0
  %490 = vmatmul.mubr.bf16.gmra.mrb[0].mxu0 %v279
  %v491 = vpop.f32.mrb[0].mxu0
  %v492 = vadd.f32 %v90, %v491
  %v493 = vpop.f32.mrb[0].mxu0
  %v494 = vpop.f32.mrb[0].mxu0
  %v495 = vadd.f32 %v90, %v494
  %v496 = vpop.f32.mrb[0].mxu0
  %497 = vmatprep.mubr.bf16.mxu0 0
  %498 = vmatmul.mubr.bf16.gmra.mrb[0].mxu0 %v282
  %v499 = vpop.f32.mrb[0].mxu0
  %v500 = vadd.f32 %v90, %v499
  %v501 = vpop.f32.mrb[0].mxu0
  %v502 = vpop.f32.mrb[0].mxu0
  %v503 = vadd.f32 %v90, %v502
  %v504 = vpop.f32.mrb[0].mxu0
  %505 = vmatprep.mubr.bf16.mxu0 0
  %506 = vmatmul.mubr.bf16.gmra.mrb[0].mxu0 %v285
  %v507 = vpop.f32.mrb[0].mxu0
  %v508 = vadd.f32 %v90, %v507
  %v509 = vpop.f32.mrb[0].mxu0
  %v510 = vpop.f32.mrb[0].mxu0
  %v511 = vadd.f32 %v90, %v510
  %v512 = vpop.f32.mrb[0].mxu0
  %513 = vmatprep.mubr.bf16.mxu0 0
  %514 = vmatmul.mubr.bf16.gmra.mrb[0].mxu0 %v288
  %v515 = vpop.f32.mrb[0].mxu0
  %v516 = vadd.f32 %v90, %v515
  %v517 = vpop.f32.mrb[0].mxu0
  %v518 = vpop.f32.mrb[0].mxu0
  %v519 = vadd.f32 %v90, %v518
  %v520 = vpop.f32.mrb[0].mxu0
  %521 = vdwg.mxu0
  %v522 = vmax.f32 %v332, 0.0
  %v523 = vmax.f32 %v335, 0.0
  %v524 = vmax.f32 %v340, 0.0
  %v525 = vmax.f32 %v343, 0.0
  %v526 = vmax.f32 %v348, 0.0
  %v527 = vmax.f32 %v351, 0.0
  %v528 = vmax.f32 %v356, 0.0
  %v529 = vmax.f32 %v359, 0.0
  %v530 = vmax.f32 %v364, 0.0
  %v531 = vmax.f32 %v367, 0.0
  %v532 = vmax.f32 %v372, 0.0
  %v533 = vmax.f32 %v375, 0.0
  %v534 = vmax.f32 %v380, 0.0
  %v535 = vmax.f32 %v383, 0.0
  %v536 = vmax.f32 %v388, 0.0
  %v537 = vmax.f32 %v391, 0.0
  %v538 = vmax.f32 %v396, 0.0
  %v539 = vmax.f32 %v399, 0.0
  %v540 = vmax.f32 %v404, 0.0
  %v541 = vmax.f32 %v407, 0.0
  %v542 = vmax.f32 %v412, 0.0
  %v543 = vmax.f32 %v415, 0.0
  %v544 = vmax.f32 %v420, 0.0
  %v545 = vmax.f32 %v423, 0.0
  %v546 = vmax.f32 %v428, 0.0
  %v547 = vmax.f32 %v431, 0.0
  %v548 = vmax.f32 %v436, 0.0
  %v549 = vmax.f32 %v439, 0.0
  %v550 = vmax.f32 %v444, 0.0
  %v551 = vmax.f32 %v447, 0.0
  %v552 = vmax.f32 %v452, 0.0
  %v553 = vmax.f32 %v455, 0.0
  %v554 = vmax.f32 %v460, 0.0
  %v555 = vmax.f32 %v463, 0.0
  %v556 = vmax.f32 %v468, 0.0
  %v557 = vmax.f32 %v471, 0.0
  %v558 = vmax.f32 %v476, 0.0
  %v559 = vmax.f32 %v479, 0.0
  %v560 = vmax.f32 %v484, 0.0
  %v561 = vmax.f32 %v487, 0.0
  %v562 = vmax.f32 %v492, 0.0
  %v563 = vmax.f32 %v495, 0.0
  %v564 = vmax.f32 %v500, 0.0
  %v565 = vmax.f32 %v503, 0.0
  %v566 = vmax.f32 %v508, 0.0
  %v567 = vmax.f32 %v511, 0.0
  %v568 = vmax.f32 %v516, 0.0
  %v569 = vmax.f32 %v519, 0.0
  %v570 = vpack.c.bf16 %v523, %v522
  %v571 = vpack.c.bf16 %v525, %v524
  %v572 = vpack.c.bf16 %v527, %v526
  %v573 = vpack.c.bf16 %v529, %v528
  %v574 = vpack.c.bf16 %v531, %v530
  %v575 = vpack.c.bf16 %v533, %v532
  %v576 = vpack.c.bf16 %v535, %v534
  %v577 = vpack.c.bf16 %v537, %v536
  %v578 = vpack.c.bf16 %v539, %v538
  %v579 = vpack.c.bf16 %v541, %v540
  %v580 = vpack.c.bf16 %v543, %v542
  %v581 = vpack.c.bf16 %v545, %v544
  %v582 = vpack.c.bf16 %v547, %v546
  %v583 = vpack.c.bf16 %v549, %v548
  %v584 = vpack.c.bf16 %v551, %v550
  %v585 = vpack.c.bf16 %v553, %v552
  %v586 = vpack.c.bf16 %v555, %v554
  %v587 = vpack.c.bf16 %v557, %v556
  %v588 = vpack.c.bf16 %v559, %v558
  %v589 = vpack.c.bf16 %v561, %v560
  %v590 = vpack.c.bf16 %v563, %v562
  %v591 = vpack.c.bf16 %v565, %v564
  %v592 = vpack.c.bf16 %v567, %v566
  %v593 = vpack.c.bf16 %v569, %v568
  %v594 = vld [vmem:[%s3] sm:$0xff]
  %v595 = vld [vmem:[%s3 + $0x8] sm:$0xff]
  %v596 = vld [vmem:[%s3 + $0x10] sm:$0xff]
  %v597 = vld [vmem:[%s3 + $0x18] sm:$0xff]
  %v598 = vld [vmem:[%s3 + $0x20] sm:$0xff]
  %v599 = vld [vmem:[%s3 + $0x28] sm:$0xff]
  %v600 = vld [vmem:[%s3 + $0x30] sm:$0xff]
  %v601 = vld [vmem:[%s3 + $0x38] sm:$0xff]
  %v602 = vld [vmem:[%s3 + $0x40] sm:$0xff]
  %v603 = vld [vmem:[%s3 + $0x48] sm:$0xff]
  %v604 = vld [vmem:[%s3 + $0x50] sm:$0xff]
  %v605 = vld [vmem:[%s3 + $0x58] sm:$0xff]
  %v606 = vld [vmem:[%s3 + $0x60] sm:$0xff]
  %v607 = vld [vmem:[%s3 + $0x68] sm:$0xff]
  %v608 = vld [vmem:[%s3 + $0x70] sm:$0xff]
  %v609 = vld [vmem:[%s3 + $0x78] sm:$0xff]
  %v610 = vld [vmem:[%s4] sm:$0x3]
  %v612 = vlaneseq
  %v613 = vshrl.u32 %v612, 7
  %v614 = vsub.s32 0, %v613
  %v615 = vrot.slane %v610, %v614
  %v616 = vlaneseq
  %v617 = vshrl.u32 %v616, 7
  %v618 = vsub.s32 1, %v617
  %v619 = vrot.slane %v610, %v618
  %v638 = vunpack.c.l.b16 %v594
  %v639 = vunpack.c.h.b16 %v594
  %v640 = vunpack.c.l.b16 %v595
  %v641 = vunpack.c.h.b16 %v595
  %v642 = vunpack.c.l.b16 %v596
  %v643 = vunpack.c.h.b16 %v596
  %v644 = vunpack.c.l.b16 %v597
  %v645 = vunpack.c.h.b16 %v597
  %v646 = vunpack.c.l.b16 %v598
  %v647 = vunpack.c.h.b16 %v598
  %v648 = vunpack.c.l.b16 %v599
  %v649 = vunpack.c.h.b16 %v599
  %v650 = vunpack.c.l.b16 %v600
  %v651 = vunpack.c.h.b16 %v600
  %v652 = vunpack.c.l.b16 %v601
  %v653 = vunpack.c.h.b16 %v601
  %v654 = vunpack.c.l.b16 %v602
  %v655 = vunpack.c.h.b16 %v602
  %v656 = vunpack.c.l.b16 %v603
  %v657 = vunpack.c.h.b16 %v603
  %v658 = vunpack.c.l.b16 %v604
  %v659 = vunpack.c.h.b16 %v604
  %v660 = vunpack.c.l.b16 %v605
  %v661 = vunpack.c.h.b16 %v605
  %v662 = vunpack.c.l.b16 %v606
  %v663 = vunpack.c.h.b16 %v606
  %v664 = vunpack.c.l.b16 %v607
  %v665 = vunpack.c.h.b16 %v607
  %v666 = vunpack.c.l.b16 %v608
  %v667 = vunpack.c.h.b16 %v608
  %v668 = vunpack.c.l.b16 %v609
  %v669 = vunpack.c.h.b16 %v609
  %v670 = vpack.c.b16 %v640, %v638
  %v671 = vpack.c.b16 %v641, %v639
  %v672 = vpack.c.b16 %v644, %v642
  %v673 = vpack.c.b16 %v645, %v643
  %v674 = vpack.c.b16 %v648, %v646
  %v675 = vpack.c.b16 %v649, %v647
  %v676 = vpack.c.b16 %v652, %v650
  %v677 = vpack.c.b16 %v653, %v651
  %v678 = vpack.c.b16 %v656, %v654
  %v679 = vpack.c.b16 %v657, %v655
  %v680 = vpack.c.b16 %v660, %v658
  %v681 = vpack.c.b16 %v661, %v659
  %v682 = vpack.c.b16 %v664, %v662
  %v683 = vpack.c.b16 %v665, %v663
  %v684 = vpack.c.b16 %v668, %v666
  %v685 = vpack.c.b16 %v669, %v667
  %702 = vmatprep.subr.bf16.mxu0 %v671
  %703 = vmatpush1.bf16.msra.mxu0 %v670
  %704 = vmatprep.subr.bf16.mxu0 %v673
  %705 = vmatpush1.bf16.msra.mxu0 %v672
  %706 = vmatprep.subr.bf16.mxu0 %v675
  %707 = vmatpush1.bf16.msra.mxu0 %v674
  %708 = vmatprep.subr.bf16.mxu0 %v677
  %709 = vmatpush1.bf16.msra.mxu0 %v676
  %710 = vmatprep.subr.bf16.mxu0 %v679
  %711 = vmatpush1.bf16.msra.mxu0 %v678
  %712 = vmatprep.subr.bf16.mxu0 %v681
  %713 = vmatpush1.bf16.msra.mxu0 %v680
  %714 = vmatprep.subr.bf16.mxu0 %v683
  %715 = vmatpush1.bf16.msra.mxu0 %v682
  %716 = vmatprep.subr.bf16.mxu0 %v685
  %717 = vmatpush1.bf16.msra.mxu0 %v684
  %718 = vmatprep.subr.bf16.mxu0 0
  %719 = vmatpush1.bf16.msra.mxu0 0
  %720 = vmatprep.subr.bf16.mxu0 0
  %721 = vmatpush1.bf16.msra.mxu0 0
  %722 = vmatprep.subr.bf16.mxu0 0
  %723 = vmatpush1.bf16.msra.mxu0 0
  %724 = vmatprep.subr.bf16.mxu0 0
  %725 = vmatpush1.bf16.msra.mxu0 0
  %726 = vmatprep.subr.bf16.mxu0 0
  %727 = vmatpush1.bf16.msra.mxu0 0
  %728 = vmatprep.subr.bf16.mxu0 0
  %729 = vmatpush1.bf16.msra.mxu0 0
  %730 = vmatprep.subr.bf16.mxu0 0
  %731 = vmatpush1.bf16.msra.mxu0 0
  %732 = vmatprep.subr.bf16.mxu0 0
  %733 = vmatpush1.bf16.msra.mxu0 0
  %734 = vmatprep.mubr.bf16.mxu0 0
  %735 = vmatmul.mubr.bf16.gmra.mrb[0].mxu0 %v570
  %v736 = vpop.f32.mrb[0].mxu0
  %v737 = vadd.f32 %v615, %v736
  %v738 = vpop.f32.mrb[0].mxu0
  %v739 = vadd.f32 %v619, %v738
  %v740 = vpop.f32.mrb[0].mxu0
  %v741 = vadd.f32 %v615, %v740
  %v742 = vpop.f32.mrb[0].mxu0
  %v743 = vadd.f32 %v619, %v742
  %744 = vmatprep.mubr.bf16.mxu0 0
  %745 = vmatmul.mubr.bf16.gmra.mrb[0].mxu0 %v571
  %v746 = vpop.f32.mrb[0].mxu0
  %v747 = vadd.f32 %v615, %v746
  %v748 = vpop.f32.mrb[0].mxu0
  %v749 = vadd.f32 %v619, %v748
  %v750 = vpop.f32.mrb[0].mxu0
  %v751 = vadd.f32 %v615, %v750
  %v752 = vpop.f32.mrb[0].mxu0
  %v753 = vadd.f32 %v619, %v752
  %754 = vmatprep.mubr.bf16.mxu0 0
  %755 = vmatmul.mubr.bf16.gmra.mrb[0].mxu0 %v572
  %v756 = vpop.f32.mrb[0].mxu0
  %v757 = vadd.f32 %v615, %v756
  %v758 = vpop.f32.mrb[0].mxu0
  %v759 = vadd.f32 %v619, %v758
  %v760 = vpop.f32.mrb[0].mxu0
  %v761 = vadd.f32 %v615, %v760
  %v762 = vpop.f32.mrb[0].mxu0
  %v763 = vadd.f32 %v619, %v762
  %764 = vmatprep.mubr.bf16.mxu0 0
  %765 = vmatmul.mubr.bf16.gmra.mrb[0].mxu0 %v573
  %v766 = vpop.f32.mrb[0].mxu0
  %v767 = vadd.f32 %v615, %v766
  %v768 = vpop.f32.mrb[0].mxu0
  %v769 = vadd.f32 %v619, %v768
  %v770 = vpop.f32.mrb[0].mxu0
  %v771 = vadd.f32 %v615, %v770
  %v772 = vpop.f32.mrb[0].mxu0
  %v773 = vadd.f32 %v619, %v772
  %774 = vmatprep.mubr.bf16.mxu0 0
  %775 = vmatmul.mubr.bf16.gmra.mrb[0].mxu0 %v574
  %v776 = vpop.f32.mrb[0].mxu0
  %v777 = vadd.f32 %v615, %v776
  %v778 = vpop.f32.mrb[0].mxu0
  %v779 = vadd.f32 %v619, %v778
  %v780 = vpop.f32.mrb[0].mxu0
  %v781 = vadd.f32 %v615, %v780
  %v782 = vpop.f32.mrb[0].mxu0
  %v783 = vadd.f32 %v619, %v782
  %784 = vmatprep.mubr.bf16.mxu0 0
  %785 = vmatmul.mubr.bf16.gmra.mrb[0].mxu0 %v575
  %v786 = vpop.f32.mrb[0].mxu0
  %v787 = vadd.f32 %v615, %v786
  %v788 = vpop.f32.mrb[0].mxu0
  %v789 = vadd.f32 %v619, %v788
  %v790 = vpop.f32.mrb[0].mxu0
  %v791 = vadd.f32 %v615, %v790
  %v792 = vpop.f32.mrb[0].mxu0
  %v793 = vadd.f32 %v619, %v792
  %794 = vmatprep.mubr.bf16.mxu0 0
  %795 = vmatmul.mubr.bf16.gmra.mrb[0].mxu0 %v576
  %v796 = vpop.f32.mrb[0].mxu0
  %v797 = vadd.f32 %v615, %v796
  %v798 = vpop.f32.mrb[0].mxu0
  %v799 = vadd.f32 %v619, %v798
  %v800 = vpop.f32.mrb[0].mxu0
  %v801 = vadd.f32 %v615, %v800
  %v802 = vpop.f32.mrb[0].mxu0
  %v803 = vadd.f32 %v619, %v802
  %804 = vmatprep.mubr.bf16.mxu0 0
  %805 = vmatmul.mubr.bf16.gmra.mrb[0].mxu0 %v577
  %v806 = vpop.f32.mrb[0].mxu0
  %v807 = vadd.f32 %v615, %v806
  %v808 = vpop.f32.mrb[0].mxu0
  %v809 = vadd.f32 %v619, %v808
  %v810 = vpop.f32.mrb[0].mxu0
  %v811 = vadd.f32 %v615, %v810
  %v812 = vpop.f32.mrb[0].mxu0
  %v813 = vadd.f32 %v619, %v812
  %814 = vmatprep.mubr.bf16.mxu0 0
  %815 = vmatmul.mubr.bf16.gmra.mrb[0].mxu0 %v578
  %v816 = vpop.f32.mrb[0].mxu0
  %v817 = vadd.f32 %v615, %v816
  %v818 = vpop.f32.mrb[0].mxu0
  %v819 = vadd.f32 %v619, %v818
  %v820 = vpop.f32.mrb[0].mxu0
  %v821 = vadd.f32 %v615, %v820
  %v822 = vpop.f32.mrb[0].mxu0
  %v823 = vadd.f32 %v619, %v822
  %824 = vmatprep.mubr.bf16.mxu0 0
  %825 = vmatmul.mubr.bf16.gmra.mrb[0].mxu0 %v579
  %v826 = vpop.f32.mrb[0].mxu0
  %v827 = vadd.f32 %v615, %v826
  %v828 = vpop.f32.mrb[0].mxu0
  %v829 = vadd.f32 %v619, %v828
  %v830 = vpop.f32.mrb[0].mxu0
  %v831 = vadd.f32 %v615, %v830
  %v832 = vpop.f32.mrb[0].mxu0
  %v833 = vadd.f32 %v619, %v832
  %834 = vmatprep.mubr.bf16.mxu0 0
  %835 = vmatmul.mubr.bf16.gmra.mrb[0].mxu0 %v580
  %v836 = vpop.f32.mrb[0].mxu0
  %v837 = vadd.f32 %v615, %v836
  %v838 = vpop.f32.mrb[0].mxu0
  %v839 = vadd.f32 %v619, %v838
  %v840 = vpop.f32.mrb[0].mxu0
  %v841 = vadd.f32 %v615, %v840
  %v842 = vpop.f32.mrb[0].mxu0
  %v843 = vadd.f32 %v619, %v842
  %844 = vmatprep.mubr.bf16.mxu0 0
  %845 = vmatmul.mubr.bf16.gmra.mrb[0].mxu0 %v581
  %v846 = vpop.f32.mrb[0].mxu0
  %v847 = vadd.f32 %v615, %v846
  %v848 = vpop.f32.mrb[0].mxu0
  %v849 = vadd.f32 %v619, %v848
  %v850 = vpop.f32.mrb[0].mxu0
  %v851 = vadd.f32 %v615, %v850
  %v852 = vpop.f32.mrb[0].mxu0
  %v853 = vadd.f32 %v619, %v852
  %854 = vmatprep.mubr.bf16.mxu0 0
  %855 = vmatmul.mubr.bf16.gmra.mrb[0].mxu0 %v582
  %v856 = vpop.f32.mrb[0].mxu0
  %v857 = vadd.f32 %v615, %v856
  %v858 = vpop.f32.mrb[0].mxu0
  %v859 = vadd.f32 %v619, %v858
  %v860 = vpop.f32.mrb[0].mxu0
  %v861 = vadd.f32 %v615, %v860
  %v862 = vpop.f32.mrb[0].mxu0
  %v863 = vadd.f32 %v619, %v862
  %864 = vmatprep.mubr.bf16.mxu0 0
  %865 = vmatmul.mubr.bf16.gmra.mrb[0].mxu0 %v583
  %v866 = vpop.f32.mrb[0].mxu0
  %v867 = vadd.f32 %v615, %v866
  %v868 = vpop.f32.mrb[0].mxu0
  %v869 = vadd.f32 %v619, %v868
  %v870 = vpop.f32.mrb[0].mxu0
  %v871 = vadd.f32 %v615, %v870
  %v872 = vpop.f32.mrb[0].mxu0
  %v873 = vadd.f32 %v619, %v872
  %874 = vmatprep.mubr.bf16.mxu0 0
  %875 = vmatmul.mubr.bf16.gmra.mrb[0].mxu0 %v584
  %v876 = vpop.f32.mrb[0].mxu0
  %v877 = vadd.f32 %v615, %v876
  %v878 = vpop.f32.mrb[0].mxu0
  %v879 = vadd.f32 %v619, %v878
  %v880 = vpop.f32.mrb[0].mxu0
  %v881 = vadd.f32 %v615, %v880
  %v882 = vpop.f32.mrb[0].mxu0
  %v883 = vadd.f32 %v619, %v882
  %884 = vmatprep.mubr.bf16.mxu0 0
  %885 = vmatmul.mubr.bf16.gmra.mrb[0].mxu0 %v585
  %v886 = vpop.f32.mrb[0].mxu0
  %v887 = vadd.f32 %v615, %v886
  %v888 = vpop.f32.mrb[0].mxu0
  %v889 = vadd.f32 %v619, %v888
  %v890 = vpop.f32.mrb[0].mxu0
  %v891 = vadd.f32 %v615, %v890
  %v892 = vpop.f32.mrb[0].mxu0
  %v893 = vadd.f32 %v619, %v892
  %894 = vmatprep.mubr.bf16.mxu0 0
  %895 = vmatmul.mubr.bf16.gmra.mrb[0].mxu0 %v586
  %v896 = vpop.f32.mrb[0].mxu0
  %v897 = vadd.f32 %v615, %v896
  %v898 = vpop.f32.mrb[0].mxu0
  %v899 = vadd.f32 %v619, %v898
  %v900 = vpop.f32.mrb[0].mxu0
  %v901 = vadd.f32 %v615, %v900
  %v902 = vpop.f32.mrb[0].mxu0
  %v903 = vadd.f32 %v619, %v902
  %904 = vmatprep.mubr.bf16.mxu0 0
  %905 = vmatmul.mubr.bf16.gmra.mrb[0].mxu0 %v587
  %v906 = vpop.f32.mrb[0].mxu0
  %v907 = vadd.f32 %v615, %v906
  %v908 = vpop.f32.mrb[0].mxu0
  %v909 = vadd.f32 %v619, %v908
  %v910 = vpop.f32.mrb[0].mxu0
  %v911 = vadd.f32 %v615, %v910
  %v912 = vpop.f32.mrb[0].mxu0
  %v913 = vadd.f32 %v619, %v912
  %914 = vmatprep.mubr.bf16.mxu0 0
  %915 = vmatmul.mubr.bf16.gmra.mrb[0].mxu0 %v588
  %v916 = vpop.f32.mrb[0].mxu0
  %v917 = vadd.f32 %v615, %v916
  %v918 = vpop.f32.mrb[0].mxu0
  %v919 = vadd.f32 %v619, %v918
  %v920 = vpop.f32.mrb[0].mxu0
  %v921 = vadd.f32 %v615, %v920
  %v922 = vpop.f32.mrb[0].mxu0
  %v923 = vadd.f32 %v619, %v922
  %924 = vmatprep.mubr.bf16.mxu0 0
  %925 = vmatmul.mubr.bf16.gmra.mrb[0].mxu0 %v589
  %v926 = vpop.f32.mrb[0].mxu0
  %v927 = vadd.f32 %v615, %v926
  %v928 = vpop.f32.mrb[0].mxu0
  %v929 = vadd.f32 %v619, %v928
  %v930 = vpop.f32.mrb[0].mxu0
  %v931 = vadd.f32 %v615, %v930
  %v932 = vpop.f32.mrb[0].mxu0
  %v933 = vadd.f32 %v619, %v932
  %934 = vmatprep.mubr.bf16.mxu0 0
  %935 = vmatmul.mubr.bf16.gmra.mrb[0].mxu0 %v590
  %v936 = vpop.f32.mrb[0].mxu0
  %v937 = vadd.f32 %v615, %v936
  %v938 = vpop.f32.mrb[0].mxu0
  %v939 = vadd.f32 %v619, %v938
  %v940 = vpop.f32.mrb[0].mxu0
  %v941 = vadd.f32 %v615, %v940
  %v942 = vpop.f32.mrb[0].mxu0
  %v943 = vadd.f32 %v619, %v942
  %944 = vmatprep.mubr.bf16.mxu0 0
  %945 = vmatmul.mubr.bf16.gmra.mrb[0].mxu0 %v591
  %v946 = vpop.f32.mrb[0].mxu0
  %v947 = vadd.f32 %v615, %v946
  %v948 = vpop.f32.mrb[0].mxu0
  %v949 = vadd.f32 %v619, %v948
  %v950 = vpop.f32.mrb[0].mxu0
  %v951 = vadd.f32 %v615, %v950
  %v952 = vpop.f32.mrb[0].mxu0
  %v953 = vadd.f32 %v619, %v952
  %954 = vmatprep.mubr.bf16.mxu0 0
  %955 = vmatmul.mubr.bf16.gmra.mrb[0].mxu0 %v592
  %v956 = vpop.f32.mrb[0].mxu0
  %v957 = vadd.f32 %v615, %v956
  %v958 = vpop.f32.mrb[0].mxu0
  %v959 = vadd.f32 %v619, %v958
  %v960 = vpop.f32.mrb[0].mxu0
  %v961 = vadd.f32 %v615, %v960
  %v962 = vpop.f32.mrb[0].mxu0
  %v963 = vadd.f32 %v619, %v962
  %964 = vmatprep.mubr.bf16.mxu0 0
  %965 = vmatmul.mubr.bf16.gmra.mrb[0].mxu0 %v593
  %v966 = vpop.f32.mrb[0].mxu0
  %v967 = vadd.f32 %v615, %v966
  %v968 = vpop.f32.mrb[0].mxu0
  %v969 = vadd.f32 %v619, %v968
  %v970 = vpop.f32.mrb[0].mxu0
  %v971 = vadd.f32 %v615, %v970
  %v972 = vpop.f32.mrb[0].mxu0
  %v973 = vadd.f32 %v619, %v972
  %974 = vdwg.mxu0
  %v975 = vmax.f32 %v737, 0.0
  %v976 = vmax.f32 %v739, 0.0
  %v977 = vmax.f32 %v741, 0.0
  %v978 = vmax.f32 %v743, 0.0
  %v979 = vmax.f32 %v747, 0.0
  %v980 = vmax.f32 %v749, 0.0
  %v981 = vmax.f32 %v751, 0.0
  %v982 = vmax.f32 %v753, 0.0
  %v983 = vmax.f32 %v757, 0.0
  %v984 = vmax.f32 %v759, 0.0
  %v985 = vmax.f32 %v761, 0.0
  %v986 = vmax.f32 %v763, 0.0
  %v987 = vmax.f32 %v767, 0.0
  %v988 = vmax.f32 %v769, 0.0
  %v989 = vmax.f32 %v771, 0.0
  %v990 = vmax.f32 %v773, 0.0
  %v991 = vmax.f32 %v777, 0.0
  %v992 = vmax.f32 %v779, 0.0
  %v993 = vmax.f32 %v781, 0.0
  %v994 = vmax.f32 %v783, 0.0
  %v995 = vmax.f32 %v787, 0.0
  %v996 = vmax.f32 %v789, 0.0
  %v997 = vmax.f32 %v791, 0.0
  %v998 = vmax.f32 %v793, 0.0
  %v999 = vmax.f32 %v797, 0.0
  %v1000 = vmax.f32 %v799, 0.0
  %v1001 = vmax.f32 %v801, 0.0
  %v1002 = vmax.f32 %v803, 0.0
  %v1003 = vmax.f32 %v807, 0.0
  %v1004 = vmax.f32 %v809, 0.0
  %v1005 = vmax.f32 %v811, 0.0
  %v1006 = vmax.f32 %v813, 0.0
  %v1007 = vmax.f32 %v817, 0.0
  %v1008 = vmax.f32 %v819, 0.0
  %v1009 = vmax.f32 %v821, 0.0
  %v1010 = vmax.f32 %v823, 0.0
  %v1011 = vmax.f32 %v827, 0.0
  %v1012 = vmax.f32 %v829, 0.0
  %v1013 = vmax.f32 %v831, 0.0
  %v1014 = vmax.f32 %v833, 0.0
  %v1015 = vmax.f32 %v837, 0.0
  %v1016 = vmax.f32 %v839, 0.0
  %v1017 = vmax.f32 %v841, 0.0
  %v1018 = vmax.f32 %v843, 0.0
  %v1019 = vmax.f32 %v847, 0.0
  %v1020 = vmax.f32 %v849, 0.0
  %v1021 = vmax.f32 %v851, 0.0
  %v1022 = vmax.f32 %v853, 0.0
  %v1023 = vmax.f32 %v857, 0.0
  %v1024 = vmax.f32 %v859, 0.0
  %v1025 = vmax.f32 %v861, 0.0
  %v1026 = vmax.f32 %v863, 0.0
  %v1027 = vmax.f32 %v867, 0.0
  %v1028 = vmax.f32 %v869, 0.0
  %v1029 = vmax.f32 %v871, 0.0
  %v1030 = vmax.f32 %v873, 0.0
  %v1031 = vmax.f32 %v877, 0.0
  %v1032 = vmax.f32 %v879, 0.0
  %v1033 = vmax.f32 %v881, 0.0
  %v1034 = vmax.f32 %v883, 0.0
  %v1035 = vmax.f32 %v887, 0.0
  %v1036 = vmax.f32 %v889, 0.0
  %v1037 = vmax.f32 %v891, 0.0
  %v1038 = vmax.f32 %v893, 0.0
  %v1039 = vmax.f32 %v897, 0.0
  %v1040 = vmax.f32 %v899, 0.0
  %v1041 = vmax.f32 %v901, 0.0
  %v1042 = vmax.f32 %v903, 0.0
  %v1043 = vmax.f32 %v907, 0.0
  %v1044 = vmax.f32 %v909, 0.0
  %v1045 = vmax.f32 %v911, 0.0
  %v1046 = vmax.f32 %v913, 0.0
  %v1047 = vmax.f32 %v917, 0.0
  %v1048 = vmax.f32 %v919, 0.0
  %v1049 = vmax.f32 %v921, 0.0
  %v1050 = vmax.f32 %v923, 0.0
  %v1051 = vmax.f32 %v927, 0.0
  %v1052 = vmax.f32 %v929, 0.0
  %v1053 = vmax.f32 %v931, 0.0
  %v1054 = vmax.f32 %v933, 0.0
  %v1055 = vmax.f32 %v937, 0.0
  %v1056 = vmax.f32 %v939, 0.0
  %v1057 = vmax.f32 %v941, 0.0
  %v1058 = vmax.f32 %v943, 0.0
  %v1059 = vmax.f32 %v947, 0.0
  %v1060 = vmax.f32 %v949, 0.0
  %v1061 = vmax.f32 %v951, 0.0
  %v1062 = vmax.f32 %v953, 0.0
  %v1063 = vmax.f32 %v957, 0.0
  %v1064 = vmax.f32 %v959, 0.0
  %v1065 = vmax.f32 %v961, 0.0
  %v1066 = vmax.f32 %v963, 0.0
  %v1067 = vmax.f32 %v967, 0.0
  %v1068 = vmax.f32 %v969, 0.0
  %v1069 = vmax.f32 %v971, 0.0
  %v1070 = vmax.f32 %v973, 0.0
  %v1071 = vpack.c.bf16 %v977, %v975
  %v1072 = vpack.c.bf16 %v978, %v976
  %v1073 = vpack.c.bf16 %v981, %v979
  %v1074 = vpack.c.bf16 %v982, %v980
  %v1075 = vpack.c.bf16 %v985, %v983
  %v1076 = vpack.c.bf16 %v986, %v984
  %v1077 = vpack.c.bf16 %v989, %v987
  %v1078 = vpack.c.bf16 %v990, %v988
  %v1079 = vpack.c.bf16 %v993, %v991
  %v1080 = vpack.c.bf16 %v994, %v992
  %v1081 = vpack.c.bf16 %v997, %v995
  %v1082 = vpack.c.bf16 %v998, %v996
  %v1083 = vpack.c.bf16 %v1001, %v999
  %v1084 = vpack.c.bf16 %v1002, %v1000
  %v1085 = vpack.c.bf16 %v1005, %v1003
  %v1086 = vpack.c.bf16 %v1006, %v1004
  %v1087 = vpack.c.bf16 %v1009, %v1007
  %v1088 = vpack.c.bf16 %v1010, %v1008
  %v1089 = vpack.c.bf16 %v1013, %v1011
  %v1090 = vpack.c.bf16 %v1014, %v1012
  %v1091 = vpack.c.bf16 %v1017, %v1015
  %v1092 = vpack.c.bf16 %v1018, %v1016
  %v1093 = vpack.c.bf16 %v1021, %v1019
  %v1094 = vpack.c.bf16 %v1022, %v1020
  %v1095 = vpack.c.bf16 %v1025, %v1023
  %v1096 = vpack.c.bf16 %v1026, %v1024
  %v1097 = vpack.c.bf16 %v1029, %v1027
  %v1098 = vpack.c.bf16 %v1030, %v1028
  %v1099 = vpack.c.bf16 %v1033, %v1031
  %v1100 = vpack.c.bf16 %v1034, %v1032
  %v1101 = vpack.c.bf16 %v1037, %v1035
  %v1102 = vpack.c.bf16 %v1038, %v1036
  %v1103 = vpack.c.bf16 %v1041, %v1039
  %v1104 = vpack.c.bf16 %v1042, %v1040
  %v1105 = vpack.c.bf16 %v1045, %v1043
  %v1106 = vpack.c.bf16 %v1046, %v1044
  %v1107 = vpack.c.bf16 %v1049, %v1047
  %v1108 = vpack.c.bf16 %v1050, %v1048
  %v1109 = vpack.c.bf16 %v1053, %v1051
  %v1110 = vpack.c.bf16 %v1054, %v1052
  %v1111 = vpack.c.bf16 %v1057, %v1055
  %v1112 = vpack.c.bf16 %v1058, %v1056
  %v1113 = vpack.c.bf16 %v1061, %v1059
  %v1114 = vpack.c.bf16 %v1062, %v1060
  %v1115 = vpack.c.bf16 %v1065, %v1063
  %v1116 = vpack.c.bf16 %v1066, %v1064
  %v1117 = vpack.c.bf16 %v1069, %v1067
  %v1118 = vpack.c.bf16 %v1070, %v1068
  %v1119 = vld [vmem:[%s5] sm:$0xf]
  %v1120 = vld [vmem:[%s5 + $0x4] sm:$0xf]
  %v1121 = vld [vmem:[%s5 + $0x8] sm:$0xf]
  %v1122 = vld [vmem:[%s5 + $0xc] sm:$0xf]
  %v1123 = vld [vmem:[%s5 + $0x10] sm:$0xf]
  %v1124 = vld [vmem:[%s5 + $0x14] sm:$0xf]
  %v1125 = vld [vmem:[%s5 + $0x18] sm:$0xf]
  %v1126 = vld [vmem:[%s5 + $0x1c] sm:$0xf]
  %v1127 = vld [vmem:[%s5 + $0x20] sm:$0xf]
  %v1128 = vld [vmem:[%s5 + $0x24] sm:$0xf]
  %v1129 = vld [vmem:[%s5 + $0x28] sm:$0xf]
  %v1130 = vld [vmem:[%s5 + $0x2c] sm:$0xf]
  %v1131 = vld [vmem:[%s5 + $0x30] sm:$0xf]
  %v1132 = vld [vmem:[%s5 + $0x34] sm:$0xf]
  %v1133 = vld [vmem:[%s5 + $0x38] sm:$0xf]
  %v1134 = vld [vmem:[%s5 + $0x3c] sm:$0xf]
  %v1135 = vld [vmem:[%s5 + $0x40] sm:$0xf]
  %v1136 = vld [vmem:[%s5 + $0x44] sm:$0xf]
  %v1137 = vld [vmem:[%s5 + $0x48] sm:$0xf]
  %v1138 = vld [vmem:[%s5 + $0x4c] sm:$0xf]
  %v1139 = vld [vmem:[%s5 + $0x50] sm:$0xf]
  %v1140 = vld [vmem:[%s5 + $0x54] sm:$0xf]
  %v1141 = vld [vmem:[%s5 + $0x58] sm:$0xf]
  %v1142 = vld [vmem:[%s5 + $0x5c] sm:$0xf]
  %v1143 = vld [vmem:[%s5 + $0x60] sm:$0xf]
  %v1144 = vld [vmem:[%s5 + $0x64] sm:$0xf]
  %v1145 = vld [vmem:[%s5 + $0x68] sm:$0xf]
  %v1146 = vld [vmem:[%s5 + $0x6c] sm:$0xf]
  %v1147 = vld [vmem:[%s5 + $0x70] sm:$0xf]
  %v1148 = vld [vmem:[%s5 + $0x74] sm:$0xf]
  %v1149 = vld [vmem:[%s5 + $0x78] sm:$0xf]
  %v1150 = vld [vmem:[%s5 + $0x7c] sm:$0xf]
  %v1151 = vld [vmem:[%s6] sm:$0x1]
  %v1153 = vlaneseq
  %v1154 = vshrl.u32 %v1153, 7
  %v1155 = vsub.s32 0, %v1154
  %v1156 = vrot.slane %v1151, %v1155
  %v1190 = vunpack.c.l.b16 %v1119
  %v1191 = vunpack.c.l.b16 %v1120
  %v1192 = vunpack.c.l.b16 %v1121
  %v1193 = vunpack.c.l.b16 %v1122
  %v1194 = vunpack.c.l.b16 %v1123
  %v1195 = vunpack.c.l.b16 %v1124
  %v1196 = vunpack.c.l.b16 %v1125
  %v1197 = vunpack.c.l.b16 %v1126
  %v1198 = vunpack.c.l.b16 %v1127
  %v1199 = vunpack.c.l.b16 %v1128
  %v1200 = vunpack.c.l.b16 %v1129
  %v1201 = vunpack.c.l.b16 %v1130
  %v1202 = vunpack.c.l.b16 %v1131
  %v1203 = vunpack.c.l.b16 %v1132
  %v1204 = vunpack.c.l.b16 %v1133
  %v1205 = vunpack.c.l.b16 %v1134
  %v1206 = vunpack.c.l.b16 %v1135
  %v1207 = vunpack.c.l.b16 %v1136
  %v1208 = vunpack.c.l.b16 %v1137
  %v1209 = vunpack.c.l.b16 %v1138
  %v1210 = vunpack.c.l.b16 %v1139
  %v1211 = vunpack.c.l.b16 %v1140
  %v1212 = vunpack.c.l.b16 %v1141
  %v1213 = vunpack.c.l.b16 %v1142
  %v1214 = vunpack.c.l.b16 %v1143
  %v1215 = vunpack.c.l.b16 %v1144
  %v1216 = vunpack.c.l.b16 %v1145
  %v1217 = vunpack.c.l.b16 %v1146
  %v1218 = vunpack.c.l.b16 %v1147
  %v1219 = vunpack.c.l.b16 %v1148
  %v1220 = vunpack.c.l.b16 %v1149
  %v1221 = vunpack.c.l.b16 %v1150
  %v1222 = vpack.c.b16 %v1191, %v1190
  %v1223 = vpack.c.b16 %v1193, %v1192
  %v1224 = vpack.c.b16 %v1195, %v1194
  %v1225 = vpack.c.b16 %v1197, %v1196
  %v1226 = vpack.c.b16 %v1199, %v1198
  %v1227 = vpack.c.b16 %v1201, %v1200
  %v1228 = vpack.c.b16 %v1203, %v1202
  %v1229 = vpack.c.b16 %v1205, %v1204
  %v1230 = vpack.c.b16 %v1207, %v1206
  %v1231 = vpack.c.b16 %v1209, %v1208
  %v1232 = vpack.c.b16 %v1211, %v1210
  %v1233 = vpack.c.b16 %v1213, %v1212
  %v1234 = vpack.c.b16 %v1215, %v1214
  %v1235 = vpack.c.b16 %v1217, %v1216
  %v1236 = vpack.c.b16 %v1219, %v1218
  %v1237 = vpack.c.b16 %v1221, %v1220
  %1254 = vmatprep.subr.bf16.mxu0 0
  %1255 = vmatpush1.bf16.msra.mxu0 %v1222
  %1256 = vmatprep.subr.bf16.mxu0 0
  %1257 = vmatpush1.bf16.msra.mxu0 %v1223
  %1258 = vmatprep.subr.bf16.mxu0 0
  %1259 = vmatpush1.bf16.msra.mxu0 %v1224
  %1260 = vmatprep.subr.bf16.mxu0 0
  %1261 = vmatpush1.bf16.msra.mxu0 %v1225
  %1262 = vmatprep.subr.bf16.mxu0 0
  %1263 = vmatpush1.bf16.msra.mxu0 %v1226
  %1264 = vmatprep.subr.bf16.mxu0 0
  %1265 = vmatpush1.bf16.msra.mxu0 %v1227
  %1266 = vmatprep.subr.bf16.mxu0 0
  %1267 = vmatpush1.bf16.msra.mxu0 %v1228
  %1268 = vmatprep.subr.bf16.mxu0 0
  %1269 = vmatpush1.bf16.msra.mxu0 %v1229
  %1270 = vmatprep.subr.bf16.mxu0 0
  %1271 = vmatpush1.bf16.msra.mxu0 %v1230
  %1272 = vmatprep.subr.bf16.mxu0 0
  %1273 = vmatpush1.bf16.msra.mxu0 %v1231
  %1274 = vmatprep.subr.bf16.mxu0 0
  %1275 = vmatpush1.bf16.msra.mxu0 %v1232
  %1276 = vmatprep.subr.bf16.mxu0 0
  %1277 = vmatpush1.bf16.msra.mxu0 %v1233
  %1278 = vmatprep.subr.bf16.mxu0 0
  %1279 = vmatpush1.bf16.msra.mxu0 %v1234
  %1280 = vmatprep.subr.bf16.mxu0 0
  %1281 = vmatpush1.bf16.msra.mxu0 %v1235
  %1282 = vmatprep.subr.bf16.mxu0 0
  %1283 = vmatpush1.bf16.msra.mxu0 %v1236
  %1284 = vmatprep.subr.bf16.mxu0 0
  %1285 = vmatpush1.bf16.msra.mxu0 %v1237
  %1286 = vmatprep.mubr.bf16.mxu0 %v1072
  %1287 = vmatmul.mubr.bf16.gmra.mrb[0].mxu0 %v1071
  %v1288 = vpop.f32.mrb[0].mxu0
  %v1289 = vadd.f32 %v1156, %v1288
  %v1290 = vpop.f32.mrb[0].mxu0
  %v1291 = vpop.f32.mrb[0].mxu0
  %v1292 = vadd.f32 %v1156, %v1291
  %v1293 = vpop.f32.mrb[0].mxu0
  %1294 = vmatprep.mubr.bf16.mxu0 %v1074
  %1295 = vmatmul.mubr.bf16.gmra.mrb[0].mxu0 %v1073
  %v1296 = vpop.f32.mrb[0].mxu0
  %v1297 = vadd.f32 %v1156, %v1296
  %v1298 = vpop.f32.mrb[0].mxu0
  %v1299 = vpop.f32.mrb[0].mxu0
  %v1300 = vadd.f32 %v1156, %v1299
  %v1301 = vpop.f32.mrb[0].mxu0
  %1302 = vmatprep.mubr.bf16.mxu0 %v1076
  %1303 = vmatmul.mubr.bf16.gmra.mrb[0].mxu0 %v1075
  %v1304 = vpop.f32.mrb[0].mxu0
  %v1305 = vadd.f32 %v1156, %v1304
  %v1306 = vpop.f32.mrb[0].mxu0
  %v1307 = vpop.f32.mrb[0].mxu0
  %v1308 = vadd.f32 %v1156, %v1307
  %v1309 = vpop.f32.mrb[0].mxu0
  %1310 = vmatprep.mubr.bf16.mxu0 %v1078
  %1311 = vmatmul.mubr.bf16.gmra.mrb[0].mxu0 %v1077
  %v1312 = vpop.f32.mrb[0].mxu0
  %v1313 = vadd.f32 %v1156, %v1312
  %v1314 = vpop.f32.mrb[0].mxu0
  %v1315 = vpop.f32.mrb[0].mxu0
  %v1316 = vadd.f32 %v1156, %v1315
  %v1317 = vpop.f32.mrb[0].mxu0
  %1318 = vmatprep.mubr.bf16.mxu0 %v1080
  %1319 = vmatmul.mubr.bf16.gmra.mrb[0].mxu0 %v1079
  %v1320 = vpop.f32.mrb[0].mxu0
  %v1321 = vadd.f32 %v1156, %v1320
  %v1322 = vpop.f32.mrb[0].mxu0
  %v1323 = vpop.f32.mrb[0].mxu0
  %v1324 = vadd.f32 %v1156, %v1323
  %v1325 = vpop.f32.mrb[0].mxu0
  %1326 = vmatprep.mubr.bf16.mxu0 %v1082
  %1327 = vmatmul.mubr.bf16.gmra.mrb[0].mxu0 %v1081
  %v1328 = vpop.f32.mrb[0].mxu0
  %v1329 = vadd.f32 %v1156, %v1328
  %v1330 = vpop.f32.mrb[0].mxu0
  %v1331 = vpop.f32.mrb[0].mxu0
  %v1332 = vadd.f32 %v1156, %v1331
  %v1333 = vpop.f32.mrb[0].mxu0
  %1334 = vmatprep.mubr.bf16.mxu0 %v1084
  %1335 = vmatmul.mubr.bf16.gmra.mrb[0].mxu0 %v1083
  %v1336 = vpop.f32.mrb[0].mxu0
  %v1337 = vadd.f32 %v1156, %v1336
  %v1338 = vpop.f32.mrb[0].mxu0
  %v1339 = vpop.f32.mrb[0].mxu0
  %v1340 = vadd.f32 %v1156, %v1339
  %v1341 = vpop.f32.mrb[0].mxu0
  %1342 = vmatprep.mubr.bf16.mxu0 %v1086
  %1343 = vmatmul.mubr.bf16.gmra.mrb[0].mxu0 %v1085
  %v1344 = vpop.f32.mrb[0].mxu0
  %v1345 = vadd.f32 %v1156, %v1344
  %v1346 = vpop.f32.mrb[0].mxu0
  %v1347 = vpop.f32.mrb[0].mxu0
  %v1348 = vadd.f32 %v1156, %v1347
  %v1349 = vpop.f32.mrb[0].mxu0
  %1350 = vmatprep.mubr.bf16.mxu0 %v1088
  %1351 = vmatmul.mubr.bf16.gmra.mrb[0].mxu0 %v1087
  %v1352 = vpop.f32.mrb[0].mxu0
  %v1353 = vadd.f32 %v1156, %v1352
  %v1354 = vpop.f32.mrb[0].mxu0
  %v1355 = vpop.f32.mrb[0].mxu0
  %v1356 = vadd.f32 %v1156, %v1355
  %v1357 = vpop.f32.mrb[0].mxu0
  %1358 = vmatprep.mubr.bf16.mxu0 %v1090
  %1359 = vmatmul.mubr.bf16.gmra.mrb[0].mxu0 %v1089
  %v1360 = vpop.f32.mrb[0].mxu0
  %v1361 = vadd.f32 %v1156, %v1360
  %v1362 = vpop.f32.mrb[0].mxu0
  %v1363 = vpop.f32.mrb[0].mxu0
  %v1364 = vadd.f32 %v1156, %v1363
  %v1365 = vpop.f32.mrb[0].mxu0
  %1366 = vmatprep.mubr.bf16.mxu0 %v1092
  %1367 = vmatmul.mubr.bf16.gmra.mrb[0].mxu0 %v1091
  %v1368 = vpop.f32.mrb[0].mxu0
  %v1369 = vadd.f32 %v1156, %v1368
  %v1370 = vpop.f32.mrb[0].mxu0
  %v1371 = vpop.f32.mrb[0].mxu0
  %v1372 = vadd.f32 %v1156, %v1371
  %v1373 = vpop.f32.mrb[0].mxu0
  %1374 = vmatprep.mubr.bf16.mxu0 %v1094
  %1375 = vmatmul.mubr.bf16.gmra.mrb[0].mxu0 %v1093
  %v1376 = vpop.f32.mrb[0].mxu0
  %v1377 = vadd.f32 %v1156, %v1376
  %v1378 = vpop.f32.mrb[0].mxu0
  %v1379 = vpop.f32.mrb[0].mxu0
  %v1380 = vadd.f32 %v1156, %v1379
  %v1381 = vpop.f32.mrb[0].mxu0
  %1382 = vmatprep.mubr.bf16.mxu0 %v1096
  %1383 = vmatmul.mubr.bf16.gmra.mrb[0].mxu0 %v1095
  %v1384 = vpop.f32.mrb[0].mxu0
  %v1385 = vadd.f32 %v1156, %v1384
  %v1386 = vpop.f32.mrb[0].mxu0
  %v1387 = vpop.f32.mrb[0].mxu0
  %v1388 = vadd.f32 %v1156, %v1387
  %v1389 = vpop.f32.mrb[0].mxu0
  %1390 = vmatprep.mubr.bf16.mxu0 %v1098
  %1391 = vmatmul.mubr.bf16.gmra.mrb[0].mxu0 %v1097
  %v1392 = vpop.f32.mrb[0].mxu0
  %v1393 = vadd.f32 %v1156, %v1392
  %v1394 = vpop.f32.mrb[0].mxu0
  %v1395 = vpop.f32.mrb[0].mxu0
  %v1396 = vadd.f32 %v1156, %v1395
  %v1397 = vpop.f32.mrb[0].mxu0
  %1398 = vmatprep.mubr.bf16.mxu0 %v1100
  %1399 = vmatmul.mubr.bf16.gmra.mrb[0].mxu0 %v1099
  %v1400 = vpop.f32.mrb[0].mxu0
  %v1401 = vadd.f32 %v1156, %v1400
  %v1402 = vpop.f32.mrb[0].mxu0
  %v1403 = vpop.f32.mrb[0].mxu0
  %v1404 = vadd.f32 %v1156, %v1403
  %v1405 = vpop.f32.mrb[0].mxu0
  %1406 = vmatprep.mubr.bf16.mxu0 %v1102
  %1407 = vmatmul.mubr.bf16.gmra.mrb[0].mxu0 %v1101
  %v1408 = vpop.f32.mrb[0].mxu0
  %v1409 = vadd.f32 %v1156, %v1408
  %v1410 = vpop.f32.mrb[0].mxu0
  %v1411 = vpop.f32.mrb[0].mxu0
  %v1412 = vadd.f32 %v1156, %v1411
  %v1413 = vpop.f32.mrb[0].mxu0
  %1414 = vmatprep.mubr.bf16.mxu0 %v1104
  %1415 = vmatmul.mubr.bf16.gmra.mrb[0].mxu0 %v1103
  %v1416 = vpop.f32.mrb[0].mxu0
  %v1417 = vadd.f32 %v1156, %v1416
  %v1418 = vpop.f32.mrb[0].mxu0
  %v1419 = vpop.f32.mrb[0].mxu0
  %v1420 = vadd.f32 %v1156, %v1419
  %v1421 = vpop.f32.mrb[0].mxu0
  %1422 = vmatprep.mubr.bf16.mxu0 %v1106
  %1423 = vmatmul.mubr.bf16.gmra.mrb[0].mxu0 %v1105
  %v1424 = vpop.f32.mrb[0].mxu0
  %v1425 = vadd.f32 %v1156, %v1424
  %v1426 = vpop.f32.mrb[0].mxu0
  %v1427 = vpop.f32.mrb[0].mxu0
  %v1428 = vadd.f32 %v1156, %v1427
  %v1429 = vpop.f32.mrb[0].mxu0
  %1430 = vmatprep.mubr.bf16.mxu0 %v1108
  %1431 = vmatmul.mubr.bf16.gmra.mrb[0].mxu0 %v1107
  %v1432 = vpop.f32.mrb[0].mxu0
  %v1433 = vadd.f32 %v1156, %v1432
  %v1434 = vpop.f32.mrb[0].mxu0
  %v1435 = vpop.f32.mrb[0].mxu0
  %v1436 = vadd.f32 %v1156, %v1435
  %v1437 = vpop.f32.mrb[0].mxu0
  %1438 = vmatprep.mubr.bf16.mxu0 %v1110
  %1439 = vmatmul.mubr.bf16.gmra.mrb[0].mxu0 %v1109
  %v1440 = vpop.f32.mrb[0].mxu0
  %v1441 = vadd.f32 %v1156, %v1440
  %v1442 = vpop.f32.mrb[0].mxu0
  %v1443 = vpop.f32.mrb[0].mxu0
  %v1444 = vadd.f32 %v1156, %v1443
  %v1445 = vpop.f32.mrb[0].mxu0
  %1446 = vmatprep.mubr.bf16.mxu0 %v1112
  %1447 = vmatmul.mubr.bf16.gmra.mrb[0].mxu0 %v1111
  %v1448 = vpop.f32.mrb[0].mxu0
  %v1449 = vadd.f32 %v1156, %v1448
  %v1450 = vpop.f32.mrb[0].mxu0
  %v1451 = vpop.f32.mrb[0].mxu0
  %v1452 = vadd.f32 %v1156, %v1451
  %v1453 = vpop.f32.mrb[0].mxu0
  %1454 = vmatprep.mubr.bf16.mxu0 %v1114
  %1455 = vmatmul.mubr.bf16.gmra.mrb[0].mxu0 %v1113
  %v1456 = vpop.f32.mrb[0].mxu0
  %v1457 = vadd.f32 %v1156, %v1456
  %v1458 = vpop.f32.mrb[0].mxu0
  %v1459 = vpop.f32.mrb[0].mxu0
  %v1460 = vadd.f32 %v1156, %v1459
  %v1461 = vpop.f32.mrb[0].mxu0
  %1462 = vmatprep.mubr.bf16.mxu0 %v1116
  %1463 = vmatmul.mubr.bf16.gmra.mrb[0].mxu0 %v1115
  %v1464 = vpop.f32.mrb[0].mxu0
  %v1465 = vadd.f32 %v1156, %v1464
  %v1466 = vpop.f32.mrb[0].mxu0
  %v1467 = vpop.f32.mrb[0].mxu0
  %v1468 = vadd.f32 %v1156, %v1467
  %v1469 = vpop.f32.mrb[0].mxu0
  %1470 = vmatprep.mubr.bf16.mxu0 %v1118
  %1471 = vmatmul.mubr.bf16.gmra.mrb[0].mxu0 %v1117
  %v1472 = vpop.f32.mrb[0].mxu0
  %v1473 = vadd.f32 %v1156, %v1472
  %v1474 = vpop.f32.mrb[0].mxu0
  %v1475 = vpop.f32.mrb[0].mxu0
  %v1476 = vadd.f32 %v1156, %v1475
  %v1477 = vpop.f32.mrb[0].mxu0
  %1478 = vdwg.mxu0
  %v1479 = vmax.f32 %v1289, 0.0
  %v1480 = vmax.f32 %v1292, 0.0
  %v1481 = vmax.f32 %v1297, 0.0
  %v1482 = vmax.f32 %v1300, 0.0
  %v1483 = vmax.f32 %v1305, 0.0
  %v1484 = vmax.f32 %v1308, 0.0
  %v1485 = vmax.f32 %v1313, 0.0
  %v1486 = vmax.f32 %v1316, 0.0
  %v1487 = vmax.f32 %v1321, 0.0
  %v1488 = vmax.f32 %v1324, 0.0
  %v1489 = vmax.f32 %v1329, 0.0
  %v1490 = vmax.f32 %v1332, 0.0
  %v1491 = vmax.f32 %v1337, 0.0
  %v1492 = vmax.f32 %v1340, 0.0
  %v1493 = vmax.f32 %v1345, 0.0
  %v1494 = vmax.f32 %v1348, 0.0
  %v1495 = vmax.f32 %v1353, 0.0
  %v1496 = vmax.f32 %v1356, 0.0
  %v1497 = vmax.f32 %v1361, 0.0
  %v1498 = vmax.f32 %v1364, 0.0
  %v1499 = vmax.f32 %v1369, 0.0
  %v1500 = vmax.f32 %v1372, 0.0
  %v1501 = vmax.f32 %v1377, 0.0
  %v1502 = vmax.f32 %v1380, 0.0
  %v1503 = vmax.f32 %v1385, 0.0
  %v1504 = vmax.f32 %v1388, 0.0
  %v1505 = vmax.f32 %v1393, 0.0
  %v1506 = vmax.f32 %v1396, 0.0
  %v1507 = vmax.f32 %v1401, 0.0
  %v1508 = vmax.f32 %v1404, 0.0
  %v1509 = vmax.f32 %v1409, 0.0
  %v1510 = vmax.f32 %v1412, 0.0
  %v1511 = vmax.f32 %v1417, 0.0
  %v1512 = vmax.f32 %v1420, 0.0
  %v1513 = vmax.f32 %v1425, 0.0
  %v1514 = vmax.f32 %v1428, 0.0
  %v1515 = vmax.f32 %v1433, 0.0
  %v1516 = vmax.f32 %v1436, 0.0
  %v1517 = vmax.f32 %v1441, 0.0
  %v1518 = vmax.f32 %v1444, 0.0
  %v1519 = vmax.f32 %v1449, 0.0
  %v1520 = vmax.f32 %v1452, 0.0
  %v1521 = vmax.f32 %v1457, 0.0
  %v1522 = vmax.f32 %v1460, 0.0
  %v1523 = vmax.f32 %v1465, 0.0
  %v1524 = vmax.f32 %v1468, 0.0
  %v1525 = vmax.f32 %v1473, 0.0
  %v1526 = vmax.f32 %v1476, 0.0
  %v1527 = vld [vmem:[%s7] sm:$0x1]
  %v1529 = vlaneseq
  %v1530 = vshrl.u32 %v1529, 7
  %v1531 = vsub.s32 0, %v1530
  %v1532 = vrot.slane %v1527, %v1531
  %v1534 = vmul.f32 %v1479, %v1532
  %v1535 = vmul.f32 %v1480, %v1532
  %v1536 = vmul.f32 %v1481, %v1532
  %v1537 = vmul.f32 %v1482, %v1532
  %v1538 = vmul.f32 %v1483, %v1532
  %v1539 = vmul.f32 %v1484, %v1532
  %v1540 = vmul.f32 %v1485, %v1532
  %v1541 = vmul.f32 %v1486, %v1532
  %v1542 = vmul.f32 %v1487, %v1532
  %v1543 = vmul.f32 %v1488, %v1532
  %v1544 = vmul.f32 %v1489, %v1532
  %v1545 = vmul.f32 %v1490, %v1532
  %v1546 = vmul.f32 %v1491, %v1532
  %v1547 = vmul.f32 %v1492, %v1532
  %v1548 = vmul.f32 %v1493, %v1532
  %v1549 = vmul.f32 %v1494, %v1532
  %v1550 = vmul.f32 %v1495, %v1532
  %v1551 = vmul.f32 %v1496, %v1532
  %v1552 = vmul.f32 %v1497, %v1532
  %v1553 = vmul.f32 %v1498, %v1532
  %v1554 = vmul.f32 %v1499, %v1532
  %v1555 = vmul.f32 %v1500, %v1532
  %v1556 = vmul.f32 %v1501, %v1532
  %v1557 = vmul.f32 %v1502, %v1532
  %v1558 = vmul.f32 %v1503, %v1532
  %v1559 = vmul.f32 %v1504, %v1532
  %v1560 = vmul.f32 %v1505, %v1532
  %v1561 = vmul.f32 %v1506, %v1532
  %v1562 = vmul.f32 %v1507, %v1532
  %v1563 = vmul.f32 %v1508, %v1532
  %v1564 = vmul.f32 %v1509, %v1532
  %v1565 = vmul.f32 %v1510, %v1532
  %v1566 = vmul.f32 %v1511, %v1532
  %v1567 = vmul.f32 %v1512, %v1532
  %v1568 = vmul.f32 %v1513, %v1532
  %v1569 = vmul.f32 %v1514, %v1532
  %v1570 = vmul.f32 %v1515, %v1532
  %v1571 = vmul.f32 %v1516, %v1532
  %v1572 = vmul.f32 %v1517, %v1532
  %v1573 = vmul.f32 %v1518, %v1532
  %v1574 = vmul.f32 %v1519, %v1532
  %v1575 = vmul.f32 %v1520, %v1532
  %v1576 = vmul.f32 %v1521, %v1532
  %v1577 = vmul.f32 %v1522, %v1532
  %v1578 = vmul.f32 %v1523, %v1532
  %v1579 = vmul.f32 %v1524, %v1532
  %v1580 = vmul.f32 %v1525, %v1532
  %v1581 = vmul.f32 %v1526, %v1532
  %1582 = vadd.xlane.f32.xlu0 %v1534
  %v1583 = vpop.xlane.xlu0 %1582
  %1584 = vadd.xlane.f32.xlu0 %v1535
  %v1585 = vpop.xlane.xlu0 %1584
  %1586 = vadd.xlane.f32.xlu0 %v1536
  %v1587 = vpop.xlane.xlu0 %1586
  %1588 = vadd.xlane.f32.xlu0 %v1537
  %v1589 = vpop.xlane.xlu0 %1588
  %1590 = vadd.xlane.f32.xlu0 %v1538
  %v1591 = vpop.xlane.xlu0 %1590
  %1592 = vadd.xlane.f32.xlu0 %v1539
  %v1593 = vpop.xlane.xlu0 %1592
  %1594 = vadd.xlane.f32.xlu0 %v1540
  %v1595 = vpop.xlane.xlu0 %1594
  %1596 = vadd.xlane.f32.xlu0 %v1541
  %v1597 = vpop.xlane.xlu0 %1596
  %1598 = vadd.xlane.f32.xlu0 %v1542
  %v1599 = vpop.xlane.xlu0 %1598
  %1600 = vadd.xlane.f32.xlu0 %v1543
  %v1601 = vpop.xlane.xlu0 %1600
  %1602 = vadd.xlane.f32.xlu0 %v1544
  %v1603 = vpop.xlane.xlu0 %1602
  %1604 = vadd.xlane.f32.xlu0 %v1545
  %v1605 = vpop.xlane.xlu0 %1604
  %1606 = vadd.xlane.f32.xlu0 %v1546
  %v1607 = vpop.xlane.xlu0 %1606
  %1608 = vadd.xlane.f32.xlu0 %v1547
  %v1609 = vpop.xlane.xlu0 %1608
  %1610 = vadd.xlane.f32.xlu0 %v1548
  %v1611 = vpop.xlane.xlu0 %1610
  %1612 = vadd.xlane.f32.xlu0 %v1549
  %v1613 = vpop.xlane.xlu0 %1612
  %1614 = vadd.xlane.f32.xlu0 %v1550
  %v1615 = vpop.xlane.xlu0 %1614
  %1616 = vadd.xlane.f32.xlu0 %v1551
  %v1617 = vpop.xlane.xlu0 %1616
  %1618 = vadd.xlane.f32.xlu0 %v1552
  %v1619 = vpop.xlane.xlu0 %1618
  %1620 = vadd.xlane.f32.xlu0 %v1553
  %v1621 = vpop.xlane.xlu0 %1620
  %1622 = vadd.xlane.f32.xlu0 %v1554
  %v1623 = vpop.xlane.xlu0 %1622
  %1624 = vadd.xlane.f32.xlu0 %v1555
  %v1625 = vpop.xlane.xlu0 %1624
  %1626 = vadd.xlane.f32.xlu0 %v1556
  %v1627 = vpop.xlane.xlu0 %1626
  %1628 = vadd.xlane.f32.xlu0 %v1557
  %v1629 = vpop.xlane.xlu0 %1628
  %1630 = vadd.xlane.f32.xlu0 %v1558
  %v1631 = vpop.xlane.xlu0 %1630
  %1632 = vadd.xlane.f32.xlu0 %v1559
  %v1633 = vpop.xlane.xlu0 %1632
  %1634 = vadd.xlane.f32.xlu0 %v1560
  %v1635 = vpop.xlane.xlu0 %1634
  %1636 = vadd.xlane.f32.xlu0 %v1561
  %v1637 = vpop.xlane.xlu0 %1636
  %1638 = vadd.xlane.f32.xlu0 %v1562
  %v1639 = vpop.xlane.xlu0 %1638
  %1640 = vadd.xlane.f32.xlu0 %v1563
  %v1641 = vpop.xlane.xlu0 %1640
  %1642 = vadd.xlane.f32.xlu0 %v1564
  %v1643 = vpop.xlane.xlu0 %1642
  %1644 = vadd.xlane.f32.xlu0 %v1565
  %v1645 = vpop.xlane.xlu0 %1644
  %1646 = vadd.xlane.f32.xlu0 %v1566
  %v1647 = vpop.xlane.xlu0 %1646
  %1648 = vadd.xlane.f32.xlu0 %v1567
  %v1649 = vpop.xlane.xlu0 %1648
  %1650 = vadd.xlane.f32.xlu0 %v1568
  %v1651 = vpop.xlane.xlu0 %1650
  %1652 = vadd.xlane.f32.xlu0 %v1569
  %v1653 = vpop.xlane.xlu0 %1652
  %1654 = vadd.xlane.f32.xlu0 %v1570
  %v1655 = vpop.xlane.xlu0 %1654
  %1656 = vadd.xlane.f32.xlu0 %v1571
  %v1657 = vpop.xlane.xlu0 %1656
  %1658 = vadd.xlane.f32.xlu0 %v1572
  %v1659 = vpop.xlane.xlu0 %1658
  %1660 = vadd.xlane.f32.xlu0 %v1573
  %v1661 = vpop.xlane.xlu0 %1660
  %1662 = vadd.xlane.f32.xlu0 %v1574
  %v1663 = vpop.xlane.xlu0 %1662
  %1664 = vadd.xlane.f32.xlu0 %v1575
  %v1665 = vpop.xlane.xlu0 %1664
  %1666 = vadd.xlane.f32.xlu0 %v1576
  %v1667 = vpop.xlane.xlu0 %1666
  %1668 = vadd.xlane.f32.xlu0 %v1577
  %v1669 = vpop.xlane.xlu0 %1668
  %1670 = vadd.xlane.f32.xlu0 %v1578
  %v1671 = vpop.xlane.xlu0 %1670
  %1672 = vadd.xlane.f32.xlu0 %v1579
  %v1673 = vpop.xlane.xlu0 %1672
  %1674 = vadd.xlane.f32.xlu0 %v1580
  %v1675 = vpop.xlane.xlu0 %1674
  %1676 = vadd.xlane.f32.xlu0 %v1581
  %v1677 = vpop.xlane.xlu0 %1676
  %v1678 = vld [vmem:[#allocation2] sm:$0x1]
  %1680 = vset.pattern.permute.xlu0 0
  %1681 = vperm.xlu0 %1680, %v1678
  %v1682 = vpop.permute.xlu0 %1681
  %v1684 = vlaneseq
  %v1685 = vshrl.u32 %v1684, 7
  %v1686 = vsub.s32 0, %v1685
  %v1687 = vrot.slane %v1682, %v1686
  %v1688 = vadd.f32 %v1583, %v1687
  %v1689 = vadd.f32 %v1585, %v1687
  %v1690 = vadd.f32 %v1587, %v1687
  %v1691 = vadd.f32 %v1589, %v1687
  %v1692 = vadd.f32 %v1591, %v1687
  %v1693 = vadd.f32 %v1593, %v1687
  %v1694 = vadd.f32 %v1595, %v1687
  %v1695 = vadd.f32 %v1597, %v1687
  %v1696 = vadd.f32 %v1599, %v1687
  %v1697 = vadd.f32 %v1601, %v1687
  %v1698 = vadd.f32 %v1603, %v1687
  %v1699 = vadd.f32 %v1605, %v1687
  %v1700 = vadd.f32 %v1607, %v1687
  %v1701 = vadd.f32 %v1609, %v1687
  %v1702 = vadd.f32 %v1611, %v1687
  %v1703 = vadd.f32 %v1613, %v1687
  %v1704 = vadd.f32 %v1615, %v1687
  %v1705 = vadd.f32 %v1617, %v1687
  %v1706 = vadd.f32 %v1619, %v1687
  %v1707 = vadd.f32 %v1621, %v1687
  %v1708 = vadd.f32 %v1623, %v1687
  %v1709 = vadd.f32 %v1625, %v1687
  %v1710 = vadd.f32 %v1627, %v1687
  %v1711 = vadd.f32 %v1629, %v1687
  %v1712 = vadd.f32 %v1631, %v1687
  %v1713 = vadd.f32 %v1633, %v1687
  %v1714 = vadd.f32 %v1635, %v1687
  %v1715 = vadd.f32 %v1637, %v1687
  %v1716 = vadd.f32 %v1639, %v1687
  %v1717 = vadd.f32 %v1641, %v1687
  %v1718 = vadd.f32 %v1643, %v1687
  %v1719 = vadd.f32 %v1645, %v1687
  %v1720 = vadd.f32 %v1647, %v1687
  %v1721 = vadd.f32 %v1649, %v1687
  %v1722 = vadd.f32 %v1651, %v1687
  %v1723 = vadd.f32 %v1653, %v1687
  %v1724 = vadd.f32 %v1655, %v1687
  %v1725 = vadd.f32 %v1657, %v1687
  %v1726 = vadd.f32 %v1659, %v1687
  %v1727 = vadd.f32 %v1661, %v1687
  %v1728 = vadd.f32 %v1663, %v1687
  %v1729 = vadd.f32 %v1665, %v1687
  %v1730 = vadd.f32 %v1667, %v1687
  %v1731 = vadd.f32 %v1669, %v1687
  %v1732 = vadd.f32 %v1671, %v1687
  %v1733 = vadd.f32 %v1673, %v1687
  %v1734 = vadd.f32 %v1675, %v1687
  %v1735 = vadd.f32 %v1677, %v1687
  %v1736 = vmax.f32 %v1688, 0.0
  %v1737 = vmax.f32 %v1689, 0.0
  %v1738 = vmax.f32 %v1690, 0.0
  %v1739 = vmax.f32 %v1691, 0.0
  %v1740 = vmax.f32 %v1692, 0.0
  %v1741 = vmax.f32 %v1693, 0.0
  %v1742 = vmax.f32 %v1694, 0.0
  %v1743 = vmax.f32 %v1695, 0.0
  %v1744 = vmax.f32 %v1696, 0.0
  %v1745 = vmax.f32 %v1697, 0.0
  %v1746 = vmax.f32 %v1698, 0.0
  %v1747 = vmax.f32 %v1699, 0.0
  %v1748 = vmax.f32 %v1700, 0.0
  %v1749 = vmax.f32 %v1701, 0.0
  %v1750 = vmax.f32 %v1702, 0.0
  %v1751 = vmax.f32 %v1703, 0.0
  %v1752 = vmax.f32 %v1704, 0.0
  %v1753 = vmax.f32 %v1705, 0.0
  %v1754 = vmax.f32 %v1706, 0.0
  %v1755 = vmax.f32 %v1707, 0.0
  %v1756 = vmax.f32 %v1708, 0.0
  %v1757 = vmax.f32 %v1709, 0.0
  %v1758 = vmax.f32 %v1710, 0.0
  %v1759 = vmax.f32 %v1711, 0.0
  %v1760 = vmax.f32 %v1712, 0.0
  %v1761 = vmax.f32 %v1713, 0.0
  %v1762 = vmax.f32 %v1714, 0.0
  %v1763 = vmax.f32 %v1715, 0.0
  %v1764 = vmax.f32 %v1716, 0.0
  %v1765 = vmax.f32 %v1717, 0.0
  %v1766 = vmax.f32 %v1718, 0.0
  %v1767 = vmax.f32 %v1719, 0.0
  %v1768 = vmax.f32 %v1720, 0.0
  %v1769 = vmax.f32 %v1721, 0.0
  %v1770 = vmax.f32 %v1722, 0.0
  %v1771 = vmax.f32 %v1723, 0.0
  %v1772 = vmax.f32 %v1724, 0.0
  %v1773 = vmax.f32 %v1725, 0.0
  %v1774 = vmax.f32 %v1726, 0.0
  %v1775 = vmax.f32 %v1727, 0.0
  %v1776 = vmax.f32 %v1728, 0.0
  %v1777 = vmax.f32 %v1729, 0.0
  %v1778 = vmax.f32 %v1730, 0.0
  %v1779 = vmax.f32 %v1731, 0.0
  %v1780 = vmax.f32 %v1732, 0.0
  %v1781 = vmax.f32 %v1733, 0.0
  %v1782 = vmax.f32 %v1734, 0.0
  %v1783 = vmax.f32 %v1735, 0.0
  %v1832 = vlaneseq
  %v1833 = vshrl.u32 %v1832, 7
  %v1834 = vsub.s32 0, %v1833
  %v1835 = vrot.slane %v1736, %v1834
  %v1836 = vlaneseq
  %v1837 = vshrl.u32 %v1836, 7
  %v1838 = vsub.s32 1, %v1837
  %v1839 = vrot.slane %v1736, %v1838
  %v1840 = vlaneseq
  %v1841 = vshrl.u32 %v1840, 7
  %v1842 = vsub.s32 2, %v1841
  %v1843 = vrot.slane %v1736, %v1842
  %v1844 = vlaneseq
  %v1845 = vshrl.u32 %v1844, 7
  %v1846 = vsub.s32 3, %v1845
  %v1847 = vrot.slane %v1736, %v1846
  %v1848 = vlaneseq
  %v1849 = vshrl.u32 %v1848, 7
  %v1850 = vsub.s32 4, %v1849
  %v1851 = vrot.slane %v1736, %v1850
  %v1852 = vlaneseq
  %v1853 = vshrl.u32 %v1852, 7
  %v1854 = vsub.s32 5, %v1853
  %v1855 = vrot.slane %v1736, %v1854
  %v1856 = vlaneseq
  %v1857 = vshrl.u32 %v1856, 7
  %v1858 = vsub.s32 6, %v1857
  %v1859 = vrot.slane %v1736, %v1858
  %v1860 = vlaneseq
  %v1861 = vshrl.u32 %v1860, 7
  %v1862 = vsub.s32 7, %v1861
  %v1863 = vrot.slane %v1736, %v1862
  %v1864 = vlaneseq
  %v1865 = vshrl.u32 %v1864, 7
  %v1866 = vsub.s32 0, %v1865
  %v1867 = vrot.slane %v1737, %v1866
  %v1868 = vlaneseq
  %v1869 = vshrl.u32 %v1868, 7
  %v1870 = vsub.s32 1, %v1869
  %v1871 = vrot.slane %v1737, %v1870
  %v1872 = vlaneseq
  %v1873 = vshrl.u32 %v1872, 7
  %v1874 = vsub.s32 2, %v1873
  %v1875 = vrot.slane %v1737, %v1874
  %v1876 = vlaneseq
  %v1877 = vshrl.u32 %v1876, 7
  %v1878 = vsub.s32 3, %v1877
  %v1879 = vrot.slane %v1737, %v1878
  %v1880 = vlaneseq
  %v1881 = vshrl.u32 %v1880, 7
  %v1882 = vsub.s32 4, %v1881
  %v1883 = vrot.slane %v1737, %v1882
  %v1884 = vlaneseq
  %v1885 = vshrl.u32 %v1884, 7
  %v1886 = vsub.s32 5, %v1885
  %v1887 = vrot.slane %v1737, %v1886
  %v1888 = vlaneseq
  %v1889 = vshrl.u32 %v1888, 7
  %v1890 = vsub.s32 6, %v1889
  %v1891 = vrot.slane %v1737, %v1890
  %v1892 = vlaneseq
  %v1893 = vshrl.u32 %v1892, 7
  %v1894 = vsub.s32 7, %v1893
  %v1895 = vrot.slane %v1737, %v1894
  %v1896 = vlaneseq
  %v1897 = vshrl.u32 %v1896, 7
  %v1898 = vsub.s32 0, %v1897
  %v1899 = vrot.slane %v1738, %v1898
  %v1900 = vlaneseq
  %v1901 = vshrl.u32 %v1900, 7
  %v1902 = vsub.s32 1, %v1901
  %v1903 = vrot.slane %v1738, %v1902
  %v1904 = vlaneseq
  %v1905 = vshrl.u32 %v1904, 7
  %v1906 = vsub.s32 2, %v1905
  %v1907 = vrot.slane %v1738, %v1906
  %v1908 = vlaneseq
  %v1909 = vshrl.u32 %v1908, 7
  %v1910 = vsub.s32 3, %v1909
  %v1911 = vrot.slane %v1738, %v1910
  %v1912 = vlaneseq
  %v1913 = vshrl.u32 %v1912, 7
  %v1914 = vsub.s32 4, %v1913
  %v1915 = vrot.slane %v1738, %v1914
  %v1916 = vlaneseq
  %v1917 = vshrl.u32 %v1916, 7
  %v1918 = vsub.s32 5, %v1917
  %v1919 = vrot.slane %v1738, %v1918
  %v1920 = vlaneseq
  %v1921 = vshrl.u32 %v1920, 7
  %v1922 = vsub.s32 6, %v1921
  %v1923 = vrot.slane %v1738, %v1922
  %v1924 = vlaneseq
  %v1925 = vshrl.u32 %v1924, 7
  %v1926 = vsub.s32 7, %v1925
  %v1927 = vrot.slane %v1738, %v1926
  %v1928 = vlaneseq
  %v1929 = vshrl.u32 %v1928, 7
  %v1930 = vsub.s32 0, %v1929
  %v1931 = vrot.slane %v1739, %v1930
  %v1932 = vlaneseq
  %v1933 = vshrl.u32 %v1932, 7
  %v1934 = vsub.s32 1, %v1933
  %v1935 = vrot.slane %v1739, %v1934
  %v1936 = vlaneseq
  %v1937 = vshrl.u32 %v1936, 7
  %v1938 = vsub.s32 2, %v1937
  %v1939 = vrot.slane %v1739, %v1938
  %v1940 = vlaneseq
  %v1941 = vshrl.u32 %v1940, 7
  %v1942 = vsub.s32 3, %v1941
  %v1943 = vrot.slane %v1739, %v1942
  %v1944 = vlaneseq
  %v1945 = vshrl.u32 %v1944, 7
  %v1946 = vsub.s32 4, %v1945
  %v1947 = vrot.slane %v1739, %v1946
  %v1948 = vlaneseq
  %v1949 = vshrl.u32 %v1948, 7
  %v1950 = vsub.s32 5, %v1949
  %v1951 = vrot.slane %v1739, %v1950
  %v1952 = vlaneseq
  %v1953 = vshrl.u32 %v1952, 7
  %v1954 = vsub.s32 6, %v1953
  %v1955 = vrot.slane %v1739, %v1954
  %v1956 = vlaneseq
  %v1957 = vshrl.u32 %v1956, 7
  %v1958 = vsub.s32 7, %v1957
  %v1959 = vrot.slane %v1739, %v1958
  %v1960 = vlaneseq
  %v1961 = vshrl.u32 %v1960, 7
  %v1962 = vsub.s32 0, %v1961
  %v1963 = vrot.slane %v1740, %v1962
  %v1964 = vlaneseq
  %v1965 = vshrl.u32 %v1964, 7
  %v1966 = vsub.s32 1, %v1965
  %v1967 = vrot.slane %v1740, %v1966
  %v1968 = vlaneseq
  %v1969 = vshrl.u32 %v1968, 7
  %v1970 = vsub.s32 2, %v1969
  %v1971 = vrot.slane %v1740, %v1970
  %v1972 = vlaneseq
  %v1973 = vshrl.u32 %v1972, 7
  %v1974 = vsub.s32 3, %v1973
  %v1975 = vrot.slane %v1740, %v1974
  %v1976 = vlaneseq
  %v1977 = vshrl.u32 %v1976, 7
  %v1978 = vsub.s32 4, %v1977
  %v1979 = vrot.slane %v1740, %v1978
  %v1980 = vlaneseq
  %v1981 = vshrl.u32 %v1980, 7
  %v1982 = vsub.s32 5, %v1981
  %v1983 = vrot.slane %v1740, %v1982
  %v1984 = vlaneseq
  %v1985 = vshrl.u32 %v1984, 7
  %v1986 = vsub.s32 6, %v1985
  %v1987 = vrot.slane %v1740, %v1986
  %v1988 = vlaneseq
  %v1989 = vshrl.u32 %v1988, 7
  %v1990 = vsub.s32 7, %v1989
  %v1991 = vrot.slane %v1740, %v1990
  %v1992 = vlaneseq
  %v1993 = vshrl.u32 %v1992, 7
  %v1994 = vsub.s32 0, %v1993
  %v1995 = vrot.slane %v1741, %v1994
  %v1996 = vlaneseq
  %v1997 = vshrl.u32 %v1996, 7
  %v1998 = vsub.s32 1, %v1997
  %v1999 = vrot.slane %v1741, %v1998
  %v2000 = vlaneseq
  %v2001 = vshrl.u32 %v2000, 7
  %v2002 = vsub.s32 2, %v2001
  %v2003 = vrot.slane %v1741, %v2002
  %v2004 = vlaneseq
  %v2005 = vshrl.u32 %v2004, 7
  %v2006 = vsub.s32 3, %v2005
  %v2007 = vrot.slane %v1741, %v2006
  %v2008 = vlaneseq
  %v2009 = vshrl.u32 %v2008, 7
  %v2010 = vsub.s32 4, %v2009
  %v2011 = vrot.slane %v1741, %v2010
  %v2012 = vlaneseq
  %v2013 = vshrl.u32 %v2012, 7
  %v2014 = vsub.s32 5, %v2013
  %v2015 = vrot.slane %v1741, %v2014
  %v2016 = vlaneseq
  %v2017 = vshrl.u32 %v2016, 7
  %v2018 = vsub.s32 6, %v2017
  %v2019 = vrot.slane %v1741, %v2018
  %v2020 = vlaneseq
  %v2021 = vshrl.u32 %v2020, 7
  %v2022 = vsub.s32 7, %v2021
  %v2023 = vrot.slane %v1741, %v2022
  %v2024 = vlaneseq
  %v2025 = vshrl.u32 %v2024, 7
  %v2026 = vsub.s32 0, %v2025
  %v2027 = vrot.slane %v1742, %v2026
  %v2028 = vlaneseq
  %v2029 = vshrl.u32 %v2028, 7
  %v2030 = vsub.s32 1, %v2029
  %v2031 = vrot.slane %v1742, %v2030
  %v2032 = vlaneseq
  %v2033 = vshrl.u32 %v2032, 7
  %v2034 = vsub.s32 2, %v2033
  %v2035 = vrot.slane %v1742, %v2034
  %v2036 = vlaneseq
  %v2037 = vshrl.u32 %v2036, 7
  %v2038 = vsub.s32 3, %v2037
  %v2039 = vrot.slane %v1742, %v2038
  %v2040 = vlaneseq
  %v2041 = vshrl.u32 %v2040, 7
  %v2042 = vsub.s32 4, %v2041
  %v2043 = vrot.slane %v1742, %v2042
  %v2044 = vlaneseq
  %v2045 = vshrl.u32 %v2044, 7
  %v2046 = vsub.s32 5, %v2045
  %v2047 = vrot.slane %v1742, %v2046
  %v2048 = vlaneseq
  %v2049 = vshrl.u32 %v2048, 7
  %v2050 = vsub.s32 6, %v2049
  %v2051 = vrot.slane %v1742, %v2050
  %v2052 = vlaneseq
  %v2053 = vshrl.u32 %v2052, 7
  %v2054 = vsub.s32 7, %v2053
  %v2055 = vrot.slane %v1742, %v2054
  %v2056 = vlaneseq
  %v2057 = vshrl.u32 %v2056, 7
  %v2058 = vsub.s32 0, %v2057
  %v2059 = vrot.slane %v1743, %v2058
  %v2060 = vlaneseq
  %v2061 = vshrl.u32 %v2060, 7
  %v2062 = vsub.s32 1, %v2061
  %v2063 = vrot.slane %v1743, %v2062
  %v2064 = vlaneseq
  %v2065 = vshrl.u32 %v2064, 7
  %v2066 = vsub.s32 2, %v2065
  %v2067 = vrot.slane %v1743, %v2066
  %v2068 = vlaneseq
  %v2069 = vshrl.u32 %v2068, 7
  %v2070 = vsub.s32 3, %v2069
  %v2071 = vrot.slane %v1743, %v2070
  %v2072 = vlaneseq
  %v2073 = vshrl.u32 %v2072, 7
  %v2074 = vsub.s32 4, %v2073
  %v2075 = vrot.slane %v1743, %v2074
  %v2076 = vlaneseq
  %v2077 = vshrl.u32 %v2076, 7
  %v2078 = vsub.s32 5, %v2077
  %v2079 = vrot.slane %v1743, %v2078
  %v2080 = vlaneseq
  %v2081 = vshrl.u32 %v2080, 7
  %v2082 = vsub.s32 6, %v2081
  %v2083 = vrot.slane %v1743, %v2082
  %v2084 = vlaneseq
  %v2085 = vshrl.u32 %v2084, 7
  %v2086 = vsub.s32 7, %v2085
  %v2087 = vrot.slane %v1743, %v2086
  %v2088 = vlaneseq
  %v2089 = vshrl.u32 %v2088, 7
  %v2090 = vsub.s32 0, %v2089
  %v2091 = vrot.slane %v1744, %v2090
  %v2092 = vlaneseq
  %v2093 = vshrl.u32 %v2092, 7
  %v2094 = vsub.s32 1, %v2093
  %v2095 = vrot.slane %v1744, %v2094
  %v2096 = vlaneseq
  %v2097 = vshrl.u32 %v2096, 7
  %v2098 = vsub.s32 2, %v2097
  %v2099 = vrot.slane %v1744, %v2098
  %v2100 = vlaneseq
  %v2101 = vshrl.u32 %v2100, 7
  %v2102 = vsub.s32 3, %v2101
  %v2103 = vrot.slane %v1744, %v2102
  %v2104 = vlaneseq
  %v2105 = vshrl.u32 %v2104, 7
  %v2106 = vsub.s32 4, %v2105
  %v2107 = vrot.slane %v1744, %v2106
  %v2108 = vlaneseq
  %v2109 = vshrl.u32 %v2108, 7
  %v2110 = vsub.s32 5, %v2109
  %v2111 = vrot.slane %v1744, %v2110
  %v2112 = vlaneseq
  %v2113 = vshrl.u32 %v2112, 7
  %v2114 = vsub.s32 6, %v2113
  %v2115 = vrot.slane %v1744, %v2114
  %v2116 = vlaneseq
  %v2117 = vshrl.u32 %v2116, 7
  %v2118 = vsub.s32 7, %v2117
  %v2119 = vrot.slane %v1744, %v2118
  %v2120 = vlaneseq
  %v2121 = vshrl.u32 %v2120, 7
  %v2122 = vsub.s32 0, %v2121
  %v2123 = vrot.slane %v1745, %v2122
  %v2124 = vlaneseq
  %v2125 = vshrl.u32 %v2124, 7
  %v2126 = vsub.s32 1, %v2125
  %v2127 = vrot.slane %v1745, %v2126
  %v2128 = vlaneseq
  %v2129 = vshrl.u32 %v2128, 7
  %v2130 = vsub.s32 2, %v2129
  %v2131 = vrot.slane %v1745, %v2130
  %v2132 = vlaneseq
  %v2133 = vshrl.u32 %v2132, 7
  %v2134 = vsub.s32 3, %v2133
  %v2135 = vrot.slane %v1745, %v2134
  %v2136 = vlaneseq
  %v2137 = vshrl.u32 %v2136, 7
  %v2138 = vsub.s32 4, %v2137
  %v2139 = vrot.slane %v1745, %v2138
  %v2140 = vlaneseq
  %v2141 = vshrl.u32 %v2140, 7
  %v2142 = vsub.s32 5, %v2141
  %v2143 = vrot.slane %v1745, %v2142
  %v2144 = vlaneseq
  %v2145 = vshrl.u32 %v2144, 7
  %v2146 = vsub.s32 6, %v2145
  %v2147 = vrot.slane %v1745, %v2146
  %v2148 = vlaneseq
  %v2149 = vshrl.u32 %v2148, 7
  %v2150 = vsub.s32 7, %v2149
  %v2151 = vrot.slane %v1745, %v2150
  %v2152 = vlaneseq
  %v2153 = vshrl.u32 %v2152, 7
  %v2154 = vsub.s32 0, %v2153
  %v2155 = vrot.slane %v1746, %v2154
  %v2156 = vlaneseq
  %v2157 = vshrl.u32 %v2156, 7
  %v2158 = vsub.s32 1, %v2157
  %v2159 = vrot.slane %v1746, %v2158
  %v2160 = vlaneseq
  %v2161 = vshrl.u32 %v2160, 7
  %v2162 = vsub.s32 2, %v2161
  %v2163 = vrot.slane %v1746, %v2162
  %v2164 = vlaneseq
  %v2165 = vshrl.u32 %v2164, 7
  %v2166 = vsub.s32 3, %v2165
  %v2167 = vrot.slane %v1746, %v2166
  %v2168 = vlaneseq
  %v2169 = vshrl.u32 %v2168, 7
  %v2170 = vsub.s32 4, %v2169
  %v2171 = vrot.slane %v1746, %v2170
  %v2172 = vlaneseq
  %v2173 = vshrl.u32 %v2172, 7
  %v2174 = vsub.s32 5, %v2173
  %v2175 = vrot.slane %v1746, %v2174
  %v2176 = vlaneseq
  %v2177 = vshrl.u32 %v2176, 7
  %v2178 = vsub.s32 6, %v2177
  %v2179 = vrot.slane %v1746, %v2178
  %v2180 = vlaneseq
  %v2181 = vshrl.u32 %v2180, 7
  %v2182 = vsub.s32 7, %v2181
  %v2183 = vrot.slane %v1746, %v2182
  %v2184 = vlaneseq
  %v2185 = vshrl.u32 %v2184, 7
  %v2186 = vsub.s32 0, %v2185
  %v2187 = vrot.slane %v1747, %v2186
  %v2188 = vlaneseq
  %v2189 = vshrl.u32 %v2188, 7
  %v2190 = vsub.s32 1, %v2189
  %v2191 = vrot.slane %v1747, %v2190
  %v2192 = vlaneseq
  %v2193 = vshrl.u32 %v2192, 7
  %v2194 = vsub.s32 2, %v2193
  %v2195 = vrot.slane %v1747, %v2194
  %v2196 = vlaneseq
  %v2197 = vshrl.u32 %v2196, 7
  %v2198 = vsub.s32 3, %v2197
  %v2199 = vrot.slane %v1747, %v2198
  %v2200 = vlaneseq
  %v2201 = vshrl.u32 %v2200, 7
  %v2202 = vsub.s32 4, %v2201
  %v2203 = vrot.slane %v1747, %v2202
  %v2204 = vlaneseq
  %v2205 = vshrl.u32 %v2204, 7
  %v2206 = vsub.s32 5, %v2205
  %v2207 = vrot.slane %v1747, %v2206
  %v2208 = vlaneseq
  %v2209 = vshrl.u32 %v2208, 7
  %v2210 = vsub.s32 6, %v2209
  %v2211 = vrot.slane %v1747, %v2210
  %v2212 = vlaneseq
  %v2213 = vshrl.u32 %v2212, 7
  %v2214 = vsub.s32 7, %v2213
  %v2215 = vrot.slane %v1747, %v2214
  %v2216 = vlaneseq
  %v2217 = vshrl.u32 %v2216, 7
  %v2218 = vsub.s32 0, %v2217
  %v2219 = vrot.slane %v1748, %v2218
  %v2220 = vlaneseq
  %v2221 = vshrl.u32 %v2220, 7
  %v2222 = vsub.s32 1, %v2221
  %v2223 = vrot.slane %v1748, %v2222
  %v2224 = vlaneseq
  %v2225 = vshrl.u32 %v2224, 7
  %v2226 = vsub.s32 2, %v2225
  %v2227 = vrot.slane %v1748, %v2226
  %v2228 = vlaneseq
  %v2229 = vshrl.u32 %v2228, 7
  %v2230 = vsub.s32 3, %v2229
  %v2231 = vrot.slane %v1748, %v2230
  %v2232 = vlaneseq
  %v2233 = vshrl.u32 %v2232, 7
  %v2234 = vsub.s32 4, %v2233
  %v2235 = vrot.slane %v1748, %v2234
  %v2236 = vlaneseq
  %v2237 = vshrl.u32 %v2236, 7
  %v2238 = vsub.s32 5, %v2237
  %v2239 = vrot.slane %v1748, %v2238
  %v2240 = vlaneseq
  %v2241 = vshrl.u32 %v2240, 7
  %v2242 = vsub.s32 6, %v2241
  %v2243 = vrot.slane %v1748, %v2242
  %v2244 = vlaneseq
  %v2245 = vshrl.u32 %v2244, 7
  %v2246 = vsub.s32 7, %v2245
  %v2247 = vrot.slane %v1748, %v2246
  %v2248 = vlaneseq
  %v2249 = vshrl.u32 %v2248, 7
  %v2250 = vsub.s32 0, %v2249
  %v2251 = vrot.slane %v1749, %v2250
  %v2252 = vlaneseq
  %v2253 = vshrl.u32 %v2252, 7
  %v2254 = vsub.s32 1, %v2253
  %v2255 = vrot.slane %v1749, %v2254
  %v2256 = vlaneseq
  %v2257 = vshrl.u32 %v2256, 7
  %v2258 = vsub.s32 2, %v2257
  %v2259 = vrot.slane %v1749, %v2258
  %v2260 = vlaneseq
  %v2261 = vshrl.u32 %v2260, 7
  %v2262 = vsub.s32 3, %v2261
  %v2263 = vrot.slane %v1749, %v2262
  %v2264 = vlaneseq
  %v2265 = vshrl.u32 %v2264, 7
  %v2266 = vsub.s32 4, %v2265
  %v2267 = vrot.slane %v1749, %v2266
  %v2268 = vlaneseq
  %v2269 = vshrl.u32 %v2268, 7
  %v2270 = vsub.s32 5, %v2269
  %v2271 = vrot.slane %v1749, %v2270
  %v2272 = vlaneseq
  %v2273 = vshrl.u32 %v2272, 7
  %v2274 = vsub.s32 6, %v2273
  %v2275 = vrot.slane %v1749, %v2274
  %v2276 = vlaneseq
  %v2277 = vshrl.u32 %v2276, 7
  %v2278 = vsub.s32 7, %v2277
  %v2279 = vrot.slane %v1749, %v2278
  %v2280 = vlaneseq
  %v2281 = vshrl.u32 %v2280, 7
  %v2282 = vsub.s32 0, %v2281
  %v2283 = vrot.slane %v1750, %v2282
  %v2284 = vlaneseq
  %v2285 = vshrl.u32 %v2284, 7
  %v2286 = vsub.s32 1, %v2285
  %v2287 = vrot.slane %v1750, %v2286
  %v2288 = vlaneseq
  %v2289 = vshrl.u32 %v2288, 7
  %v2290 = vsub.s32 2, %v2289
  %v2291 = vrot.slane %v1750, %v2290
  %v2292 = vlaneseq
  %v2293 = vshrl.u32 %v2292, 7
  %v2294 = vsub.s32 3, %v2293
  %v2295 = vrot.slane %v1750, %v2294
  %v2296 = vlaneseq
  %v2297 = vshrl.u32 %v2296, 7
  %v2298 = vsub.s32 4, %v2297
  %v2299 = vrot.slane %v1750, %v2298
  %v2300 = vlaneseq
  %v2301 = vshrl.u32 %v2300, 7
  %v2302 = vsub.s32 5, %v2301
  %v2303 = vrot.slane %v1750, %v2302
  %v2304 = vlaneseq
  %v2305 = vshrl.u32 %v2304, 7
  %v2306 = vsub.s32 6, %v2305
  %v2307 = vrot.slane %v1750, %v2306
  %v2308 = vlaneseq
  %v2309 = vshrl.u32 %v2308, 7
  %v2310 = vsub.s32 7, %v2309
  %v2311 = vrot.slane %v1750, %v2310
  %v2312 = vlaneseq
  %v2313 = vshrl.u32 %v2312, 7
  %v2314 = vsub.s32 0, %v2313
  %v2315 = vrot.slane %v1751, %v2314
  %v2316 = vlaneseq
  %v2317 = vshrl.u32 %v2316, 7
  %v2318 = vsub.s32 1, %v2317
  %v2319 = vrot.slane %v1751, %v2318
  %v2320 = vlaneseq
  %v2321 = vshrl.u32 %v2320, 7
  %v2322 = vsub.s32 2, %v2321
  %v2323 = vrot.slane %v1751, %v2322
  %v2324 = vlaneseq
  %v2325 = vshrl.u32 %v2324, 7
  %v2326 = vsub.s32 3, %v2325
  %v2327 = vrot.slane %v1751, %v2326
  %v2328 = vlaneseq
  %v2329 = vshrl.u32 %v2328, 7
  %v2330 = vsub.s32 4, %v2329
  %v2331 = vrot.slane %v1751, %v2330
  %v2332 = vlaneseq
  %v2333 = vshrl.u32 %v2332, 7
  %v2334 = vsub.s32 5, %v2333
  %v2335 = vrot.slane %v1751, %v2334
  %v2336 = vlaneseq
  %v2337 = vshrl.u32 %v2336, 7
  %v2338 = vsub.s32 6, %v2337
  %v2339 = vrot.slane %v1751, %v2338
  %v2340 = vlaneseq
  %v2341 = vshrl.u32 %v2340, 7
  %v2342 = vsub.s32 7, %v2341
  %v2343 = vrot.slane %v1751, %v2342
  %v2344 = vlaneseq
  %v2345 = vshrl.u32 %v2344, 7
  %v2346 = vsub.s32 0, %v2345
  %v2347 = vrot.slane %v1752, %v2346
  %v2348 = vlaneseq
  %v2349 = vshrl.u32 %v2348, 7
  %v2350 = vsub.s32 1, %v2349
  %v2351 = vrot.slane %v1752, %v2350
  %v2352 = vlaneseq
  %v2353 = vshrl.u32 %v2352, 7
  %v2354 = vsub.s32 2, %v2353
  %v2355 = vrot.slane %v1752, %v2354
  %v2356 = vlaneseq
  %v2357 = vshrl.u32 %v2356, 7
  %v2358 = vsub.s32 3, %v2357
  %v2359 = vrot.slane %v1752, %v2358
  %v2360 = vlaneseq
  %v2361 = vshrl.u32 %v2360, 7
  %v2362 = vsub.s32 4, %v2361
  %v2363 = vrot.slane %v1752, %v2362
  %v2364 = vlaneseq
  %v2365 = vshrl.u32 %v2364, 7
  %v2366 = vsub.s32 5, %v2365
  %v2367 = vrot.slane %v1752, %v2366
  %v2368 = vlaneseq
  %v2369 = vshrl.u32 %v2368, 7
  %v2370 = vsub.s32 6, %v2369
  %v2371 = vrot.slane %v1752, %v2370
  %v2372 = vlaneseq
  %v2373 = vshrl.u32 %v2372, 7
  %v2374 = vsub.s32 7, %v2373
  %v2375 = vrot.slane %v1752, %v2374
  %v2376 = vlaneseq
  %v2377 = vshrl.u32 %v2376, 7
  %v2378 = vsub.s32 0, %v2377
  %v2379 = vrot.slane %v1753, %v2378
  %v2380 = vlaneseq
  %v2381 = vshrl.u32 %v2380, 7
  %v2382 = vsub.s32 1, %v2381
  %v2383 = vrot.slane %v1753, %v2382
  %v2384 = vlaneseq
  %v2385 = vshrl.u32 %v2384, 7
  %v2386 = vsub.s32 2, %v2385
  %v2387 = vrot.slane %v1753, %v2386
  %v2388 = vlaneseq
  %v2389 = vshrl.u32 %v2388, 7
  %v2390 = vsub.s32 3, %v2389
  %v2391 = vrot.slane %v1753, %v2390
  %v2392 = vlaneseq
  %v2393 = vshrl.u32 %v2392, 7
  %v2394 = vsub.s32 4, %v2393
  %v2395 = vrot.slane %v1753, %v2394
  %v2396 = vlaneseq
  %v2397 = vshrl.u32 %v2396, 7
  %v2398 = vsub.s32 5, %v2397
  %v2399 = vrot.slane %v1753, %v2398
  %v2400 = vlaneseq
  %v2401 = vshrl.u32 %v2400, 7
  %v2402 = vsub.s32 6, %v2401
  %v2403 = vrot.slane %v1753, %v2402
  %v2404 = vlaneseq
  %v2405 = vshrl.u32 %v2404, 7
  %v2406 = vsub.s32 7, %v2405
  %v2407 = vrot.slane %v1753, %v2406
  %v2408 = vlaneseq
  %v2409 = vshrl.u32 %v2408, 7
  %v2410 = vsub.s32 0, %v2409
  %v2411 = vrot.slane %v1754, %v2410
  %v2412 = vlaneseq
  %v2413 = vshrl.u32 %v2412, 7
  %v2414 = vsub.s32 1, %v2413
  %v2415 = vrot.slane %v1754, %v2414
  %v2416 = vlaneseq
  %v2417 = vshrl.u32 %v2416, 7
  %v2418 = vsub.s32 2, %v2417
  %v2419 = vrot.slane %v1754, %v2418
  %v2420 = vlaneseq
  %v2421 = vshrl.u32 %v2420, 7
  %v2422 = vsub.s32 3, %v2421
  %v2423 = vrot.slane %v1754, %v2422
  %v2424 = vlaneseq
  %v2425 = vshrl.u32 %v2424, 7
  %v2426 = vsub.s32 4, %v2425
  %v2427 = vrot.slane %v1754, %v2426
  %v2428 = vlaneseq
  %v2429 = vshrl.u32 %v2428, 7
  %v2430 = vsub.s32 5, %v2429
  %v2431 = vrot.slane %v1754, %v2430
  %v2432 = vlaneseq
  %v2433 = vshrl.u32 %v2432, 7
  %v2434 = vsub.s32 6, %v2433
  %v2435 = vrot.slane %v1754, %v2434
  %v2436 = vlaneseq
  %v2437 = vshrl.u32 %v2436, 7
  %v2438 = vsub.s32 7, %v2437
  %v2439 = vrot.slane %v1754, %v2438
  %v2440 = vlaneseq
  %v2441 = vshrl.u32 %v2440, 7
  %v2442 = vsub.s32 0, %v2441
  %v2443 = vrot.slane %v1755, %v2442
  %v2444 = vlaneseq
  %v2445 = vshrl.u32 %v2444, 7
  %v2446 = vsub.s32 1, %v2445
  %v2447 = vrot.slane %v1755, %v2446
  %v2448 = vlaneseq
  %v2449 = vshrl.u32 %v2448, 7
  %v2450 = vsub.s32 2, %v2449
  %v2451 = vrot.slane %v1755, %v2450
  %v2452 = vlaneseq
  %v2453 = vshrl.u32 %v2452, 7
  %v2454 = vsub.s32 3, %v2453
  %v2455 = vrot.slane %v1755, %v2454
  %v2456 = vlaneseq
  %v2457 = vshrl.u32 %v2456, 7
  %v2458 = vsub.s32 4, %v2457
  %v2459 = vrot.slane %v1755, %v2458
  %v2460 = vlaneseq
  %v2461 = vshrl.u32 %v2460, 7
  %v2462 = vsub.s32 5, %v2461
  %v2463 = vrot.slane %v1755, %v2462
  %v2464 = vlaneseq
  %v2465 = vshrl.u32 %v2464, 7
  %v2466 = vsub.s32 6, %v2465
  %v2467 = vrot.slane %v1755, %v2466
  %v2468 = vlaneseq
  %v2469 = vshrl.u32 %v2468, 7
  %v2470 = vsub.s32 7, %v2469
  %v2471 = vrot.slane %v1755, %v2470
  %v2472 = vlaneseq
  %v2473 = vshrl.u32 %v2472, 7
  %v2474 = vsub.s32 0, %v2473
  %v2475 = vrot.slane %v1756, %v2474
  %v2476 = vlaneseq
  %v2477 = vshrl.u32 %v2476, 7
  %v2478 = vsub.s32 1, %v2477
  %v2479 = vrot.slane %v1756, %v2478
  %v2480 = vlaneseq
  %v2481 = vshrl.u32 %v2480, 7
  %v2482 = vsub.s32 2, %v2481
  %v2483 = vrot.slane %v1756, %v2482
  %v2484 = vlaneseq
  %v2485 = vshrl.u32 %v2484, 7
  %v2486 = vsub.s32 3, %v2485
  %v2487 = vrot.slane %v1756, %v2486
  %v2488 = vlaneseq
  %v2489 = vshrl.u32 %v2488, 7
  %v2490 = vsub.s32 4, %v2489
  %v2491 = vrot.slane %v1756, %v2490
  %v2492 = vlaneseq
  %v2493 = vshrl.u32 %v2492, 7
  %v2494 = vsub.s32 5, %v2493
  %v2495 = vrot.slane %v1756, %v2494
  %v2496 = vlaneseq
  %v2497 = vshrl.u32 %v2496, 7
  %v2498 = vsub.s32 6, %v2497
  %v2499 = vrot.slane %v1756, %v2498
  %v2500 = vlaneseq
  %v2501 = vshrl.u32 %v2500, 7
  %v2502 = vsub.s32 7, %v2501
  %v2503 = vrot.slane %v1756, %v2502
  %v2504 = vlaneseq
  %v2505 = vshrl.u32 %v2504, 7
  %v2506 = vsub.s32 0, %v2505
  %v2507 = vrot.slane %v1757, %v2506
  %v2508 = vlaneseq
  %v2509 = vshrl.u32 %v2508, 7
  %v2510 = vsub.s32 1, %v2509
  %v2511 = vrot.slane %v1757, %v2510
  %v2512 = vlaneseq
  %v2513 = vshrl.u32 %v2512, 7
  %v2514 = vsub.s32 2, %v2513
  %v2515 = vrot.slane %v1757, %v2514
  %v2516 = vlaneseq
  %v2517 = vshrl.u32 %v2516, 7
  %v2518 = vsub.s32 3, %v2517
  %v2519 = vrot.slane %v1757, %v2518
  %v2520 = vlaneseq
  %v2521 = vshrl.u32 %v2520, 7
  %v2522 = vsub.s32 4, %v2521
  %v2523 = vrot.slane %v1757, %v2522
  %v2524 = vlaneseq
  %v2525 = vshrl.u32 %v2524, 7
  %v2526 = vsub.s32 5, %v2525
  %v2527 = vrot.slane %v1757, %v2526
  %v2528 = vlaneseq
  %v2529 = vshrl.u32 %v2528, 7
  %v2530 = vsub.s32 6, %v2529
  %v2531 = vrot.slane %v1757, %v2530
  %v2532 = vlaneseq
  %v2533 = vshrl.u32 %v2532, 7
  %v2534 = vsub.s32 7, %v2533
  %v2535 = vrot.slane %v1757, %v2534
  %v2536 = vlaneseq
  %v2537 = vshrl.u32 %v2536, 7
  %v2538 = vsub.s32 0, %v2537
  %v2539 = vrot.slane %v1758, %v2538
  %v2540 = vlaneseq
  %v2541 = vshrl.u32 %v2540, 7
  %v2542 = vsub.s32 1, %v2541
  %v2543 = vrot.slane %v1758, %v2542
  %v2544 = vlaneseq
  %v2545 = vshrl.u32 %v2544, 7
  %v2546 = vsub.s32 2, %v2545
  %v2547 = vrot.slane %v1758, %v2546
  %v2548 = vlaneseq
  %v2549 = vshrl.u32 %v2548, 7
  %v2550 = vsub.s32 3, %v2549
  %v2551 = vrot.slane %v1758, %v2550
  %v2552 = vlaneseq
  %v2553 = vshrl.u32 %v2552, 7
  %v2554 = vsub.s32 4, %v2553
  %v2555 = vrot.slane %v1758, %v2554
  %v2556 = vlaneseq
  %v2557 = vshrl.u32 %v2556, 7
  %v2558 = vsub.s32 5, %v2557
  %v2559 = vrot.slane %v1758, %v2558
  %v2560 = vlaneseq
  %v2561 = vshrl.u32 %v2560, 7
  %v2562 = vsub.s32 6, %v2561
  %v2563 = vrot.slane %v1758, %v2562
  %v2564 = vlaneseq
  %v2565 = vshrl.u32 %v2564, 7
  %v2566 = vsub.s32 7, %v2565
  %v2567 = vrot.slane %v1758, %v2566
  %v2568 = vlaneseq
  %v2569 = vshrl.u32 %v2568, 7
  %v2570 = vsub.s32 0, %v2569
  %v2571 = vrot.slane %v1759, %v2570
  %v2572 = vlaneseq
  %v2573 = vshrl.u32 %v2572, 7
  %v2574 = vsub.s32 1, %v2573
  %v2575 = vrot.slane %v1759, %v2574
  %v2576 = vlaneseq
  %v2577 = vshrl.u32 %v2576, 7
  %v2578 = vsub.s32 2, %v2577
  %v2579 = vrot.slane %v1759, %v2578
  %v2580 = vlaneseq
  %v2581 = vshrl.u32 %v2580, 7
  %v2582 = vsub.s32 3, %v2581
  %v2583 = vrot.slane %v1759, %v2582
  %v2584 = vlaneseq
  %v2585 = vshrl.u32 %v2584, 7
  %v2586 = vsub.s32 4, %v2585
  %v2587 = vrot.slane %v1759, %v2586
  %v2588 = vlaneseq
  %v2589 = vshrl.u32 %v2588, 7
  %v2590 = vsub.s32 5, %v2589
  %v2591 = vrot.slane %v1759, %v2590
  %v2592 = vlaneseq
  %v2593 = vshrl.u32 %v2592, 7
  %v2594 = vsub.s32 6, %v2593
  %v2595 = vrot.slane %v1759, %v2594
  %v2596 = vlaneseq
  %v2597 = vshrl.u32 %v2596, 7
  %v2598 = vsub.s32 7, %v2597
  %v2599 = vrot.slane %v1759, %v2598
  %v2600 = vlaneseq
  %v2601 = vshrl.u32 %v2600, 7
  %v2602 = vsub.s32 0, %v2601
  %v2603 = vrot.slane %v1760, %v2602
  %v2604 = vlaneseq
  %v2605 = vshrl.u32 %v2604, 7
  %v2606 = vsub.s32 1, %v2605
  %v2607 = vrot.slane %v1760, %v2606
  %v2608 = vlaneseq
  %v2609 = vshrl.u32 %v2608, 7
  %v2610 = vsub.s32 2, %v2609
  %v2611 = vrot.slane %v1760, %v2610
  %v2612 = vlaneseq
  %v2613 = vshrl.u32 %v2612, 7
  %v2614 = vsub.s32 3, %v2613
  %v2615 = vrot.slane %v1760, %v2614
  %v2616 = vlaneseq
  %v2617 = vshrl.u32 %v2616, 7
  %v2618 = vsub.s32 4, %v2617
  %v2619 = vrot.slane %v1760, %v2618
  %v2620 = vlaneseq
  %v2621 = vshrl.u32 %v2620, 7
  %v2622 = vsub.s32 5, %v2621
  %v2623 = vrot.slane %v1760, %v2622
  %v2624 = vlaneseq
  %v2625 = vshrl.u32 %v2624, 7
  %v2626 = vsub.s32 6, %v2625
  %v2627 = vrot.slane %v1760, %v2626
  %v2628 = vlaneseq
  %v2629 = vshrl.u32 %v2628, 7
  %v2630 = vsub.s32 7, %v2629
  %v2631 = vrot.slane %v1760, %v2630
  %v2632 = vlaneseq
  %v2633 = vshrl.u32 %v2632, 7
  %v2634 = vsub.s32 0, %v2633
  %v2635 = vrot.slane %v1761, %v2634
  %v2636 = vlaneseq
  %v2637 = vshrl.u32 %v2636, 7
  %v2638 = vsub.s32 1, %v2637
  %v2639 = vrot.slane %v1761, %v2638
  %v2640 = vlaneseq
  %v2641 = vshrl.u32 %v2640, 7
  %v2642 = vsub.s32 2, %v2641
  %v2643 = vrot.slane %v1761, %v2642
  %v2644 = vlaneseq
  %v2645 = vshrl.u32 %v2644, 7
  %v2646 = vsub.s32 3, %v2645
  %v2647 = vrot.slane %v1761, %v2646
  %v2648 = vlaneseq
  %v2649 = vshrl.u32 %v2648, 7
  %v2650 = vsub.s32 4, %v2649
  %v2651 = vrot.slane %v1761, %v2650
  %v2652 = vlaneseq
  %v2653 = vshrl.u32 %v2652, 7
  %v2654 = vsub.s32 5, %v2653
  %v2655 = vrot.slane %v1761, %v2654
  %v2656 = vlaneseq
  %v2657 = vshrl.u32 %v2656, 7
  %v2658 = vsub.s32 6, %v2657
  %v2659 = vrot.slane %v1761, %v2658
  %v2660 = vlaneseq
  %v2661 = vshrl.u32 %v2660, 7
  %v2662 = vsub.s32 7, %v2661
  %v2663 = vrot.slane %v1761, %v2662
  %v2664 = vlaneseq
  %v2665 = vshrl.u32 %v2664, 7
  %v2666 = vsub.s32 0, %v2665
  %v2667 = vrot.slane %v1762, %v2666
  %v2668 = vlaneseq
  %v2669 = vshrl.u32 %v2668, 7
  %v2670 = vsub.s32 1, %v2669
  %v2671 = vrot.slane %v1762, %v2670
  %v2672 = vlaneseq
  %v2673 = vshrl.u32 %v2672, 7
  %v2674 = vsub.s32 2, %v2673
  %v2675 = vrot.slane %v1762, %v2674
  %v2676 = vlaneseq
  %v2677 = vshrl.u32 %v2676, 7
  %v2678 = vsub.s32 3, %v2677
  %v2679 = vrot.slane %v1762, %v2678
  %v2680 = vlaneseq
  %v2681 = vshrl.u32 %v2680, 7
  %v2682 = vsub.s32 4, %v2681
  %v2683 = vrot.slane %v1762, %v2682
  %v2684 = vlaneseq
  %v2685 = vshrl.u32 %v2684, 7
  %v2686 = vsub.s32 5, %v2685
  %v2687 = vrot.slane %v1762, %v2686
  %v2688 = vlaneseq
  %v2689 = vshrl.u32 %v2688, 7
  %v2690 = vsub.s32 6, %v2689
  %v2691 = vrot.slane %v1762, %v2690
  %v2692 = vlaneseq
  %v2693 = vshrl.u32 %v2692, 7
  %v2694 = vsub.s32 7, %v2693
  %v2695 = vrot.slane %v1762, %v2694
  %v2696 = vlaneseq
  %v2697 = vshrl.u32 %v2696, 7
  %v2698 = vsub.s32 0, %v2697
  %v2699 = vrot.slane %v1763, %v2698
  %v2700 = vlaneseq
  %v2701 = vshrl.u32 %v2700, 7
  %v2702 = vsub.s32 1, %v2701
  %v2703 = vrot.slane %v1763, %v2702
  %v2704 = vlaneseq
  %v2705 = vshrl.u32 %v2704, 7
  %v2706 = vsub.s32 2, %v2705
  %v2707 = vrot.slane %v1763, %v2706
  %v2708 = vlaneseq
  %v2709 = vshrl.u32 %v2708, 7
  %v2710 = vsub.s32 3, %v2709
  %v2711 = vrot.slane %v1763, %v2710
  %v2712 = vlaneseq
  %v2713 = vshrl.u32 %v2712, 7
  %v2714 = vsub.s32 4, %v2713
  %v2715 = vrot.slane %v1763, %v2714
  %v2716 = vlaneseq
  %v2717 = vshrl.u32 %v2716, 7
  %v2718 = vsub.s32 5, %v2717
  %v2719 = vrot.slane %v1763, %v2718
  %v2720 = vlaneseq
  %v2721 = vshrl.u32 %v2720, 7
  %v2722 = vsub.s32 6, %v2721
  %v2723 = vrot.slane %v1763, %v2722
  %v2724 = vlaneseq
  %v2725 = vshrl.u32 %v2724, 7
  %v2726 = vsub.s32 7, %v2725
  %v2727 = vrot.slane %v1763, %v2726
  %v2728 = vlaneseq
  %v2729 = vshrl.u32 %v2728, 7
  %v2730 = vsub.s32 0, %v2729
  %v2731 = vrot.slane %v1764, %v2730
  %v2732 = vlaneseq
  %v2733 = vshrl.u32 %v2732, 7
  %v2734 = vsub.s32 1, %v2733
  %v2735 = vrot.slane %v1764, %v2734
  %v2736 = vlaneseq
  %v2737 = vshrl.u32 %v2736, 7
  %v2738 = vsub.s32 2, %v2737
  %v2739 = vrot.slane %v1764, %v2738
  %v2740 = vlaneseq
  %v2741 = vshrl.u32 %v2740, 7
  %v2742 = vsub.s32 3, %v2741
  %v2743 = vrot.slane %v1764, %v2742
  %v2744 = vlaneseq
  %v2745 = vshrl.u32 %v2744, 7
  %v2746 = vsub.s32 4, %v2745
  %v2747 = vrot.slane %v1764, %v2746
  %v2748 = vlaneseq
  %v2749 = vshrl.u32 %v2748, 7
  %v2750 = vsub.s32 5, %v2749
  %v2751 = vrot.slane %v1764, %v2750
  %v2752 = vlaneseq
  %v2753 = vshrl.u32 %v2752, 7
  %v2754 = vsub.s32 6, %v2753
  %v2755 = vrot.slane %v1764, %v2754
  %v2756 = vlaneseq
  %v2757 = vshrl.u32 %v2756, 7
  %v2758 = vsub.s32 7, %v2757
  %v2759 = vrot.slane %v1764, %v2758
  %v2760 = vlaneseq
  %v2761 = vshrl.u32 %v2760, 7
  %v2762 = vsub.s32 0, %v2761
  %v2763 = vrot.slane %v1765, %v2762
  %v2764 = vlaneseq
  %v2765 = vshrl.u32 %v2764, 7
  %v2766 = vsub.s32 1, %v2765
  %v2767 = vrot.slane %v1765, %v2766
  %v2768 = vlaneseq
  %v2769 = vshrl.u32 %v2768, 7
  %v2770 = vsub.s32 2, %v2769
  %v2771 = vrot.slane %v1765, %v2770
  %v2772 = vlaneseq
  %v2773 = vshrl.u32 %v2772, 7
  %v2774 = vsub.s32 3, %v2773
  %v2775 = vrot.slane %v1765, %v2774
  %v2776 = vlaneseq
  %v2777 = vshrl.u32 %v2776, 7
  %v2778 = vsub.s32 4, %v2777
  %v2779 = vrot.slane %v1765, %v2778
  %v2780 = vlaneseq
  %v2781 = vshrl.u32 %v2780, 7
  %v2782 = vsub.s32 5, %v2781
  %v2783 = vrot.slane %v1765, %v2782
  %v2784 = vlaneseq
  %v2785 = vshrl.u32 %v2784, 7
  %v2786 = vsub.s32 6, %v2785
  %v2787 = vrot.slane %v1765, %v2786
  %v2788 = vlaneseq
  %v2789 = vshrl.u32 %v2788, 7
  %v2790 = vsub.s32 7, %v2789
  %v2791 = vrot.slane %v1765, %v2790
  %v2792 = vlaneseq
  %v2793 = vshrl.u32 %v2792, 7
  %v2794 = vsub.s32 0, %v2793
  %v2795 = vrot.slane %v1766, %v2794
  %v2796 = vlaneseq
  %v2797 = vshrl.u32 %v2796, 7
  %v2798 = vsub.s32 1, %v2797
  %v2799 = vrot.slane %v1766, %v2798
  %v2800 = vlaneseq
  %v2801 = vshrl.u32 %v2800, 7
  %v2802 = vsub.s32 2, %v2801
  %v2803 = vrot.slane %v1766, %v2802
  %v2804 = vlaneseq
  %v2805 = vshrl.u32 %v2804, 7
  %v2806 = vsub.s32 3, %v2805
  %v2807 = vrot.slane %v1766, %v2806
  %v2808 = vlaneseq
  %v2809 = vshrl.u32 %v2808, 7
  %v2810 = vsub.s32 4, %v2809
  %v2811 = vrot.slane %v1766, %v2810
  %v2812 = vlaneseq
  %v2813 = vshrl.u32 %v2812, 7
  %v2814 = vsub.s32 5, %v2813
  %v2815 = vrot.slane %v1766, %v2814
  %v2816 = vlaneseq
  %v2817 = vshrl.u32 %v2816, 7
  %v2818 = vsub.s32 6, %v2817
  %v2819 = vrot.slane %v1766, %v2818
  %v2820 = vlaneseq
  %v2821 = vshrl.u32 %v2820, 7
  %v2822 = vsub.s32 7, %v2821
  %v2823 = vrot.slane %v1766, %v2822
  %v2824 = vlaneseq
  %v2825 = vshrl.u32 %v2824, 7
  %v2826 = vsub.s32 0, %v2825
  %v2827 = vrot.slane %v1767, %v2826
  %v2828 = vlaneseq
  %v2829 = vshrl.u32 %v2828, 7
  %v2830 = vsub.s32 1, %v2829
  %v2831 = vrot.slane %v1767, %v2830
  %v2832 = vlaneseq
  %v2833 = vshrl.u32 %v2832, 7
  %v2834 = vsub.s32 2, %v2833
  %v2835 = vrot.slane %v1767, %v2834
  %v2836 = vlaneseq
  %v2837 = vshrl.u32 %v2836, 7
  %v2838 = vsub.s32 3, %v2837
  %v2839 = vrot.slane %v1767, %v2838
  %v2840 = vlaneseq
  %v2841 = vshrl.u32 %v2840, 7
  %v2842 = vsub.s32 4, %v2841
  %v2843 = vrot.slane %v1767, %v2842
  %v2844 = vlaneseq
  %v2845 = vshrl.u32 %v2844, 7
  %v2846 = vsub.s32 5, %v2845
  %v2847 = vrot.slane %v1767, %v2846
  %v2848 = vlaneseq
  %v2849 = vshrl.u32 %v2848, 7
  %v2850 = vsub.s32 6, %v2849
  %v2851 = vrot.slane %v1767, %v2850
  %v2852 = vlaneseq
  %v2853 = vshrl.u32 %v2852, 7
  %v2854 = vsub.s32 7, %v2853
  %v2855 = vrot.slane %v1767, %v2854
  %v2856 = vlaneseq
  %v2857 = vshrl.u32 %v2856, 7
  %v2858 = vsub.s32 0, %v2857
  %v2859 = vrot.slane %v1768, %v2858
  %v2860 = vlaneseq
  %v2861 = vshrl.u32 %v2860, 7
  %v2862 = vsub.s32 1, %v2861
  %v2863 = vrot.slane %v1768, %v2862
  %v2864 = vlaneseq
  %v2865 = vshrl.u32 %v2864, 7
  %v2866 = vsub.s32 2, %v2865
  %v2867 = vrot.slane %v1768, %v2866
  %v2868 = vlaneseq
  %v2869 = vshrl.u32 %v2868, 7
  %v2870 = vsub.s32 3, %v2869
  %v2871 = vrot.slane %v1768, %v2870
  %v2872 = vlaneseq
  %v2873 = vshrl.u32 %v2872, 7
  %v2874 = vsub.s32 4, %v2873
  %v2875 = vrot.slane %v1768, %v2874
  %v2876 = vlaneseq
  %v2877 = vshrl.u32 %v2876, 7
  %v2878 = vsub.s32 5, %v2877
  %v2879 = vrot.slane %v1768, %v2878
  %v2880 = vlaneseq
  %v2881 = vshrl.u32 %v2880, 7
  %v2882 = vsub.s32 6, %v2881
  %v2883 = vrot.slane %v1768, %v2882
  %v2884 = vlaneseq
  %v2885 = vshrl.u32 %v2884, 7
  %v2886 = vsub.s32 7, %v2885
  %v2887 = vrot.slane %v1768, %v2886
  %v2888 = vlaneseq
  %v2889 = vshrl.u32 %v2888, 7
  %v2890 = vsub.s32 0, %v2889
  %v2891 = vrot.slane %v1769, %v2890
  %v2892 = vlaneseq
  %v2893 = vshrl.u32 %v2892, 7
  %v2894 = vsub.s32 1, %v2893
  %v2895 = vrot.slane %v1769, %v2894
  %v2896 = vlaneseq
  %v2897 = vshrl.u32 %v2896, 7
  %v2898 = vsub.s32 2, %v2897
  %v2899 = vrot.slane %v1769, %v2898
  %v2900 = vlaneseq
  %v2901 = vshrl.u32 %v2900, 7
  %v2902 = vsub.s32 3, %v2901
  %v2903 = vrot.slane %v1769, %v2902
  %v2904 = vlaneseq
  %v2905 = vshrl.u32 %v2904, 7
  %v2906 = vsub.s32 4, %v2905
  %v2907 = vrot.slane %v1769, %v2906
  %v2908 = vlaneseq
  %v2909 = vshrl.u32 %v2908, 7
  %v2910 = vsub.s32 5, %v2909
  %v2911 = vrot.slane %v1769, %v2910
  %v2912 = vlaneseq
  %v2913 = vshrl.u32 %v2912, 7
  %v2914 = vsub.s32 6, %v2913
  %v2915 = vrot.slane %v1769, %v2914
  %v2916 = vlaneseq
  %v2917 = vshrl.u32 %v2916, 7
  %v2918 = vsub.s32 7, %v2917
  %v2919 = vrot.slane %v1769, %v2918
  %v2920 = vlaneseq
  %v2921 = vshrl.u32 %v2920, 7
  %v2922 = vsub.s32 0, %v2921
  %v2923 = vrot.slane %v1770, %v2922
  %v2924 = vlaneseq
  %v2925 = vshrl.u32 %v2924, 7
  %v2926 = vsub.s32 1, %v2925
  %v2927 = vrot.slane %v1770, %v2926
  %v2928 = vlaneseq
  %v2929 = vshrl.u32 %v2928, 7
  %v2930 = vsub.s32 2, %v2929
  %v2931 = vrot.slane %v1770, %v2930
  %v2932 = vlaneseq
  %v2933 = vshrl.u32 %v2932, 7
  %v2934 = vsub.s32 3, %v2933
  %v2935 = vrot.slane %v1770, %v2934
  %v2936 = vlaneseq
  %v2937 = vshrl.u32 %v2936, 7
  %v2938 = vsub.s32 4, %v2937
  %v2939 = vrot.slane %v1770, %v2938
  %v2940 = vlaneseq
  %v2941 = vshrl.u32 %v2940, 7
  %v2942 = vsub.s32 5, %v2941
  %v2943 = vrot.slane %v1770, %v2942
  %v2944 = vlaneseq
  %v2945 = vshrl.u32 %v2944, 7
  %v2946 = vsub.s32 6, %v2945
  %v2947 = vrot.slane %v1770, %v2946
  %v2948 = vlaneseq
  %v2949 = vshrl.u32 %v2948, 7
  %v2950 = vsub.s32 7, %v2949
  %v2951 = vrot.slane %v1770, %v2950
  %v2952 = vlaneseq
  %v2953 = vshrl.u32 %v2952, 7
  %v2954 = vsub.s32 0, %v2953
  %v2955 = vrot.slane %v1771, %v2954
  %v2956 = vlaneseq
  %v2957 = vshrl.u32 %v2956, 7
  %v2958 = vsub.s32 1, %v2957
  %v2959 = vrot.slane %v1771, %v2958
  %v2960 = vlaneseq
  %v2961 = vshrl.u32 %v2960, 7
  %v2962 = vsub.s32 2, %v2961
  %v2963 = vrot.slane %v1771, %v2962
  %v2964 = vlaneseq
  %v2965 = vshrl.u32 %v2964, 7
  %v2966 = vsub.s32 3, %v2965
  %v2967 = vrot.slane %v1771, %v2966
  %v2968 = vlaneseq
  %v2969 = vshrl.u32 %v2968, 7
  %v2970 = vsub.s32 4, %v2969
  %v2971 = vrot.slane %v1771, %v2970
  %v2972 = vlaneseq
  %v2973 = vshrl.u32 %v2972, 7
  %v2974 = vsub.s32 5, %v2973
  %v2975 = vrot.slane %v1771, %v2974
  %v2976 = vlaneseq
  %v2977 = vshrl.u32 %v2976, 7
  %v2978 = vsub.s32 6, %v2977
  %v2979 = vrot.slane %v1771, %v2978
  %v2980 = vlaneseq
  %v2981 = vshrl.u32 %v2980, 7
  %v2982 = vsub.s32 7, %v2981
  %v2983 = vrot.slane %v1771, %v2982
  %v2984 = vlaneseq
  %v2985 = vshrl.u32 %v2984, 7
  %v2986 = vsub.s32 0, %v2985
  %v2987 = vrot.slane %v1772, %v2986
  %v2988 = vlaneseq
  %v2989 = vshrl.u32 %v2988, 7
  %v2990 = vsub.s32 1, %v2989
  %v2991 = vrot.slane %v1772, %v2990
  %v2992 = vlaneseq
  %v2993 = vshrl.u32 %v2992, 7
  %v2994 = vsub.s32 2, %v2993
  %v2995 = vrot.slane %v1772, %v2994
  %v2996 = vlaneseq
  %v2997 = vshrl.u32 %v2996, 7
  %v2998 = vsub.s32 3, %v2997
  %v2999 = vrot.slane %v1772, %v2998
  %v3000 = vlaneseq
  %v3001 = vshrl.u32 %v3000, 7
  %v3002 = vsub.s32 4, %v3001
  %v3003 = vrot.slane %v1772, %v3002
  %v3004 = vlaneseq
  %v3005 = vshrl.u32 %v3004, 7
  %v3006 = vsub.s32 5, %v3005
  %v3007 = vrot.slane %v1772, %v3006
  %v3008 = vlaneseq
  %v3009 = vshrl.u32 %v3008, 7
  %v3010 = vsub.s32 6, %v3009
  %v3011 = vrot.slane %v1772, %v3010
  %v3012 = vlaneseq
  %v3013 = vshrl.u32 %v3012, 7
  %v3014 = vsub.s32 7, %v3013
  %v3015 = vrot.slane %v1772, %v3014
  %v3016 = vlaneseq
  %v3017 = vshrl.u32 %v3016, 7
  %v3018 = vsub.s32 0, %v3017
  %v3019 = vrot.slane %v1773, %v3018
  %v3020 = vlaneseq
  %v3021 = vshrl.u32 %v3020, 7
  %v3022 = vsub.s32 1, %v3021
  %v3023 = vrot.slane %v1773, %v3022
  %v3024 = vlaneseq
  %v3025 = vshrl.u32 %v3024, 7
  %v3026 = vsub.s32 2, %v3025
  %v3027 = vrot.slane %v1773, %v3026
  %v3028 = vlaneseq
  %v3029 = vshrl.u32 %v3028, 7
  %v3030 = vsub.s32 3, %v3029
  %v3031 = vrot.slane %v1773, %v3030
  %v3032 = vlaneseq
  %v3033 = vshrl.u32 %v3032, 7
  %v3034 = vsub.s32 4, %v3033
  %v3035 = vrot.slane %v1773, %v3034
  %v3036 = vlaneseq
  %v3037 = vshrl.u32 %v3036, 7
  %v3038 = vsub.s32 5, %v3037
  %v3039 = vrot.slane %v1773, %v3038
  %v3040 = vlaneseq
  %v3041 = vshrl.u32 %v3040, 7
  %v3042 = vsub.s32 6, %v3041
  %v3043 = vrot.slane %v1773, %v3042
  %v3044 = vlaneseq
  %v3045 = vshrl.u32 %v3044, 7
  %v3046 = vsub.s32 7, %v3045
  %v3047 = vrot.slane %v1773, %v3046
  %v3048 = vlaneseq
  %v3049 = vshrl.u32 %v3048, 7
  %v3050 = vsub.s32 0, %v3049
  %v3051 = vrot.slane %v1774, %v3050
  %v3052 = vlaneseq
  %v3053 = vshrl.u32 %v3052, 7
  %v3054 = vsub.s32 1, %v3053
  %v3055 = vrot.slane %v1774, %v3054
  %v3056 = vlaneseq
  %v3057 = vshrl.u32 %v3056, 7
  %v3058 = vsub.s32 2, %v3057
  %v3059 = vrot.slane %v1774, %v3058
  %v3060 = vlaneseq
  %v3061 = vshrl.u32 %v3060, 7
  %v3062 = vsub.s32 3, %v3061
  %v3063 = vrot.slane %v1774, %v3062
  %v3064 = vlaneseq
  %v3065 = vshrl.u32 %v3064, 7
  %v3066 = vsub.s32 4, %v3065
  %v3067 = vrot.slane %v1774, %v3066
  %v3068 = vlaneseq
  %v3069 = vshrl.u32 %v3068, 7
  %v3070 = vsub.s32 5, %v3069
  %v3071 = vrot.slane %v1774, %v3070
  %v3072 = vlaneseq
  %v3073 = vshrl.u32 %v3072, 7
  %v3074 = vsub.s32 6, %v3073
  %v3075 = vrot.slane %v1774, %v3074
  %v3076 = vlaneseq
  %v3077 = vshrl.u32 %v3076, 7
  %v3078 = vsub.s32 7, %v3077
  %v3079 = vrot.slane %v1774, %v3078
  %v3080 = vlaneseq
  %v3081 = vshrl.u32 %v3080, 7
  %v3082 = vsub.s32 0, %v3081
  %v3083 = vrot.slane %v1775, %v3082
  %v3084 = vlaneseq
  %v3085 = vshrl.u32 %v3084, 7
  %v3086 = vsub.s32 1, %v3085
  %v3087 = vrot.slane %v1775, %v3086
  %v3088 = vlaneseq
  %v3089 = vshrl.u32 %v3088, 7
  %v3090 = vsub.s32 2, %v3089
  %v3091 = vrot.slane %v1775, %v3090
  %v3092 = vlaneseq
  %v3093 = vshrl.u32 %v3092, 7
  %v3094 = vsub.s32 3, %v3093
  %v3095 = vrot.slane %v1775, %v3094
  %v3096 = vlaneseq
  %v3097 = vshrl.u32 %v3096, 7
  %v3098 = vsub.s32 4, %v3097
  %v3099 = vrot.slane %v1775, %v3098
  %v3100 = vlaneseq
  %v3101 = vshrl.u32 %v3100, 7
  %v3102 = vsub.s32 5, %v3101
  %v3103 = vrot.slane %v1775, %v3102
  %v3104 = vlaneseq
  %v3105 = vshrl.u32 %v3104, 7
  %v3106 = vsub.s32 6, %v3105
  %v3107 = vrot.slane %v1775, %v3106
  %v3108 = vlaneseq
  %v3109 = vshrl.u32 %v3108, 7
  %v3110 = vsub.s32 7, %v3109
  %v3111 = vrot.slane %v1775, %v3110
  %v3112 = vlaneseq
  %v3113 = vshrl.u32 %v3112, 7
  %v3114 = vsub.s32 0, %v3113
  %v3115 = vrot.slane %v1776, %v3114
  %v3116 = vlaneseq
  %v3117 = vshrl.u32 %v3116, 7
  %v3118 = vsub.s32 1, %v3117
  %v3119 = vrot.slane %v1776, %v3118
  %v3120 = vlaneseq
  %v3121 = vshrl.u32 %v3120, 7
  %v3122 = vsub.s32 2, %v3121
  %v3123 = vrot.slane %v1776, %v3122
  %v3124 = vlaneseq
  %v3125 = vshrl.u32 %v3124, 7
  %v3126 = vsub.s32 3, %v3125
  %v3127 = vrot.slane %v1776, %v3126
  %v3128 = vlaneseq
  %v3129 = vshrl.u32 %v3128, 7
  %v3130 = vsub.s32 4, %v3129
  %v3131 = vrot.slane %v1776, %v3130
  %v3132 = vlaneseq
  %v3133 = vshrl.u32 %v3132, 7
  %v3134 = vsub.s32 5, %v3133
  %v3135 = vrot.slane %v1776, %v3134
  %v3136 = vlaneseq
  %v3137 = vshrl.u32 %v3136, 7
  %v3138 = vsub.s32 6, %v3137
  %v3139 = vrot.slane %v1776, %v3138
  %v3140 = vlaneseq
  %v3141 = vshrl.u32 %v3140, 7
  %v3142 = vsub.s32 7, %v3141
  %v3143 = vrot.slane %v1776, %v3142
  %v3144 = vlaneseq
  %v3145 = vshrl.u32 %v3144, 7
  %v3146 = vsub.s32 0, %v3145
  %v3147 = vrot.slane %v1777, %v3146
  %v3148 = vlaneseq
  %v3149 = vshrl.u32 %v3148, 7
  %v3150 = vsub.s32 1, %v3149
  %v3151 = vrot.slane %v1777, %v3150
  %v3152 = vlaneseq
  %v3153 = vshrl.u32 %v3152, 7
  %v3154 = vsub.s32 2, %v3153
  %v3155 = vrot.slane %v1777, %v3154
  %v3156 = vlaneseq
  %v3157 = vshrl.u32 %v3156, 7
  %v3158 = vsub.s32 3, %v3157
  %v3159 = vrot.slane %v1777, %v3158
  %v3160 = vlaneseq
  %v3161 = vshrl.u32 %v3160, 7
  %v3162 = vsub.s32 4, %v3161
  %v3163 = vrot.slane %v1777, %v3162
  %v3164 = vlaneseq
  %v3165 = vshrl.u32 %v3164, 7
  %v3166 = vsub.s32 5, %v3165
  %v3167 = vrot.slane %v1777, %v3166
  %v3168 = vlaneseq
  %v3169 = vshrl.u32 %v3168, 7
  %v3170 = vsub.s32 6, %v3169
  %v3171 = vrot.slane %v1777, %v3170
  %v3172 = vlaneseq
  %v3173 = vshrl.u32 %v3172, 7
  %v3174 = vsub.s32 7, %v3173
  %v3175 = vrot.slane %v1777, %v3174
  %v3176 = vlaneseq
  %v3177 = vshrl.u32 %v3176, 7
  %v3178 = vsub.s32 0, %v3177
  %v3179 = vrot.slane %v1778, %v3178
  %v3180 = vlaneseq
  %v3181 = vshrl.u32 %v3180, 7
  %v3182 = vsub.s32 1, %v3181
  %v3183 = vrot.slane %v1778, %v3182
  %v3184 = vlaneseq
  %v3185 = vshrl.u32 %v3184, 7
  %v3186 = vsub.s32 2, %v3185
  %v3187 = vrot.slane %v1778, %v3186
  %v3188 = vlaneseq
  %v3189 = vshrl.u32 %v3188, 7
  %v3190 = vsub.s32 3, %v3189
  %v3191 = vrot.slane %v1778, %v3190
  %v3192 = vlaneseq
  %v3193 = vshrl.u32 %v3192, 7
  %v3194 = vsub.s32 4, %v3193
  %v3195 = vrot.slane %v1778, %v3194
  %v3196 = vlaneseq
  %v3197 = vshrl.u32 %v3196, 7
  %v3198 = vsub.s32 5, %v3197
  %v3199 = vrot.slane %v1778, %v3198
  %v3200 = vlaneseq
  %v3201 = vshrl.u32 %v3200, 7
  %v3202 = vsub.s32 6, %v3201
  %v3203 = vrot.slane %v1778, %v3202
  %v3204 = vlaneseq
  %v3205 = vshrl.u32 %v3204, 7
  %v3206 = vsub.s32 7, %v3205
  %v3207 = vrot.slane %v1778, %v3206
  %v3208 = vlaneseq
  %v3209 = vshrl.u32 %v3208, 7
  %v3210 = vsub.s32 0, %v3209
  %v3211 = vrot.slane %v1779, %v3210
  %v3212 = vlaneseq
  %v3213 = vshrl.u32 %v3212, 7
  %v3214 = vsub.s32 1, %v3213
  %v3215 = vrot.slane %v1779, %v3214
  %v3216 = vlaneseq
  %v3217 = vshrl.u32 %v3216, 7
  %v3218 = vsub.s32 2, %v3217
  %v3219 = vrot.slane %v1779, %v3218
  %v3220 = vlaneseq
  %v3221 = vshrl.u32 %v3220, 7
  %v3222 = vsub.s32 3, %v3221
  %v3223 = vrot.slane %v1779, %v3222
  %v3224 = vlaneseq
  %v3225 = vshrl.u32 %v3224, 7
  %v3226 = vsub.s32 4, %v3225
  %v3227 = vrot.slane %v1779, %v3226
  %v3228 = vlaneseq
  %v3229 = vshrl.u32 %v3228, 7
  %v3230 = vsub.s32 5, %v3229
  %v3231 = vrot.slane %v1779, %v3230
  %v3232 = vlaneseq
  %v3233 = vshrl.u32 %v3232, 7
  %v3234 = vsub.s32 6, %v3233
  %v3235 = vrot.slane %v1779, %v3234
  %v3236 = vlaneseq
  %v3237 = vshrl.u32 %v3236, 7
  %v3238 = vsub.s32 7, %v3237
  %v3239 = vrot.slane %v1779, %v3238
  %v3240 = vlaneseq
  %v3241 = vshrl.u32 %v3240, 7
  %v3242 = vsub.s32 0, %v3241
  %v3243 = vrot.slane %v1780, %v3242
  %v3244 = vlaneseq
  %v3245 = vshrl.u32 %v3244, 7
  %v3246 = vsub.s32 1, %v3245
  %v3247 = vrot.slane %v1780, %v3246
  %v3248 = vlaneseq
  %v3249 = vshrl.u32 %v3248, 7
  %v3250 = vsub.s32 2, %v3249
  %v3251 = vrot.slane %v1780, %v3250
  %v3252 = vlaneseq
  %v3253 = vshrl.u32 %v3252, 7
  %v3254 = vsub.s32 3, %v3253
  %v3255 = vrot.slane %v1780, %v3254
  %v3256 = vlaneseq
  %v3257 = vshrl.u32 %v3256, 7
  %v3258 = vsub.s32 4, %v3257
  %v3259 = vrot.slane %v1780, %v3258
  %v3260 = vlaneseq
  %v3261 = vshrl.u32 %v3260, 7
  %v3262 = vsub.s32 5, %v3261
  %v3263 = vrot.slane %v1780, %v3262
  %v3264 = vlaneseq
  %v3265 = vshrl.u32 %v3264, 7
  %v3266 = vsub.s32 6, %v3265
  %v3267 = vrot.slane %v1780, %v3266
  %v3268 = vlaneseq
  %v3269 = vshrl.u32 %v3268, 7
  %v3270 = vsub.s32 7, %v3269
  %v3271 = vrot.slane %v1780, %v3270
  %v3272 = vlaneseq
  %v3273 = vshrl.u32 %v3272, 7
  %v3274 = vsub.s32 0, %v3273
  %v3275 = vrot.slane %v1781, %v3274
  %v3276 = vlaneseq
  %v3277 = vshrl.u32 %v3276, 7
  %v3278 = vsub.s32 1, %v3277
  %v3279 = vrot.slane %v1781, %v3278
  %v3280 = vlaneseq
  %v3281 = vshrl.u32 %v3280, 7
  %v3282 = vsub.s32 2, %v3281
  %v3283 = vrot.slane %v1781, %v3282
  %v3284 = vlaneseq
  %v3285 = vshrl.u32 %v3284, 7
  %v3286 = vsub.s32 3, %v3285
  %v3287 = vrot.slane %v1781, %v3286
  %v3288 = vlaneseq
  %v3289 = vshrl.u32 %v3288, 7
  %v3290 = vsub.s32 4, %v3289
  %v3291 = vrot.slane %v1781, %v3290
  %v3292 = vlaneseq
  %v3293 = vshrl.u32 %v3292, 7
  %v3294 = vsub.s32 5, %v3293
  %v3295 = vrot.slane %v1781, %v3294
  %v3296 = vlaneseq
  %v3297 = vshrl.u32 %v3296, 7
  %v3298 = vsub.s32 6, %v3297
  %v3299 = vrot.slane %v1781, %v3298
  %v3300 = vlaneseq
  %v3301 = vshrl.u32 %v3300, 7
  %v3302 = vsub.s32 7, %v3301
  %v3303 = vrot.slane %v1781, %v3302
  %v3304 = vlaneseq
  %v3305 = vshrl.u32 %v3304, 7
  %v3306 = vsub.s32 0, %v3305
  %v3307 = vrot.slane %v1782, %v3306
  %v3308 = vlaneseq
  %v3309 = vshrl.u32 %v3308, 7
  %v3310 = vsub.s32 1, %v3309
  %v3311 = vrot.slane %v1782, %v3310
  %v3312 = vlaneseq
  %v3313 = vshrl.u32 %v3312, 7
  %v3314 = vsub.s32 2, %v3313
  %v3315 = vrot.slane %v1782, %v3314
  %v3316 = vlaneseq
  %v3317 = vshrl.u32 %v3316, 7
  %v3318 = vsub.s32 3, %v3317
  %v3319 = vrot.slane %v1782, %v3318
  %v3320 = vlaneseq
  %v3321 = vshrl.u32 %v3320, 7
  %v3322 = vsub.s32 4, %v3321
  %v3323 = vrot.slane %v1782, %v3322
  %v3324 = vlaneseq
  %v3325 = vshrl.u32 %v3324, 7
  %v3326 = vsub.s32 5, %v3325
  %v3327 = vrot.slane %v1782, %v3326
  %v3328 = vlaneseq
  %v3329 = vshrl.u32 %v3328, 7
  %v3330 = vsub.s32 6, %v3329
  %v3331 = vrot.slane %v1782, %v3330
  %v3332 = vlaneseq
  %v3333 = vshrl.u32 %v3332, 7
  %v3334 = vsub.s32 7, %v3333
  %v3335 = vrot.slane %v1782, %v3334
  %v3336 = vlaneseq
  %v3337 = vshrl.u32 %v3336, 7
  %v3338 = vsub.s32 0, %v3337
  %v3339 = vrot.slane %v1783, %v3338
  %v3340 = vlaneseq
  %v3341 = vshrl.u32 %v3340, 7
  %v3342 = vsub.s32 1, %v3341
  %v3343 = vrot.slane %v1783, %v3342
  %v3344 = vlaneseq
  %v3345 = vshrl.u32 %v3344, 7
  %v3346 = vsub.s32 2, %v3345
  %v3347 = vrot.slane %v1783, %v3346
  %v3348 = vlaneseq
  %v3349 = vshrl.u32 %v3348, 7
  %v3350 = vsub.s32 3, %v3349
  %v3351 = vrot.slane %v1783, %v3350
  %v3352 = vlaneseq
  %v3353 = vshrl.u32 %v3352, 7
  %v3354 = vsub.s32 4, %v3353
  %v3355 = vrot.slane %v1783, %v3354
  %v3356 = vlaneseq
  %v3357 = vshrl.u32 %v3356, 7
  %v3358 = vsub.s32 5, %v3357
  %v3359 = vrot.slane %v1783, %v3358
  %v3360 = vlaneseq
  %v3361 = vshrl.u32 %v3360, 7
  %v3362 = vsub.s32 6, %v3361
  %v3363 = vrot.slane %v1783, %v3362
  %v3364 = vlaneseq
  %v3365 = vshrl.u32 %v3364, 7
  %v3366 = vsub.s32 7, %v3365
  %v3367 = vrot.slane %v1783, %v3366
  %v3368 = vcombine.low %v1835, %v1839
  %v3369 = vcombine.low %v1843, %v1847
  %v3370 = vcombine.low %v1851, %v1855
  %v3371 = vcombine.low %v1859, %v1863
  %v3373 = vunpack.c.l.s4 1966171168
  %v3374 = vunpack.c.0.s8 %v3373
  %v3375 = vlaneseq
  %v3376 = vshrl.u32 %v3375, 7
  %v3377 = vsub.s32 %v3374, %v3376
  %v3378 = vrot.slane %v3368, %v3377
  %v3380 = vunpack.c.l.s4 1966171168
  %v3381 = vunpack.c.0.s8 %v3380
  %v3382 = vlaneseq
  %v3383 = vshrl.u32 %v3382, 7
  %v3384 = vsub.s32 %v3381, %v3383
  %v3385 = vrot.slane %v3369, %v3384
  %v3387 = vunpack.c.l.s4 1966171168
  %v3388 = vunpack.c.0.s8 %v3387
  %v3389 = vlaneseq
  %v3390 = vshrl.u32 %v3389, 7
  %v3391 = vsub.s32 %v3388, %v3390
  %v3392 = vrot.slane %v3370, %v3391
  %v3394 = vunpack.c.l.s4 1966171168
  %v3395 = vunpack.c.0.s8 %v3394
  %v3396 = vlaneseq
  %v3397 = vshrl.u32 %v3396, 7
  %v3398 = vsub.s32 %v3395, %v3397
  %v3399 = vrot.slane %v3371, %v3398
  %v3400 = vcombine.low %v3378, %v3385
  %v3401 = vcombine.low %v3392, %v3399
  %v3403 = vunpack.c.l.s4 1966171168
  %v3404 = vunpack.c.0.s8 %v3403
  %v3405 = vlaneseq
  %v3406 = vshrl.u32 %v3405, 7
  %v3407 = vsub.s32 %v3404, %v3406
  %v3408 = vrot.slane %v3400, %v3407
  %v3410 = vunpack.c.l.s4 1966171168
  %v3411 = vunpack.c.0.s8 %v3410
  %v3412 = vlaneseq
  %v3413 = vshrl.u32 %v3412, 7
  %v3414 = vsub.s32 %v3411, %v3413
  %v3415 = vrot.slane %v3401, %v3414
  %v3416 = vcombine.low %v3408, %v3415
  %v3417 = vcombine.low %v1867, %v1871
  %v3418 = vcombine.low %v1875, %v1879
  %v3419 = vcombine.low %v1883, %v1887
  %v3420 = vcombine.low %v1891, %v1895
  %v3422 = vunpack.c.l.s4 1966171168
  %v3423 = vunpack.c.0.s8 %v3422
  %v3424 = vlaneseq
  %v3425 = vshrl.u32 %v3424, 7
  %v3426 = vsub.s32 %v3423, %v3425
  %v3427 = vrot.slane %v3417, %v3426
  %v3429 = vunpack.c.l.s4 1966171168
  %v3430 = vunpack.c.0.s8 %v3429
  %v3431 = vlaneseq
  %v3432 = vshrl.u32 %v3431, 7
  %v3433 = vsub.s32 %v3430, %v3432
  %v3434 = vrot.slane %v3418, %v3433
  %v3436 = vunpack.c.l.s4 1966171168
  %v3437 = vunpack.c.0.s8 %v3436
  %v3438 = vlaneseq
  %v3439 = vshrl.u32 %v3438, 7
  %v3440 = vsub.s32 %v3437, %v3439
  %v3441 = vrot.slane %v3419, %v3440
  %v3443 = vunpack.c.l.s4 1966171168
  %v3444 = vunpack.c.0.s8 %v3443
  %v3445 = vlaneseq
  %v3446 = vshrl.u32 %v3445, 7
  %v3447 = vsub.s32 %v3444, %v3446
  %v3448 = vrot.slane %v3420, %v3447
  %v3449 = vcombine.low %v3427, %v3434
  %v3450 = vcombine.low %v3441, %v3448
  %v3452 = vunpack.c.l.s4 1966171168
  %v3453 = vunpack.c.0.s8 %v3452
  %v3454 = vlaneseq
  %v3455 = vshrl.u32 %v3454, 7
  %v3456 = vsub.s32 %v3453, %v3455
  %v3457 = vrot.slane %v3449, %v3456
  %v3459 = vunpack.c.l.s4 1966171168
  %v3460 = vunpack.c.0.s8 %v3459
  %v3461 = vlaneseq
  %v3462 = vshrl.u32 %v3461, 7
  %v3463 = vsub.s32 %v3460, %v3462
  %v3464 = vrot.slane %v3450, %v3463
  %v3465 = vcombine.low %v3457, %v3464
  %v3466 = vcombine.low %v1899, %v1903
  %v3467 = vcombine.low %v1907, %v1911
  %v3468 = vcombine.low %v1915, %v1919
  %v3469 = vcombine.low %v1923, %v1927
  %v3471 = vunpack.c.l.s4 1966171168
  %v3472 = vunpack.c.0.s8 %v3471
  %v3473 = vlaneseq
  %v3474 = vshrl.u32 %v3473, 7
  %v3475 = vsub.s32 %v3472, %v3474
  %v3476 = vrot.slane %v3466, %v3475
  %v3478 = vunpack.c.l.s4 1966171168
  %v3479 = vunpack.c.0.s8 %v3478
  %v3480 = vlaneseq
  %v3481 = vshrl.u32 %v3480, 7
  %v3482 = vsub.s32 %v3479, %v3481
  %v3483 = vrot.slane %v3467, %v3482
  %v3485 = vunpack.c.l.s4 1966171168
  %v3486 = vunpack.c.0.s8 %v3485
  %v3487 = vlaneseq
  %v3488 = vshrl.u32 %v3487, 7
  %v3489 = vsub.s32 %v3486, %v3488
  %v3490 = vrot.slane %v3468, %v3489
  %v3492 = vunpack.c.l.s4 1966171168
  %v3493 = vunpack.c.0.s8 %v3492
  %v3494 = vlaneseq
  %v3495 = vshrl.u32 %v3494, 7
  %v3496 = vsub.s32 %v3493, %v3495
  %v3497 = vrot.slane %v3469, %v3496
  %v3498 = vcombine.low %v3476, %v3483
  %v3499 = vcombine.low %v3490, %v3497
  %v3501 = vunpack.c.l.s4 1966171168
  %v3502 = vunpack.c.0.s8 %v3501
  %v3503 = vlaneseq
  %v3504 = vshrl.u32 %v3503, 7
  %v3505 = vsub.s32 %v3502, %v3504
  %v3506 = vrot.slane %v3498, %v3505
  %v3508 = vunpack.c.l.s4 1966171168
  %v3509 = vunpack.c.0.s8 %v3508
  %v3510 = vlaneseq
  %v3511 = vshrl.u32 %v3510, 7
  %v3512 = vsub.s32 %v3509, %v3511
  %v3513 = vrot.slane %v3499, %v3512
  %v3514 = vcombine.low %v3506, %v3513
  %v3515 = vcombine.low %v1931, %v1935
  %v3516 = vcombine.low %v1939, %v1943
  %v3517 = vcombine.low %v1947, %v1951
  %v3518 = vcombine.low %v1955, %v1959
  %v3520 = vunpack.c.l.s4 1966171168
  %v3521 = vunpack.c.0.s8 %v3520
  %v3522 = vlaneseq
  %v3523 = vshrl.u32 %v3522, 7
  %v3524 = vsub.s32 %v3521, %v3523
  %v3525 = vrot.slane %v3515, %v3524
  %v3527 = vunpack.c.l.s4 1966171168
  %v3528 = vunpack.c.0.s8 %v3527
  %v3529 = vlaneseq
  %v3530 = vshrl.u32 %v3529, 7
  %v3531 = vsub.s32 %v3528, %v3530
  %v3532 = vrot.slane %v3516, %v3531
  %v3534 = vunpack.c.l.s4 1966171168
  %v3535 = vunpack.c.0.s8 %v3534
  %v3536 = vlaneseq
  %v3537 = vshrl.u32 %v3536, 7
  %v3538 = vsub.s32 %v3535, %v3537
  %v3539 = vrot.slane %v3517, %v3538
  %v3541 = vunpack.c.l.s4 1966171168
  %v3542 = vunpack.c.0.s8 %v3541
  %v3543 = vlaneseq
  %v3544 = vshrl.u32 %v3543, 7
  %v3545 = vsub.s32 %v3542, %v3544
  %v3546 = vrot.slane %v3518, %v3545
  %v3547 = vcombine.low %v3525, %v3532
  %v3548 = vcombine.low %v3539, %v3546
  %v3550 = vunpack.c.l.s4 1966171168
  %v3551 = vunpack.c.0.s8 %v3550
  %v3552 = vlaneseq
  %v3553 = vshrl.u32 %v3552, 7
  %v3554 = vsub.s32 %v3551, %v3553
  %v3555 = vrot.slane %v3547, %v3554
  %v3557 = vunpack.c.l.s4 1966171168
  %v3558 = vunpack.c.0.s8 %v3557
  %v3559 = vlaneseq
  %v3560 = vshrl.u32 %v3559, 7
  %v3561 = vsub.s32 %v3558, %v3560
  %v3562 = vrot.slane %v3548, %v3561
  %v3563 = vcombine.low %v3555, %v3562
  %v3564 = vcombine.low %v1963, %v1967
  %v3565 = vcombine.low %v1971, %v1975
  %v3566 = vcombine.low %v1979, %v1983
  %v3567 = vcombine.low %v1987, %v1991
  %v3569 = vunpack.c.l.s4 1966171168
  %v3570 = vunpack.c.0.s8 %v3569
  %v3571 = vlaneseq
  %v3572 = vshrl.u32 %v3571, 7
  %v3573 = vsub.s32 %v3570, %v3572
  %v3574 = vrot.slane %v3564, %v3573
  %v3576 = vunpack.c.l.s4 1966171168
  %v3577 = vunpack.c.0.s8 %v3576
  %v3578 = vlaneseq
  %v3579 = vshrl.u32 %v3578, 7
  %v3580 = vsub.s32 %v3577, %v3579
  %v3581 = vrot.slane %v3565, %v3580
  %v3583 = vunpack.c.l.s4 1966171168
  %v3584 = vunpack.c.0.s8 %v3583
  %v3585 = vlaneseq
  %v3586 = vshrl.u32 %v3585, 7
  %v3587 = vsub.s32 %v3584, %v3586
  %v3588 = vrot.slane %v3566, %v3587
  %v3590 = vunpack.c.l.s4 1966171168
  %v3591 = vunpack.c.0.s8 %v3590
  %v3592 = vlaneseq
  %v3593 = vshrl.u32 %v3592, 7
  %v3594 = vsub.s32 %v3591, %v3593
  %v3595 = vrot.slane %v3567, %v3594
  %v3596 = vcombine.low %v3574, %v3581
  %v3597 = vcombine.low %v3588, %v3595
  %v3599 = vunpack.c.l.s4 1966171168
  %v3600 = vunpack.c.0.s8 %v3599
  %v3601 = vlaneseq
  %v3602 = vshrl.u32 %v3601, 7
  %v3603 = vsub.s32 %v3600, %v3602
  %v3604 = vrot.slane %v3596, %v3603
  %v3606 = vunpack.c.l.s4 1966171168
  %v3607 = vunpack.c.0.s8 %v3606
  %v3608 = vlaneseq
  %v3609 = vshrl.u32 %v3608, 7
  %v3610 = vsub.s32 %v3607, %v3609
  %v3611 = vrot.slane %v3597, %v3610
  %v3612 = vcombine.low %v3604, %v3611
  %v3613 = vcombine.low %v1995, %v1999
  %v3614 = vcombine.low %v2003, %v2007
  %v3615 = vcombine.low %v2011, %v2015
  %v3616 = vcombine.low %v2019, %v2023
  %v3618 = vunpack.c.l.s4 1966171168
  %v3619 = vunpack.c.0.s8 %v3618
  %v3620 = vlaneseq
  %v3621 = vshrl.u32 %v3620, 7
  %v3622 = vsub.s32 %v3619, %v3621
  %v3623 = vrot.slane %v3613, %v3622
  %v3625 = vunpack.c.l.s4 1966171168
  %v3626 = vunpack.c.0.s8 %v3625
  %v3627 = vlaneseq
  %v3628 = vshrl.u32 %v3627, 7
  %v3629 = vsub.s32 %v3626, %v3628
  %v3630 = vrot.slane %v3614, %v3629
  %v3632 = vunpack.c.l.s4 1966171168
  %v3633 = vunpack.c.0.s8 %v3632
  %v3634 = vlaneseq
  %v3635 = vshrl.u32 %v3634, 7
  %v3636 = vsub.s32 %v3633, %v3635
  %v3637 = vrot.slane %v3615, %v3636
  %v3639 = vunpack.c.l.s4 1966171168
  %v3640 = vunpack.c.0.s8 %v3639
  %v3641 = vlaneseq
  %v3642 = vshrl.u32 %v3641, 7
  %v3643 = vsub.s32 %v3640, %v3642
  %v3644 = vrot.slane %v3616, %v3643
  %v3645 = vcombine.low %v3623, %v3630
  %v3646 = vcombine.low %v3637, %v3644
  %v3648 = vunpack.c.l.s4 1966171168
  %v3649 = vunpack.c.0.s8 %v3648
  %v3650 = vlaneseq
  %v3651 = vshrl.u32 %v3650, 7
  %v3652 = vsub.s32 %v3649, %v3651
  %v3653 = vrot.slane %v3645, %v3652
  %v3655 = vunpack.c.l.s4 1966171168
  %v3656 = vunpack.c.0.s8 %v3655
  %v3657 = vlaneseq
  %v3658 = vshrl.u32 %v3657, 7
  %v3659 = vsub.s32 %v3656, %v3658
  %v3660 = vrot.slane %v3646, %v3659
  %v3661 = vcombine.low %v3653, %v3660
  %v3662 = vcombine.low %v2027, %v2031
  %v3663 = vcombine.low %v2035, %v2039
  %v3664 = vcombine.low %v2043, %v2047
  %v3665 = vcombine.low %v2051, %v2055
  %v3667 = vunpack.c.l.s4 1966171168
  %v3668 = vunpack.c.0.s8 %v3667
  %v3669 = vlaneseq
  %v3670 = vshrl.u32 %v3669, 7
  %v3671 = vsub.s32 %v3668, %v3670
  %v3672 = vrot.slane %v3662, %v3671
  %v3674 = vunpack.c.l.s4 1966171168
  %v3675 = vunpack.c.0.s8 %v3674
  %v3676 = vlaneseq
  %v3677 = vshrl.u32 %v3676, 7
  %v3678 = vsub.s32 %v3675, %v3677
  %v3679 = vrot.slane %v3663, %v3678
  %v3681 = vunpack.c.l.s4 1966171168
  %v3682 = vunpack.c.0.s8 %v3681
  %v3683 = vlaneseq
  %v3684 = vshrl.u32 %v3683, 7
  %v3685 = vsub.s32 %v3682, %v3684
  %v3686 = vrot.slane %v3664, %v3685
  %v3688 = vunpack.c.l.s4 1966171168
  %v3689 = vunpack.c.0.s8 %v3688
  %v3690 = vlaneseq
  %v3691 = vshrl.u32 %v3690, 7
  %v3692 = vsub.s32 %v3689, %v3691
  %v3693 = vrot.slane %v3665, %v3692
  %v3694 = vcombine.low %v3672, %v3679
  %v3695 = vcombine.low %v3686, %v3693
  %v3697 = vunpack.c.l.s4 1966171168
  %v3698 = vunpack.c.0.s8 %v3697
  %v3699 = vlaneseq
  %v3700 = vshrl.u32 %v3699, 7
  %v3701 = vsub.s32 %v3698, %v3700
  %v3702 = vrot.slane %v3694, %v3701
  %v3704 = vunpack.c.l.s4 1966171168
  %v3705 = vunpack.c.0.s8 %v3704
  %v3706 = vlaneseq
  %v3707 = vshrl.u32 %v3706, 7
  %v3708 = vsub.s32 %v3705, %v3707
  %v3709 = vrot.slane %v3695, %v3708
  %v3710 = vcombine.low %v3702, %v3709
  %v3711 = vcombine.low %v2059, %v2063
  %v3712 = vcombine.low %v2067, %v2071
  %v3713 = vcombine.low %v2075, %v2079
  %v3714 = vcombine.low %v2083, %v2087
  %v3716 = vunpack.c.l.s4 1966171168
  %v3717 = vunpack.c.0.s8 %v3716
  %v3718 = vlaneseq
  %v3719 = vshrl.u32 %v3718, 7
  %v3720 = vsub.s32 %v3717, %v3719
  %v3721 = vrot.slane %v3711, %v3720
  %v3723 = vunpack.c.l.s4 1966171168
  %v3724 = vunpack.c.0.s8 %v3723
  %v3725 = vlaneseq
  %v3726 = vshrl.u32 %v3725, 7
  %v3727 = vsub.s32 %v3724, %v3726
  %v3728 = vrot.slane %v3712, %v3727
  %v3730 = vunpack.c.l.s4 1966171168
  %v3731 = vunpack.c.0.s8 %v3730
  %v3732 = vlaneseq
  %v3733 = vshrl.u32 %v3732, 7
  %v3734 = vsub.s32 %v3731, %v3733
  %v3735 = vrot.slane %v3713, %v3734
  %v3737 = vunpack.c.l.s4 1966171168
  %v3738 = vunpack.c.0.s8 %v3737
  %v3739 = vlaneseq
  %v3740 = vshrl.u32 %v3739, 7
  %v3741 = vsub.s32 %v3738, %v3740
  %v3742 = vrot.slane %v3714, %v3741
  %v3743 = vcombine.low %v3721, %v3728
  %v3744 = vcombine.low %v3735, %v3742
  %v3746 = vunpack.c.l.s4 1966171168
  %v3747 = vunpack.c.0.s8 %v3746
  %v3748 = vlaneseq
  %v3749 = vshrl.u32 %v3748, 7
  %v3750 = vsub.s32 %v3747, %v3749
  %v3751 = vrot.slane %v3743, %v3750
  %v3753 = vunpack.c.l.s4 1966171168
  %v3754 = vunpack.c.0.s8 %v3753
  %v3755 = vlaneseq
  %v3756 = vshrl.u32 %v3755, 7
  %v3757 = vsub.s32 %v3754, %v3756
  %v3758 = vrot.slane %v3744, %v3757
  %v3759 = vcombine.low %v3751, %v3758
  %v3760 = vcombine.low %v2091, %v2095
  %v3761 = vcombine.low %v2099, %v2103
  %v3762 = vcombine.low %v2107, %v2111
  %v3763 = vcombine.low %v2115, %v2119
  %v3765 = vunpack.c.l.s4 1966171168
  %v3766 = vunpack.c.0.s8 %v3765
  %v3767 = vlaneseq
  %v3768 = vshrl.u32 %v3767, 7
  %v3769 = vsub.s32 %v3766, %v3768
  %v3770 = vrot.slane %v3760, %v3769
  %v3772 = vunpack.c.l.s4 1966171168
  %v3773 = vunpack.c.0.s8 %v3772
  %v3774 = vlaneseq
  %v3775 = vshrl.u32 %v3774, 7
  %v3776 = vsub.s32 %v3773, %v3775
  %v3777 = vrot.slane %v3761, %v3776
  %v3779 = vunpack.c.l.s4 1966171168
  %v3780 = vunpack.c.0.s8 %v3779
  %v3781 = vlaneseq
  %v3782 = vshrl.u32 %v3781, 7
  %v3783 = vsub.s32 %v3780, %v3782
  %v3784 = vrot.slane %v3762, %v3783
  %v3786 = vunpack.c.l.s4 1966171168
  %v3787 = vunpack.c.0.s8 %v3786
  %v3788 = vlaneseq
  %v3789 = vshrl.u32 %v3788, 7
  %v3790 = vsub.s32 %v3787, %v3789
  %v3791 = vrot.slane %v3763, %v3790
  %v3792 = vcombine.low %v3770, %v3777
  %v3793 = vcombine.low %v3784, %v3791
  %v3795 = vunpack.c.l.s4 1966171168
  %v3796 = vunpack.c.0.s8 %v3795
  %v3797 = vlaneseq
  %v3798 = vshrl.u32 %v3797, 7
  %v3799 = vsub.s32 %v3796, %v3798
  %v3800 = vrot.slane %v3792, %v3799
  %v3802 = vunpack.c.l.s4 1966171168
  %v3803 = vunpack.c.0.s8 %v3802
  %v3804 = vlaneseq
  %v3805 = vshrl.u32 %v3804, 7
  %v3806 = vsub.s32 %v3803, %v3805
  %v3807 = vrot.slane %v3793, %v3806
  %v3808 = vcombine.low %v3800, %v3807
  %v3809 = vcombine.low %v2123, %v2127
  %v3810 = vcombine.low %v2131, %v2135
  %v3811 = vcombine.low %v2139, %v2143
  %v3812 = vcombine.low %v2147, %v2151
  %v3814 = vunpack.c.l.s4 1966171168
  %v3815 = vunpack.c.0.s8 %v3814
  %v3816 = vlaneseq
  %v3817 = vshrl.u32 %v3816, 7
  %v3818 = vsub.s32 %v3815, %v3817
  %v3819 = vrot.slane %v3809, %v3818
  %v3821 = vunpack.c.l.s4 1966171168
  %v3822 = vunpack.c.0.s8 %v3821
  %v3823 = vlaneseq
  %v3824 = vshrl.u32 %v3823, 7
  %v3825 = vsub.s32 %v3822, %v3824
  %v3826 = vrot.slane %v3810, %v3825
  %v3828 = vunpack.c.l.s4 1966171168
  %v3829 = vunpack.c.0.s8 %v3828
  %v3830 = vlaneseq
  %v3831 = vshrl.u32 %v3830, 7
  %v3832 = vsub.s32 %v3829, %v3831
  %v3833 = vrot.slane %v3811, %v3832
  %v3835 = vunpack.c.l.s4 1966171168
  %v3836 = vunpack.c.0.s8 %v3835
  %v3837 = vlaneseq
  %v3838 = vshrl.u32 %v3837, 7
  %v3839 = vsub.s32 %v3836, %v3838
  %v3840 = vrot.slane %v3812, %v3839
  %v3841 = vcombine.low %v3819, %v3826
  %v3842 = vcombine.low %v3833, %v3840
  %v3844 = vunpack.c.l.s4 1966171168
  %v3845 = vunpack.c.0.s8 %v3844
  %v3846 = vlaneseq
  %v3847 = vshrl.u32 %v3846, 7
  %v3848 = vsub.s32 %v3845, %v3847
  %v3849 = vrot.slane %v3841, %v3848
  %v3851 = vunpack.c.l.s4 1966171168
  %v3852 = vunpack.c.0.s8 %v3851
  %v3853 = vlaneseq
  %v3854 = vshrl.u32 %v3853, 7
  %v3855 = vsub.s32 %v3852, %v3854
  %v3856 = vrot.slane %v3842, %v3855
  %v3857 = vcombine.low %v3849, %v3856
  %v3858 = vcombine.low %v2155, %v2159
  %v3859 = vcombine.low %v2163, %v2167
  %v3860 = vcombine.low %v2171, %v2175
  %v3861 = vcombine.low %v2179, %v2183
  %v3863 = vunpack.c.l.s4 1966171168
  %v3864 = vunpack.c.0.s8 %v3863
  %v3865 = vlaneseq
  %v3866 = vshrl.u32 %v3865, 7
  %v3867 = vsub.s32 %v3864, %v3866
  %v3868 = vrot.slane %v3858, %v3867
  %v3870 = vunpack.c.l.s4 1966171168
  %v3871 = vunpack.c.0.s8 %v3870
  %v3872 = vlaneseq
  %v3873 = vshrl.u32 %v3872, 7
  %v3874 = vsub.s32 %v3871, %v3873
  %v3875 = vrot.slane %v3859, %v3874
  %v3877 = vunpack.c.l.s4 1966171168
  %v3878 = vunpack.c.0.s8 %v3877
  %v3879 = vlaneseq
  %v3880 = vshrl.u32 %v3879, 7
  %v3881 = vsub.s32 %v3878, %v3880
  %v3882 = vrot.slane %v3860, %v3881
  %v3884 = vunpack.c.l.s4 1966171168
  %v3885 = vunpack.c.0.s8 %v3884
  %v3886 = vlaneseq
  %v3887 = vshrl.u32 %v3886, 7
  %v3888 = vsub.s32 %v3885, %v3887
  %v3889 = vrot.slane %v3861, %v3888
  %v3890 = vcombine.low %v3868, %v3875
  %v3891 = vcombine.low %v3882, %v3889
  %v3893 = vunpack.c.l.s4 1966171168
  %v3894 = vunpack.c.0.s8 %v3893
  %v3895 = vlaneseq
  %v3896 = vshrl.u32 %v3895, 7
  %v3897 = vsub.s32 %v3894, %v3896
  %v3898 = vrot.slane %v3890, %v3897
  %v3900 = vunpack.c.l.s4 1966171168
  %v3901 = vunpack.c.0.s8 %v3900
  %v3902 = vlaneseq
  %v3903 = vshrl.u32 %v3902, 7
  %v3904 = vsub.s32 %v3901, %v3903
  %v3905 = vrot.slane %v3891, %v3904
  %v3906 = vcombine.low %v3898, %v3905
  %v3907 = vcombine.low %v2187, %v2191
  %v3908 = vcombine.low %v2195, %v2199
  %v3909 = vcombine.low %v2203, %v2207
  %v3910 = vcombine.low %v2211, %v2215
  %v3912 = vunpack.c.l.s4 1966171168
  %v3913 = vunpack.c.0.s8 %v3912
  %v3914 = vlaneseq
  %v3915 = vshrl.u32 %v3914, 7
  %v3916 = vsub.s32 %v3913, %v3915
  %v3917 = vrot.slane %v3907, %v3916
  %v3919 = vunpack.c.l.s4 1966171168
  %v3920 = vunpack.c.0.s8 %v3919
  %v3921 = vlaneseq
  %v3922 = vshrl.u32 %v3921, 7
  %v3923 = vsub.s32 %v3920, %v3922
  %v3924 = vrot.slane %v3908, %v3923
  %v3926 = vunpack.c.l.s4 1966171168
  %v3927 = vunpack.c.0.s8 %v3926
  %v3928 = vlaneseq
  %v3929 = vshrl.u32 %v3928, 7
  %v3930 = vsub.s32 %v3927, %v3929
  %v3931 = vrot.slane %v3909, %v3930
  %v3933 = vunpack.c.l.s4 1966171168
  %v3934 = vunpack.c.0.s8 %v3933
  %v3935 = vlaneseq
  %v3936 = vshrl.u32 %v3935, 7
  %v3937 = vsub.s32 %v3934, %v3936
  %v3938 = vrot.slane %v3910, %v3937
  %v3939 = vcombine.low %v3917, %v3924
  %v3940 = vcombine.low %v3931, %v3938
  %v3942 = vunpack.c.l.s4 1966171168
  %v3943 = vunpack.c.0.s8 %v3942
  %v3944 = vlaneseq
  %v3945 = vshrl.u32 %v3944, 7
  %v3946 = vsub.s32 %v3943, %v3945
  %v3947 = vrot.slane %v3939, %v3946
  %v3949 = vunpack.c.l.s4 1966171168
  %v3950 = vunpack.c.0.s8 %v3949
  %v3951 = vlaneseq
  %v3952 = vshrl.u32 %v3951, 7
  %v3953 = vsub.s32 %v3950, %v3952
  %v3954 = vrot.slane %v3940, %v3953
  %v3955 = vcombine.low %v3947, %v3954
  %v3956 = vcombine.low %v2219, %v2223
  %v3957 = vcombine.low %v2227, %v2231
  %v3958 = vcombine.low %v2235, %v2239
  %v3959 = vcombine.low %v2243, %v2247
  %v3961 = vunpack.c.l.s4 1966171168
  %v3962 = vunpack.c.0.s8 %v3961
  %v3963 = vlaneseq
  %v3964 = vshrl.u32 %v3963, 7
  %v3965 = vsub.s32 %v3962, %v3964
  %v3966 = vrot.slane %v3956, %v3965
  %v3968 = vunpack.c.l.s4 1966171168
  %v3969 = vunpack.c.0.s8 %v3968
  %v3970 = vlaneseq
  %v3971 = vshrl.u32 %v3970, 7
  %v3972 = vsub.s32 %v3969, %v3971
  %v3973 = vrot.slane %v3957, %v3972
  %v3975 = vunpack.c.l.s4 1966171168
  %v3976 = vunpack.c.0.s8 %v3975
  %v3977 = vlaneseq
  %v3978 = vshrl.u32 %v3977, 7
  %v3979 = vsub.s32 %v3976, %v3978
  %v3980 = vrot.slane %v3958, %v3979
  %v3982 = vunpack.c.l.s4 1966171168
  %v3983 = vunpack.c.0.s8 %v3982
  %v3984 = vlaneseq
  %v3985 = vshrl.u32 %v3984, 7
  %v3986 = vsub.s32 %v3983, %v3985
  %v3987 = vrot.slane %v3959, %v3986
  %v3988 = vcombine.low %v3966, %v3973
  %v3989 = vcombine.low %v3980, %v3987
  %v3991 = vunpack.c.l.s4 1966171168
  %v3992 = vunpack.c.0.s8 %v3991
  %v3993 = vlaneseq
  %v3994 = vshrl.u32 %v3993, 7
  %v3995 = vsub.s32 %v3992, %v3994
  %v3996 = vrot.slane %v3988, %v3995
  %v3998 = vunpack.c.l.s4 1966171168
  %v3999 = vunpack.c.0.s8 %v3998
  %v4000 = vlaneseq
  %v4001 = vshrl.u32 %v4000, 7
  %v4002 = vsub.s32 %v3999, %v4001
  %v4003 = vrot.slane %v3989, %v4002
  %v4004 = vcombine.low %v3996, %v4003
  %v4005 = vcombine.low %v2251, %v2255
  %v4006 = vcombine.low %v2259, %v2263
  %v4007 = vcombine.low %v2267, %v2271
  %v4008 = vcombine.low %v2275, %v2279
  %v4010 = vunpack.c.l.s4 1966171168
  %v4011 = vunpack.c.0.s8 %v4010
  %v4012 = vlaneseq
  %v4013 = vshrl.u32 %v4012, 7
  %v4014 = vsub.s32 %v4011, %v4013
  %v4015 = vrot.slane %v4005, %v4014
  %v4017 = vunpack.c.l.s4 1966171168
  %v4018 = vunpack.c.0.s8 %v4017
  %v4019 = vlaneseq
  %v4020 = vshrl.u32 %v4019, 7
  %v4021 = vsub.s32 %v4018, %v4020
  %v4022 = vrot.slane %v4006, %v4021
  %v4024 = vunpack.c.l.s4 1966171168
  %v4025 = vunpack.c.0.s8 %v4024
  %v4026 = vlaneseq
  %v4027 = vshrl.u32 %v4026, 7
  %v4028 = vsub.s32 %v4025, %v4027
  %v4029 = vrot.slane %v4007, %v4028
  %v4031 = vunpack.c.l.s4 1966171168
  %v4032 = vunpack.c.0.s8 %v4031
  %v4033 = vlaneseq
  %v4034 = vshrl.u32 %v4033, 7
  %v4035 = vsub.s32 %v4032, %v4034
  %v4036 = vrot.slane %v4008, %v4035
  %v4037 = vcombine.low %v4015, %v4022
  %v4038 = vcombine.low %v4029, %v4036
  %v4040 = vunpack.c.l.s4 1966171168
  %v4041 = vunpack.c.0.s8 %v4040
  %v4042 = vlaneseq
  %v4043 = vshrl.u32 %v4042, 7
  %v4044 = vsub.s32 %v4041, %v4043
  %v4045 = vrot.slane %v4037, %v4044
  %v4047 = vunpack.c.l.s4 1966171168
  %v4048 = vunpack.c.0.s8 %v4047
  %v4049 = vlaneseq
  %v4050 = vshrl.u32 %v4049, 7
  %v4051 = vsub.s32 %v4048, %v4050
  %v4052 = vrot.slane %v4038, %v4051
  %v4053 = vcombine.low %v4045, %v4052
  %v4054 = vcombine.low %v2283, %v2287
  %v4055 = vcombine.low %v2291, %v2295
  %v4056 = vcombine.low %v2299, %v2303
  %v4057 = vcombine.low %v2307, %v2311
  %v4059 = vunpack.c.l.s4 1966171168
  %v4060 = vunpack.c.0.s8 %v4059
  %v4061 = vlaneseq
  %v4062 = vshrl.u32 %v4061, 7
  %v4063 = vsub.s32 %v4060, %v4062
  %v4064 = vrot.slane %v4054, %v4063
  %v4066 = vunpack.c.l.s4 1966171168
  %v4067 = vunpack.c.0.s8 %v4066
  %v4068 = vlaneseq
  %v4069 = vshrl.u32 %v4068, 7
  %v4070 = vsub.s32 %v4067, %v4069
  %v4071 = vrot.slane %v4055, %v4070
  %v4073 = vunpack.c.l.s4 1966171168
  %v4074 = vunpack.c.0.s8 %v4073
  %v4075 = vlaneseq
  %v4076 = vshrl.u32 %v4075, 7
  %v4077 = vsub.s32 %v4074, %v4076
  %v4078 = vrot.slane %v4056, %v4077
  %v4080 = vunpack.c.l.s4 1966171168
  %v4081 = vunpack.c.0.s8 %v4080
  %v4082 = vlaneseq
  %v4083 = vshrl.u32 %v4082, 7
  %v4084 = vsub.s32 %v4081, %v4083
  %v4085 = vrot.slane %v4057, %v4084
  %v4086 = vcombine.low %v4064, %v4071
  %v4087 = vcombine.low %v4078, %v4085
  %v4089 = vunpack.c.l.s4 1966171168
  %v4090 = vunpack.c.0.s8 %v4089
  %v4091 = vlaneseq
  %v4092 = vshrl.u32 %v4091, 7
  %v4093 = vsub.s32 %v4090, %v4092
  %v4094 = vrot.slane %v4086, %v4093
  %v4096 = vunpack.c.l.s4 1966171168
  %v4097 = vunpack.c.0.s8 %v4096
  %v4098 = vlaneseq
  %v4099 = vshrl.u32 %v4098, 7
  %v4100 = vsub.s32 %v4097, %v4099
  %v4101 = vrot.slane %v4087, %v4100
  %v4102 = vcombine.low %v4094, %v4101
  %v4103 = vcombine.low %v2315, %v2319
  %v4104 = vcombine.low %v2323, %v2327
  %v4105 = vcombine.low %v2331, %v2335
  %v4106 = vcombine.low %v2339, %v2343
  %v4108 = vunpack.c.l.s4 1966171168
  %v4109 = vunpack.c.0.s8 %v4108
  %v4110 = vlaneseq
  %v4111 = vshrl.u32 %v4110, 7
  %v4112 = vsub.s32 %v4109, %v4111
  %v4113 = vrot.slane %v4103, %v4112
  %v4115 = vunpack.c.l.s4 1966171168
  %v4116 = vunpack.c.0.s8 %v4115
  %v4117 = vlaneseq
  %v4118 = vshrl.u32 %v4117, 7
  %v4119 = vsub.s32 %v4116, %v4118
  %v4120 = vrot.slane %v4104, %v4119
  %v4122 = vunpack.c.l.s4 1966171168
  %v4123 = vunpack.c.0.s8 %v4122
  %v4124 = vlaneseq
  %v4125 = vshrl.u32 %v4124, 7
  %v4126 = vsub.s32 %v4123, %v4125
  %v4127 = vrot.slane %v4105, %v4126
  %v4129 = vunpack.c.l.s4 1966171168
  %v4130 = vunpack.c.0.s8 %v4129
  %v4131 = vlaneseq
  %v4132 = vshrl.u32 %v4131, 7
  %v4133 = vsub.s32 %v4130, %v4132
  %v4134 = vrot.slane %v4106, %v4133
  %v4135 = vcombine.low %v4113, %v4120
  %v4136 = vcombine.low %v4127, %v4134
  %v4138 = vunpack.c.l.s4 1966171168
  %v4139 = vunpack.c.0.s8 %v4138
  %v4140 = vlaneseq
  %v4141 = vshrl.u32 %v4140, 7
  %v4142 = vsub.s32 %v4139, %v4141
  %v4143 = vrot.slane %v4135, %v4142
  %v4145 = vunpack.c.l.s4 1966171168
  %v4146 = vunpack.c.0.s8 %v4145
  %v4147 = vlaneseq
  %v4148 = vshrl.u32 %v4147, 7
  %v4149 = vsub.s32 %v4146, %v4148
  %v4150 = vrot.slane %v4136, %v4149
  %v4151 = vcombine.low %v4143, %v4150
  %v4152 = vcombine.low %v2347, %v2351
  %v4153 = vcombine.low %v2355, %v2359
  %v4154 = vcombine.low %v2363, %v2367
  %v4155 = vcombine.low %v2371, %v2375
  %v4157 = vunpack.c.l.s4 1966171168
  %v4158 = vunpack.c.0.s8 %v4157
  %v4159 = vlaneseq
  %v4160 = vshrl.u32 %v4159, 7
  %v4161 = vsub.s32 %v4158, %v4160
  %v4162 = vrot.slane %v4152, %v4161
  %v4164 = vunpack.c.l.s4 1966171168
  %v4165 = vunpack.c.0.s8 %v4164
  %v4166 = vlaneseq
  %v4167 = vshrl.u32 %v4166, 7
  %v4168 = vsub.s32 %v4165, %v4167
  %v4169 = vrot.slane %v4153, %v4168
  %v4171 = vunpack.c.l.s4 1966171168
  %v4172 = vunpack.c.0.s8 %v4171
  %v4173 = vlaneseq
  %v4174 = vshrl.u32 %v4173, 7
  %v4175 = vsub.s32 %v4172, %v4174
  %v4176 = vrot.slane %v4154, %v4175
  %v4178 = vunpack.c.l.s4 1966171168
  %v4179 = vunpack.c.0.s8 %v4178
  %v4180 = vlaneseq
  %v4181 = vshrl.u32 %v4180, 7
  %v4182 = vsub.s32 %v4179, %v4181
  %v4183 = vrot.slane %v4155, %v4182
  %v4184 = vcombine.low %v4162, %v4169
  %v4185 = vcombine.low %v4176, %v4183
  %v4187 = vunpack.c.l.s4 1966171168
  %v4188 = vunpack.c.0.s8 %v4187
  %v4189 = vlaneseq
  %v4190 = vshrl.u32 %v4189, 7
  %v4191 = vsub.s32 %v4188, %v4190
  %v4192 = vrot.slane %v4184, %v4191
  %v4194 = vunpack.c.l.s4 1966171168
  %v4195 = vunpack.c.0.s8 %v4194
  %v4196 = vlaneseq
  %v4197 = vshrl.u32 %v4196, 7
  %v4198 = vsub.s32 %v4195, %v4197
  %v4199 = vrot.slane %v4185, %v4198
  %v4200 = vcombine.low %v4192, %v4199
  %v4201 = vcombine.low %v2379, %v2383
  %v4202 = vcombine.low %v2387, %v2391
  %v4203 = vcombine.low %v2395, %v2399
  %v4204 = vcombine.low %v2403, %v2407
  %v4206 = vunpack.c.l.s4 1966171168
  %v4207 = vunpack.c.0.s8 %v4206
  %v4208 = vlaneseq
  %v4209 = vshrl.u32 %v4208, 7
  %v4210 = vsub.s32 %v4207, %v4209
  %v4211 = vrot.slane %v4201, %v4210
  %v4213 = vunpack.c.l.s4 1966171168
  %v4214 = vunpack.c.0.s8 %v4213
  %v4215 = vlaneseq
  %v4216 = vshrl.u32 %v4215, 7
  %v4217 = vsub.s32 %v4214, %v4216
  %v4218 = vrot.slane %v4202, %v4217
  %v4220 = vunpack.c.l.s4 1966171168
  %v4221 = vunpack.c.0.s8 %v4220
  %v4222 = vlaneseq
  %v4223 = vshrl.u32 %v4222, 7
  %v4224 = vsub.s32 %v4221, %v4223
  %v4225 = vrot.slane %v4203, %v4224
  %v4227 = vunpack.c.l.s4 1966171168
  %v4228 = vunpack.c.0.s8 %v4227
  %v4229 = vlaneseq
  %v4230 = vshrl.u32 %v4229, 7
  %v4231 = vsub.s32 %v4228, %v4230
  %v4232 = vrot.slane %v4204, %v4231
  %v4233 = vcombine.low %v4211, %v4218
  %v4234 = vcombine.low %v4225, %v4232
  %v4236 = vunpack.c.l.s4 1966171168
  %v4237 = vunpack.c.0.s8 %v4236
  %v4238 = vlaneseq
  %v4239 = vshrl.u32 %v4238, 7
  %v4240 = vsub.s32 %v4237, %v4239
  %v4241 = vrot.slane %v4233, %v4240
  %v4243 = vunpack.c.l.s4 1966171168
  %v4244 = vunpack.c.0.s8 %v4243
  %v4245 = vlaneseq
  %v4246 = vshrl.u32 %v4245, 7
  %v4247 = vsub.s32 %v4244, %v4246
  %v4248 = vrot.slane %v4234, %v4247
  %v4249 = vcombine.low %v4241, %v4248
  %v4250 = vcombine.low %v2411, %v2415
  %v4251 = vcombine.low %v2419, %v2423
  %v4252 = vcombine.low %v2427, %v2431
  %v4253 = vcombine.low %v2435, %v2439
  %v4255 = vunpack.c.l.s4 1966171168
  %v4256 = vunpack.c.0.s8 %v4255
  %v4257 = vlaneseq
  %v4258 = vshrl.u32 %v4257, 7
  %v4259 = vsub.s32 %v4256, %v4258
  %v4260 = vrot.slane %v4250, %v4259
  %v4262 = vunpack.c.l.s4 1966171168
  %v4263 = vunpack.c.0.s8 %v4262
  %v4264 = vlaneseq
  %v4265 = vshrl.u32 %v4264, 7
  %v4266 = vsub.s32 %v4263, %v4265
  %v4267 = vrot.slane %v4251, %v4266
  %v4269 = vunpack.c.l.s4 1966171168
  %v4270 = vunpack.c.0.s8 %v4269
  %v4271 = vlaneseq
  %v4272 = vshrl.u32 %v4271, 7
  %v4273 = vsub.s32 %v4270, %v4272
  %v4274 = vrot.slane %v4252, %v4273
  %v4276 = vunpack.c.l.s4 1966171168
  %v4277 = vunpack.c.0.s8 %v4276
  %v4278 = vlaneseq
  %v4279 = vshrl.u32 %v4278, 7
  %v4280 = vsub.s32 %v4277, %v4279
  %v4281 = vrot.slane %v4253, %v4280
  %v4282 = vcombine.low %v4260, %v4267
  %v4283 = vcombine.low %v4274, %v4281
  %v4285 = vunpack.c.l.s4 1966171168
  %v4286 = vunpack.c.0.s8 %v4285
  %v4287 = vlaneseq
  %v4288 = vshrl.u32 %v4287, 7
  %v4289 = vsub.s32 %v4286, %v4288
  %v4290 = vrot.slane %v4282, %v4289
  %v4292 = vunpack.c.l.s4 1966171168
  %v4293 = vunpack.c.0.s8 %v4292
  %v4294 = vlaneseq
  %v4295 = vshrl.u32 %v4294, 7
  %v4296 = vsub.s32 %v4293, %v4295
  %v4297 = vrot.slane %v4283, %v4296
  %v4298 = vcombine.low %v4290, %v4297
  %v4299 = vcombine.low %v2443, %v2447
  %v4300 = vcombine.low %v2451, %v2455
  %v4301 = vcombine.low %v2459, %v2463
  %v4302 = vcombine.low %v2467, %v2471
  %v4304 = vunpack.c.l.s4 1966171168
  %v4305 = vunpack.c.0.s8 %v4304
  %v4306 = vlaneseq
  %v4307 = vshrl.u32 %v4306, 7
  %v4308 = vsub.s32 %v4305, %v4307
  %v4309 = vrot.slane %v4299, %v4308
  %v4311 = vunpack.c.l.s4 1966171168
  %v4312 = vunpack.c.0.s8 %v4311
  %v4313 = vlaneseq
  %v4314 = vshrl.u32 %v4313, 7
  %v4315 = vsub.s32 %v4312, %v4314
  %v4316 = vrot.slane %v4300, %v4315
  %v4318 = vunpack.c.l.s4 1966171168
  %v4319 = vunpack.c.0.s8 %v4318
  %v4320 = vlaneseq
  %v4321 = vshrl.u32 %v4320, 7
  %v4322 = vsub.s32 %v4319, %v4321
  %v4323 = vrot.slane %v4301, %v4322
  %v4325 = vunpack.c.l.s4 1966171168
  %v4326 = vunpack.c.0.s8 %v4325
  %v4327 = vlaneseq
  %v4328 = vshrl.u32 %v4327, 7
  %v4329 = vsub.s32 %v4326, %v4328
  %v4330 = vrot.slane %v4302, %v4329
  %v4331 = vcombine.low %v4309, %v4316
  %v4332 = vcombine.low %v4323, %v4330
  %v4334 = vunpack.c.l.s4 1966171168
  %v4335 = vunpack.c.0.s8 %v4334
  %v4336 = vlaneseq
  %v4337 = vshrl.u32 %v4336, 7
  %v4338 = vsub.s32 %v4335, %v4337
  %v4339 = vrot.slane %v4331, %v4338
  %v4341 = vunpack.c.l.s4 1966171168
  %v4342 = vunpack.c.0.s8 %v4341
  %v4343 = vlaneseq
  %v4344 = vshrl.u32 %v4343, 7
  %v4345 = vsub.s32 %v4342, %v4344
  %v4346 = vrot.slane %v4332, %v4345
  %v4347 = vcombine.low %v4339, %v4346
  %v4348 = vcombine.low %v2475, %v2479
  %v4349 = vcombine.low %v2483, %v2487
  %v4350 = vcombine.low %v2491, %v2495
  %v4351 = vcombine.low %v2499, %v2503
  %v4353 = vunpack.c.l.s4 1966171168
  %v4354 = vunpack.c.0.s8 %v4353
  %v4355 = vlaneseq
  %v4356 = vshrl.u32 %v4355, 7
  %v4357 = vsub.s32 %v4354, %v4356
  %v4358 = vrot.slane %v4348, %v4357
  %v4360 = vunpack.c.l.s4 1966171168
  %v4361 = vunpack.c.0.s8 %v4360
  %v4362 = vlaneseq
  %v4363 = vshrl.u32 %v4362, 7
  %v4364 = vsub.s32 %v4361, %v4363
  %v4365 = vrot.slane %v4349, %v4364
  %v4367 = vunpack.c.l.s4 1966171168
  %v4368 = vunpack.c.0.s8 %v4367
  %v4369 = vlaneseq
  %v4370 = vshrl.u32 %v4369, 7
  %v4371 = vsub.s32 %v4368, %v4370
  %v4372 = vrot.slane %v4350, %v4371
  %v4374 = vunpack.c.l.s4 1966171168
  %v4375 = vunpack.c.0.s8 %v4374
  %v4376 = vlaneseq
  %v4377 = vshrl.u32 %v4376, 7
  %v4378 = vsub.s32 %v4375, %v4377
  %v4379 = vrot.slane %v4351, %v4378
  %v4380 = vcombine.low %v4358, %v4365
  %v4381 = vcombine.low %v4372, %v4379
  %v4383 = vunpack.c.l.s4 1966171168
  %v4384 = vunpack.c.0.s8 %v4383
  %v4385 = vlaneseq
  %v4386 = vshrl.u32 %v4385, 7
  %v4387 = vsub.s32 %v4384, %v4386
  %v4388 = vrot.slane %v4380, %v4387
  %v4390 = vunpack.c.l.s4 1966171168
  %v4391 = vunpack.c.0.s8 %v4390
  %v4392 = vlaneseq
  %v4393 = vshrl.u32 %v4392, 7
  %v4394 = vsub.s32 %v4391, %v4393
  %v4395 = vrot.slane %v4381, %v4394
  %v4396 = vcombine.low %v4388, %v4395
  %v4397 = vcombine.low %v2507, %v2511
  %v4398 = vcombine.low %v2515, %v2519
  %v4399 = vcombine.low %v2523, %v2527
  %v4400 = vcombine.low %v2531, %v2535
  %v4402 = vunpack.c.l.s4 1966171168
  %v4403 = vunpack.c.0.s8 %v4402
  %v4404 = vlaneseq
  %v4405 = vshrl.u32 %v4404, 7
  %v4406 = vsub.s32 %v4403, %v4405
  %v4407 = vrot.slane %v4397, %v4406
  %v4409 = vunpack.c.l.s4 1966171168
  %v4410 = vunpack.c.0.s8 %v4409
  %v4411 = vlaneseq
  %v4412 = vshrl.u32 %v4411, 7
  %v4413 = vsub.s32 %v4410, %v4412
  %v4414 = vrot.slane %v4398, %v4413
  %v4416 = vunpack.c.l.s4 1966171168
  %v4417 = vunpack.c.0.s8 %v4416
  %v4418 = vlaneseq
  %v4419 = vshrl.u32 %v4418, 7
  %v4420 = vsub.s32 %v4417, %v4419
  %v4421 = vrot.slane %v4399, %v4420
  %v4423 = vunpack.c.l.s4 1966171168
  %v4424 = vunpack.c.0.s8 %v4423
  %v4425 = vlaneseq
  %v4426 = vshrl.u32 %v4425, 7
  %v4427 = vsub.s32 %v4424, %v4426
  %v4428 = vrot.slane %v4400, %v4427
  %v4429 = vcombine.low %v4407, %v4414
  %v4430 = vcombine.low %v4421, %v4428
  %v4432 = vunpack.c.l.s4 1966171168
  %v4433 = vunpack.c.0.s8 %v4432
  %v4434 = vlaneseq
  %v4435 = vshrl.u32 %v4434, 7
  %v4436 = vsub.s32 %v4433, %v4435
  %v4437 = vrot.slane %v4429, %v4436
  %v4439 = vunpack.c.l.s4 1966171168
  %v4440 = vunpack.c.0.s8 %v4439
  %v4441 = vlaneseq
  %v4442 = vshrl.u32 %v4441, 7
  %v4443 = vsub.s32 %v4440, %v4442
  %v4444 = vrot.slane %v4430, %v4443
  %v4445 = vcombine.low %v4437, %v4444
  %v4446 = vcombine.low %v2539, %v2543
  %v4447 = vcombine.low %v2547, %v2551
  %v4448 = vcombine.low %v2555, %v2559
  %v4449 = vcombine.low %v2563, %v2567
  %v4451 = vunpack.c.l.s4 1966171168
  %v4452 = vunpack.c.0.s8 %v4451
  %v4453 = vlaneseq
  %v4454 = vshrl.u32 %v4453, 7
  %v4455 = vsub.s32 %v4452, %v4454
  %v4456 = vrot.slane %v4446, %v4455
  %v4458 = vunpack.c.l.s4 1966171168
  %v4459 = vunpack.c.0.s8 %v4458
  %v4460 = vlaneseq
  %v4461 = vshrl.u32 %v4460, 7
  %v4462 = vsub.s32 %v4459, %v4461
  %v4463 = vrot.slane %v4447, %v4462
  %v4465 = vunpack.c.l.s4 1966171168
  %v4466 = vunpack.c.0.s8 %v4465
  %v4467 = vlaneseq
  %v4468 = vshrl.u32 %v4467, 7
  %v4469 = vsub.s32 %v4466, %v4468
  %v4470 = vrot.slane %v4448, %v4469
  %v4472 = vunpack.c.l.s4 1966171168
  %v4473 = vunpack.c.0.s8 %v4472
  %v4474 = vlaneseq
  %v4475 = vshrl.u32 %v4474, 7
  %v4476 = vsub.s32 %v4473, %v4475
  %v4477 = vrot.slane %v4449, %v4476
  %v4478 = vcombine.low %v4456, %v4463
  %v4479 = vcombine.low %v4470, %v4477
  %v4481 = vunpack.c.l.s4 1966171168
  %v4482 = vunpack.c.0.s8 %v4481
  %v4483 = vlaneseq
  %v4484 = vshrl.u32 %v4483, 7
  %v4485 = vsub.s32 %v4482, %v4484
  %v4486 = vrot.slane %v4478, %v4485
  %v4488 = vunpack.c.l.s4 1966171168
  %v4489 = vunpack.c.0.s8 %v4488
  %v4490 = vlaneseq
  %v4491 = vshrl.u32 %v4490, 7
  %v4492 = vsub.s32 %v4489, %v4491
  %v4493 = vrot.slane %v4479, %v4492
  %v4494 = vcombine.low %v4486, %v4493
  %v4495 = vcombine.low %v2571, %v2575
  %v4496 = vcombine.low %v2579, %v2583
  %v4497 = vcombine.low %v2587, %v2591
  %v4498 = vcombine.low %v2595, %v2599
  %v4500 = vunpack.c.l.s4 1966171168
  %v4501 = vunpack.c.0.s8 %v4500
  %v4502 = vlaneseq
  %v4503 = vshrl.u32 %v4502, 7
  %v4504 = vsub.s32 %v4501, %v4503
  %v4505 = vrot.slane %v4495, %v4504
  %v4507 = vunpack.c.l.s4 1966171168
  %v4508 = vunpack.c.0.s8 %v4507
  %v4509 = vlaneseq
  %v4510 = vshrl.u32 %v4509, 7
  %v4511 = vsub.s32 %v4508, %v4510
  %v4512 = vrot.slane %v4496, %v4511
  %v4514 = vunpack.c.l.s4 1966171168
  %v4515 = vunpack.c.0.s8 %v4514
  %v4516 = vlaneseq
  %v4517 = vshrl.u32 %v4516, 7
  %v4518 = vsub.s32 %v4515, %v4517
  %v4519 = vrot.slane %v4497, %v4518
  %v4521 = vunpack.c.l.s4 1966171168
  %v4522 = vunpack.c.0.s8 %v4521
  %v4523 = vlaneseq
  %v4524 = vshrl.u32 %v4523, 7
  %v4525 = vsub.s32 %v4522, %v4524
  %v4526 = vrot.slane %v4498, %v4525
  %v4527 = vcombine.low %v4505, %v4512
  %v4528 = vcombine.low %v4519, %v4526
  %v4530 = vunpack.c.l.s4 1966171168
  %v4531 = vunpack.c.0.s8 %v4530
  %v4532 = vlaneseq
  %v4533 = vshrl.u32 %v4532, 7
  %v4534 = vsub.s32 %v4531, %v4533
  %v4535 = vrot.slane %v4527, %v4534
  %v4537 = vunpack.c.l.s4 1966171168
  %v4538 = vunpack.c.0.s8 %v4537
  %v4539 = vlaneseq
  %v4540 = vshrl.u32 %v4539, 7
  %v4541 = vsub.s32 %v4538, %v4540
  %v4542 = vrot.slane %v4528, %v4541
  %v4543 = vcombine.low %v4535, %v4542
  %v4544 = vcombine.low %v2603, %v2607
  %v4545 = vcombine.low %v2611, %v2615
  %v4546 = vcombine.low %v2619, %v2623
  %v4547 = vcombine.low %v2627, %v2631
  %v4549 = vunpack.c.l.s4 1966171168
  %v4550 = vunpack.c.0.s8 %v4549
  %v4551 = vlaneseq
  %v4552 = vshrl.u32 %v4551, 7
  %v4553 = vsub.s32 %v4550, %v4552
  %v4554 = vrot.slane %v4544, %v4553
  %v4556 = vunpack.c.l.s4 1966171168
  %v4557 = vunpack.c.0.s8 %v4556
  %v4558 = vlaneseq
  %v4559 = vshrl.u32 %v4558, 7
  %v4560 = vsub.s32 %v4557, %v4559
  %v4561 = vrot.slane %v4545, %v4560
  %v4563 = vunpack.c.l.s4 1966171168
  %v4564 = vunpack.c.0.s8 %v4563
  %v4565 = vlaneseq
  %v4566 = vshrl.u32 %v4565, 7
  %v4567 = vsub.s32 %v4564, %v4566
  %v4568 = vrot.slane %v4546, %v4567
  %v4570 = vunpack.c.l.s4 1966171168
  %v4571 = vunpack.c.0.s8 %v4570
  %v4572 = vlaneseq
  %v4573 = vshrl.u32 %v4572, 7
  %v4574 = vsub.s32 %v4571, %v4573
  %v4575 = vrot.slane %v4547, %v4574
  %v4576 = vcombine.low %v4554, %v4561
  %v4577 = vcombine.low %v4568, %v4575
  %v4579 = vunpack.c.l.s4 1966171168
  %v4580 = vunpack.c.0.s8 %v4579
  %v4581 = vlaneseq
  %v4582 = vshrl.u32 %v4581, 7
  %v4583 = vsub.s32 %v4580, %v4582
  %v4584 = vrot.slane %v4576, %v4583
  %v4586 = vunpack.c.l.s4 1966171168
  %v4587 = vunpack.c.0.s8 %v4586
  %v4588 = vlaneseq
  %v4589 = vshrl.u32 %v4588, 7
  %v4590 = vsub.s32 %v4587, %v4589
  %v4591 = vrot.slane %v4577, %v4590
  %v4592 = vcombine.low %v4584, %v4591
  %v4593 = vcombine.low %v2635, %v2639
  %v4594 = vcombine.low %v2643, %v2647
  %v4595 = vcombine.low %v2651, %v2655
  %v4596 = vcombine.low %v2659, %v2663
  %v4598 = vunpack.c.l.s4 1966171168
  %v4599 = vunpack.c.0.s8 %v4598
  %v4600 = vlaneseq
  %v4601 = vshrl.u32 %v4600, 7
  %v4602 = vsub.s32 %v4599, %v4601
  %v4603 = vrot.slane %v4593, %v4602
  %v4605 = vunpack.c.l.s4 1966171168
  %v4606 = vunpack.c.0.s8 %v4605
  %v4607 = vlaneseq
  %v4608 = vshrl.u32 %v4607, 7
  %v4609 = vsub.s32 %v4606, %v4608
  %v4610 = vrot.slane %v4594, %v4609
  %v4612 = vunpack.c.l.s4 1966171168
  %v4613 = vunpack.c.0.s8 %v4612
  %v4614 = vlaneseq
  %v4615 = vshrl.u32 %v4614, 7
  %v4616 = vsub.s32 %v4613, %v4615
  %v4617 = vrot.slane %v4595, %v4616
  %v4619 = vunpack.c.l.s4 1966171168
  %v4620 = vunpack.c.0.s8 %v4619
  %v4621 = vlaneseq
  %v4622 = vshrl.u32 %v4621, 7
  %v4623 = vsub.s32 %v4620, %v4622
  %v4624 = vrot.slane %v4596, %v4623
  %v4625 = vcombine.low %v4603, %v4610
  %v4626 = vcombine.low %v4617, %v4624
  %v4628 = vunpack.c.l.s4 1966171168
  %v4629 = vunpack.c.0.s8 %v4628
  %v4630 = vlaneseq
  %v4631 = vshrl.u32 %v4630, 7
  %v4632 = vsub.s32 %v4629, %v4631
  %v4633 = vrot.slane %v4625, %v4632
  %v4635 = vunpack.c.l.s4 1966171168
  %v4636 = vunpack.c.0.s8 %v4635
  %v4637 = vlaneseq
  %v4638 = vshrl.u32 %v4637, 7
  %v4639 = vsub.s32 %v4636, %v4638
  %v4640 = vrot.slane %v4626, %v4639
  %v4641 = vcombine.low %v4633, %v4640
  %v4642 = vcombine.low %v2667, %v2671
  %v4643 = vcombine.low %v2675, %v2679
  %v4644 = vcombine.low %v2683, %v2687
  %v4645 = vcombine.low %v2691, %v2695
  %v4647 = vunpack.c.l.s4 1966171168
  %v4648 = vunpack.c.0.s8 %v4647
  %v4649 = vlaneseq
  %v4650 = vshrl.u32 %v4649, 7
  %v4651 = vsub.s32 %v4648, %v4650
  %v4652 = vrot.slane %v4642, %v4651
  %v4654 = vunpack.c.l.s4 1966171168
  %v4655 = vunpack.c.0.s8 %v4654
  %v4656 = vlaneseq
  %v4657 = vshrl.u32 %v4656, 7
  %v4658 = vsub.s32 %v4655, %v4657
  %v4659 = vrot.slane %v4643, %v4658
  %v4661 = vunpack.c.l.s4 1966171168
  %v4662 = vunpack.c.0.s8 %v4661
  %v4663 = vlaneseq
  %v4664 = vshrl.u32 %v4663, 7
  %v4665 = vsub.s32 %v4662, %v4664
  %v4666 = vrot.slane %v4644, %v4665
  %v4668 = vunpack.c.l.s4 1966171168
  %v4669 = vunpack.c.0.s8 %v4668
  %v4670 = vlaneseq
  %v4671 = vshrl.u32 %v4670, 7
  %v4672 = vsub.s32 %v4669, %v4671
  %v4673 = vrot.slane %v4645, %v4672
  %v4674 = vcombine.low %v4652, %v4659
  %v4675 = vcombine.low %v4666, %v4673
  %v4677 = vunpack.c.l.s4 1966171168
  %v4678 = vunpack.c.0.s8 %v4677
  %v4679 = vlaneseq
  %v4680 = vshrl.u32 %v4679, 7
  %v4681 = vsub.s32 %v4678, %v4680
  %v4682 = vrot.slane %v4674, %v4681
  %v4684 = vunpack.c.l.s4 1966171168
  %v4685 = vunpack.c.0.s8 %v4684
  %v4686 = vlaneseq
  %v4687 = vshrl.u32 %v4686, 7
  %v4688 = vsub.s32 %v4685, %v4687
  %v4689 = vrot.slane %v4675, %v4688
  %v4690 = vcombine.low %v4682, %v4689
  %v4691 = vcombine.low %v2699, %v2703
  %v4692 = vcombine.low %v2707, %v2711
  %v4693 = vcombine.low %v2715, %v2719
  %v4694 = vcombine.low %v2723, %v2727
  %v4696 = vunpack.c.l.s4 1966171168
  %v4697 = vunpack.c.0.s8 %v4696
  %v4698 = vlaneseq
  %v4699 = vshrl.u32 %v4698, 7
  %v4700 = vsub.s32 %v4697, %v4699
  %v4701 = vrot.slane %v4691, %v4700
  %v4703 = vunpack.c.l.s4 1966171168
  %v4704 = vunpack.c.0.s8 %v4703
  %v4705 = vlaneseq
  %v4706 = vshrl.u32 %v4705, 7
  %v4707 = vsub.s32 %v4704, %v4706
  %v4708 = vrot.slane %v4692, %v4707
  %v4710 = vunpack.c.l.s4 1966171168
  %v4711 = vunpack.c.0.s8 %v4710
  %v4712 = vlaneseq
  %v4713 = vshrl.u32 %v4712, 7
  %v4714 = vsub.s32 %v4711, %v4713
  %v4715 = vrot.slane %v4693, %v4714
  %v4717 = vunpack.c.l.s4 1966171168
  %v4718 = vunpack.c.0.s8 %v4717
  %v4719 = vlaneseq
  %v4720 = vshrl.u32 %v4719, 7
  %v4721 = vsub.s32 %v4718, %v4720
  %v4722 = vrot.slane %v4694, %v4721
  %v4723 = vcombine.low %v4701, %v4708
  %v4724 = vcombine.low %v4715, %v4722
  %v4726 = vunpack.c.l.s4 1966171168
  %v4727 = vunpack.c.0.s8 %v4726
  %v4728 = vlaneseq
  %v4729 = vshrl.u32 %v4728, 7
  %v4730 = vsub.s32 %v4727, %v4729
  %v4731 = vrot.slane %v4723, %v4730
  %v4733 = vunpack.c.l.s4 1966171168
  %v4734 = vunpack.c.0.s8 %v4733
  %v4735 = vlaneseq
  %v4736 = vshrl.u32 %v4735, 7
  %v4737 = vsub.s32 %v4734, %v4736
  %v4738 = vrot.slane %v4724, %v4737
  %v4739 = vcombine.low %v4731, %v4738
  %v4740 = vcombine.low %v2731, %v2735
  %v4741 = vcombine.low %v2739, %v2743
  %v4742 = vcombine.low %v2747, %v2751
  %v4743 = vcombine.low %v2755, %v2759
  %v4745 = vunpack.c.l.s4 1966171168
  %v4746 = vunpack.c.0.s8 %v4745
  %v4747 = vlaneseq
  %v4748 = vshrl.u32 %v4747, 7
  %v4749 = vsub.s32 %v4746, %v4748
  %v4750 = vrot.slane %v4740, %v4749
  %v4752 = vunpack.c.l.s4 1966171168
  %v4753 = vunpack.c.0.s8 %v4752
  %v4754 = vlaneseq
  %v4755 = vshrl.u32 %v4754, 7
  %v4756 = vsub.s32 %v4753, %v4755
  %v4757 = vrot.slane %v4741, %v4756
  %v4759 = vunpack.c.l.s4 1966171168
  %v4760 = vunpack.c.0.s8 %v4759
  %v4761 = vlaneseq
  %v4762 = vshrl.u32 %v4761, 7
  %v4763 = vsub.s32 %v4760, %v4762
  %v4764 = vrot.slane %v4742, %v4763
  %v4766 = vunpack.c.l.s4 1966171168
  %v4767 = vunpack.c.0.s8 %v4766
  %v4768 = vlaneseq
  %v4769 = vshrl.u32 %v4768, 7
  %v4770 = vsub.s32 %v4767, %v4769
  %v4771 = vrot.slane %v4743, %v4770
  %v4772 = vcombine.low %v4750, %v4757
  %v4773 = vcombine.low %v4764, %v4771
  %v4775 = vunpack.c.l.s4 1966171168
  %v4776 = vunpack.c.0.s8 %v4775
  %v4777 = vlaneseq
  %v4778 = vshrl.u32 %v4777, 7
  %v4779 = vsub.s32 %v4776, %v4778
  %v4780 = vrot.slane %v4772, %v4779
  %v4782 = vunpack.c.l.s4 1966171168
  %v4783 = vunpack.c.0.s8 %v4782
  %v4784 = vlaneseq
  %v4785 = vshrl.u32 %v4784, 7
  %v4786 = vsub.s32 %v4783, %v4785
  %v4787 = vrot.slane %v4773, %v4786
  %v4788 = vcombine.low %v4780, %v4787
  %v4789 = vcombine.low %v2763, %v2767
  %v4790 = vcombine.low %v2771, %v2775
  %v4791 = vcombine.low %v2779, %v2783
  %v4792 = vcombine.low %v2787, %v2791
  %v4794 = vunpack.c.l.s4 1966171168
  %v4795 = vunpack.c.0.s8 %v4794
  %v4796 = vlaneseq
  %v4797 = vshrl.u32 %v4796, 7
  %v4798 = vsub.s32 %v4795, %v4797
  %v4799 = vrot.slane %v4789, %v4798
  %v4801 = vunpack.c.l.s4 1966171168
  %v4802 = vunpack.c.0.s8 %v4801
  %v4803 = vlaneseq
  %v4804 = vshrl.u32 %v4803, 7
  %v4805 = vsub.s32 %v4802, %v4804
  %v4806 = vrot.slane %v4790, %v4805
  %v4808 = vunpack.c.l.s4 1966171168
  %v4809 = vunpack.c.0.s8 %v4808
  %v4810 = vlaneseq
  %v4811 = vshrl.u32 %v4810, 7
  %v4812 = vsub.s32 %v4809, %v4811
  %v4813 = vrot.slane %v4791, %v4812
  %v4815 = vunpack.c.l.s4 1966171168
  %v4816 = vunpack.c.0.s8 %v4815
  %v4817 = vlaneseq
  %v4818 = vshrl.u32 %v4817, 7
  %v4819 = vsub.s32 %v4816, %v4818
  %v4820 = vrot.slane %v4792, %v4819
  %v4821 = vcombine.low %v4799, %v4806
  %v4822 = vcombine.low %v4813, %v4820
  %v4824 = vunpack.c.l.s4 1966171168
  %v4825 = vunpack.c.0.s8 %v4824
  %v4826 = vlaneseq
  %v4827 = vshrl.u32 %v4826, 7
  %v4828 = vsub.s32 %v4825, %v4827
  %v4829 = vrot.slane %v4821, %v4828
  %v4831 = vunpack.c.l.s4 1966171168
  %v4832 = vunpack.c.0.s8 %v4831
  %v4833 = vlaneseq
  %v4834 = vshrl.u32 %v4833, 7
  %v4835 = vsub.s32 %v4832, %v4834
  %v4836 = vrot.slane %v4822, %v4835
  %v4837 = vcombine.low %v4829, %v4836
  %v4838 = vcombine.low %v2795, %v2799
  %v4839 = vcombine.low %v2803, %v2807
  %v4840 = vcombine.low %v2811, %v2815
  %v4841 = vcombine.low %v2819, %v2823
  %v4843 = vunpack.c.l.s4 1966171168
  %v4844 = vunpack.c.0.s8 %v4843
  %v4845 = vlaneseq
  %v4846 = vshrl.u32 %v4845, 7
  %v4847 = vsub.s32 %v4844, %v4846
  %v4848 = vrot.slane %v4838, %v4847
  %v4850 = vunpack.c.l.s4 1966171168
  %v4851 = vunpack.c.0.s8 %v4850
  %v4852 = vlaneseq
  %v4853 = vshrl.u32 %v4852, 7
  %v4854 = vsub.s32 %v4851, %v4853
  %v4855 = vrot.slane %v4839, %v4854
  %v4857 = vunpack.c.l.s4 1966171168
  %v4858 = vunpack.c.0.s8 %v4857
  %v4859 = vlaneseq
  %v4860 = vshrl.u32 %v4859, 7
  %v4861 = vsub.s32 %v4858, %v4860
  %v4862 = vrot.slane %v4840, %v4861
  %v4864 = vunpack.c.l.s4 1966171168
  %v4865 = vunpack.c.0.s8 %v4864
  %v4866 = vlaneseq
  %v4867 = vshrl.u32 %v4866, 7
  %v4868 = vsub.s32 %v4865, %v4867
  %v4869 = vrot.slane %v4841, %v4868
  %v4870 = vcombine.low %v4848, %v4855
  %v4871 = vcombine.low %v4862, %v4869
  %v4873 = vunpack.c.l.s4 1966171168
  %v4874 = vunpack.c.0.s8 %v4873
  %v4875 = vlaneseq
  %v4876 = vshrl.u32 %v4875, 7
  %v4877 = vsub.s32 %v4874, %v4876
  %v4878 = vrot.slane %v4870, %v4877
  %v4880 = vunpack.c.l.s4 1966171168
  %v4881 = vunpack.c.0.s8 %v4880
  %v4882 = vlaneseq
  %v4883 = vshrl.u32 %v4882, 7
  %v4884 = vsub.s32 %v4881, %v4883
  %v4885 = vrot.slane %v4871, %v4884
  %v4886 = vcombine.low %v4878, %v4885
  %v4887 = vcombine.low %v2827, %v2831
  %v4888 = vcombine.low %v2835, %v2839
  %v4889 = vcombine.low %v2843, %v2847
  %v4890 = vcombine.low %v2851, %v2855
  %v4892 = vunpack.c.l.s4 1966171168
  %v4893 = vunpack.c.0.s8 %v4892
  %v4894 = vlaneseq
  %v4895 = vshrl.u32 %v4894, 7
  %v4896 = vsub.s32 %v4893, %v4895
  %v4897 = vrot.slane %v4887, %v4896
  %v4899 = vunpack.c.l.s4 1966171168
  %v4900 = vunpack.c.0.s8 %v4899
  %v4901 = vlaneseq
  %v4902 = vshrl.u32 %v4901, 7
  %v4903 = vsub.s32 %v4900, %v4902
  %v4904 = vrot.slane %v4888, %v4903
  %v4906 = vunpack.c.l.s4 1966171168
  %v4907 = vunpack.c.0.s8 %v4906
  %v4908 = vlaneseq
  %v4909 = vshrl.u32 %v4908, 7
  %v4910 = vsub.s32 %v4907, %v4909
  %v4911 = vrot.slane %v4889, %v4910
  %v4913 = vunpack.c.l.s4 1966171168
  %v4914 = vunpack.c.0.s8 %v4913
  %v4915 = vlaneseq
  %v4916 = vshrl.u32 %v4915, 7
  %v4917 = vsub.s32 %v4914, %v4916
  %v4918 = vrot.slane %v4890, %v4917
  %v4919 = vcombine.low %v4897, %v4904
  %v4920 = vcombine.low %v4911, %v4918
  %v4922 = vunpack.c.l.s4 1966171168
  %v4923 = vunpack.c.0.s8 %v4922
  %v4924 = vlaneseq
  %v4925 = vshrl.u32 %v4924, 7
  %v4926 = vsub.s32 %v4923, %v4925
  %v4927 = vrot.slane %v4919, %v4926
  %v4929 = vunpack.c.l.s4 1966171168
  %v4930 = vunpack.c.0.s8 %v4929
  %v4931 = vlaneseq
  %v4932 = vshrl.u32 %v4931, 7
  %v4933 = vsub.s32 %v4930, %v4932
  %v4934 = vrot.slane %v4920, %v4933
  %v4935 = vcombine.low %v4927, %v4934
  %v4936 = vcombine.low %v2859, %v2863
  %v4937 = vcombine.low %v2867, %v2871
  %v4938 = vcombine.low %v2875, %v2879
  %v4939 = vcombine.low %v2883, %v2887
  %v4941 = vunpack.c.l.s4 1966171168
  %v4942 = vunpack.c.0.s8 %v4941
  %v4943 = vlaneseq
  %v4944 = vshrl.u32 %v4943, 7
  %v4945 = vsub.s32 %v4942, %v4944
  %v4946 = vrot.slane %v4936, %v4945
  %v4948 = vunpack.c.l.s4 1966171168
  %v4949 = vunpack.c.0.s8 %v4948
  %v4950 = vlaneseq
  %v4951 = vshrl.u32 %v4950, 7
  %v4952 = vsub.s32 %v4949, %v4951
  %v4953 = vrot.slane %v4937, %v4952
  %v4955 = vunpack.c.l.s4 1966171168
  %v4956 = vunpack.c.0.s8 %v4955
  %v4957 = vlaneseq
  %v4958 = vshrl.u32 %v4957, 7
  %v4959 = vsub.s32 %v4956, %v4958
  %v4960 = vrot.slane %v4938, %v4959
  %v4962 = vunpack.c.l.s4 1966171168
  %v4963 = vunpack.c.0.s8 %v4962
  %v4964 = vlaneseq
  %v4965 = vshrl.u32 %v4964, 7
  %v4966 = vsub.s32 %v4963, %v4965
  %v4967 = vrot.slane %v4939, %v4966
  %v4968 = vcombine.low %v4946, %v4953
  %v4969 = vcombine.low %v4960, %v4967
  %v4971 = vunpack.c.l.s4 1966171168
  %v4972 = vunpack.c.0.s8 %v4971
  %v4973 = vlaneseq
  %v4974 = vshrl.u32 %v4973, 7
  %v4975 = vsub.s32 %v4972, %v4974
  %v4976 = vrot.slane %v4968, %v4975
  %v4978 = vunpack.c.l.s4 1966171168
  %v4979 = vunpack.c.0.s8 %v4978
  %v4980 = vlaneseq
  %v4981 = vshrl.u32 %v4980, 7
  %v4982 = vsub.s32 %v4979, %v4981
  %v4983 = vrot.slane %v4969, %v4982
  %v4984 = vcombine.low %v4976, %v4983
  %v4985 = vcombine.low %v2891, %v2895
  %v4986 = vcombine.low %v2899, %v2903
  %v4987 = vcombine.low %v2907, %v2911
  %v4988 = vcombine.low %v2915, %v2919
  %v4990 = vunpack.c.l.s4 1966171168
  %v4991 = vunpack.c.0.s8 %v4990
  %v4992 = vlaneseq
  %v4993 = vshrl.u32 %v4992, 7
  %v4994 = vsub.s32 %v4991, %v4993
  %v4995 = vrot.slane %v4985, %v4994
  %v4997 = vunpack.c.l.s4 1966171168
  %v4998 = vunpack.c.0.s8 %v4997
  %v4999 = vlaneseq
  %v5000 = vshrl.u32 %v4999, 7
  %v5001 = vsub.s32 %v4998, %v5000
  %v5002 = vrot.slane %v4986, %v5001
  %v5004 = vunpack.c.l.s4 1966171168
  %v5005 = vunpack.c.0.s8 %v5004
  %v5006 = vlaneseq
  %v5007 = vshrl.u32 %v5006, 7
  %v5008 = vsub.s32 %v5005, %v5007
  %v5009 = vrot.slane %v4987, %v5008
  %v5011 = vunpack.c.l.s4 1966171168
  %v5012 = vunpack.c.0.s8 %v5011
  %v5013 = vlaneseq
  %v5014 = vshrl.u32 %v5013, 7
  %v5015 = vsub.s32 %v5012, %v5014
  %v5016 = vrot.slane %v4988, %v5015
  %v5017 = vcombine.low %v4995, %v5002
  %v5018 = vcombine.low %v5009, %v5016
  %v5020 = vunpack.c.l.s4 1966171168
  %v5021 = vunpack.c.0.s8 %v5020
  %v5022 = vlaneseq
  %v5023 = vshrl.u32 %v5022, 7
  %v5024 = vsub.s32 %v5021, %v5023
  %v5025 = vrot.slane %v5017, %v5024
  %v5027 = vunpack.c.l.s4 1966171168
  %v5028 = vunpack.c.0.s8 %v5027
  %v5029 = vlaneseq
  %v5030 = vshrl.u32 %v5029, 7
  %v5031 = vsub.s32 %v5028, %v5030
  %v5032 = vrot.slane %v5018, %v5031
  %v5033 = vcombine.low %v5025, %v5032
  %v5034 = vcombine.low %v2923, %v2927
  %v5035 = vcombine.low %v2931, %v2935
  %v5036 = vcombine.low %v2939, %v2943
  %v5037 = vcombine.low %v2947, %v2951
  %v5039 = vunpack.c.l.s4 1966171168
  %v5040 = vunpack.c.0.s8 %v5039
  %v5041 = vlaneseq
  %v5042 = vshrl.u32 %v5041, 7
  %v5043 = vsub.s32 %v5040, %v5042
  %v5044 = vrot.slane %v5034, %v5043
  %v5046 = vunpack.c.l.s4 1966171168
  %v5047 = vunpack.c.0.s8 %v5046
  %v5048 = vlaneseq
  %v5049 = vshrl.u32 %v5048, 7
  %v5050 = vsub.s32 %v5047, %v5049
  %v5051 = vrot.slane %v5035, %v5050
  %v5053 = vunpack.c.l.s4 1966171168
  %v5054 = vunpack.c.0.s8 %v5053
  %v5055 = vlaneseq
  %v5056 = vshrl.u32 %v5055, 7
  %v5057 = vsub.s32 %v5054, %v5056
  %v5058 = vrot.slane %v5036, %v5057
  %v5060 = vunpack.c.l.s4 1966171168
  %v5061 = vunpack.c.0.s8 %v5060
  %v5062 = vlaneseq
  %v5063 = vshrl.u32 %v5062, 7
  %v5064 = vsub.s32 %v5061, %v5063
  %v5065 = vrot.slane %v5037, %v5064
  %v5066 = vcombine.low %v5044, %v5051
  %v5067 = vcombine.low %v5058, %v5065
  %v5069 = vunpack.c.l.s4 1966171168
  %v5070 = vunpack.c.0.s8 %v5069
  %v5071 = vlaneseq
  %v5072 = vshrl.u32 %v5071, 7
  %v5073 = vsub.s32 %v5070, %v5072
  %v5074 = vrot.slane %v5066, %v5073
  %v5076 = vunpack.c.l.s4 1966171168
  %v5077 = vunpack.c.0.s8 %v5076
  %v5078 = vlaneseq
  %v5079 = vshrl.u32 %v5078, 7
  %v5080 = vsub.s32 %v5077, %v5079
  %v5081 = vrot.slane %v5067, %v5080
  %v5082 = vcombine.low %v5074, %v5081
  %v5083 = vcombine.low %v2955, %v2959
  %v5084 = vcombine.low %v2963, %v2967
  %v5085 = vcombine.low %v2971, %v2975
  %v5086 = vcombine.low %v2979, %v2983
  %v5088 = vunpack.c.l.s4 1966171168
  %v5089 = vunpack.c.0.s8 %v5088
  %v5090 = vlaneseq
  %v5091 = vshrl.u32 %v5090, 7
  %v5092 = vsub.s32 %v5089, %v5091
  %v5093 = vrot.slane %v5083, %v5092
  %v5095 = vunpack.c.l.s4 1966171168
  %v5096 = vunpack.c.0.s8 %v5095
  %v5097 = vlaneseq
  %v5098 = vshrl.u32 %v5097, 7
  %v5099 = vsub.s32 %v5096, %v5098
  %v5100 = vrot.slane %v5084, %v5099
  %v5102 = vunpack.c.l.s4 1966171168
  %v5103 = vunpack.c.0.s8 %v5102
  %v5104 = vlaneseq
  %v5105 = vshrl.u32 %v5104, 7
  %v5106 = vsub.s32 %v5103, %v5105
  %v5107 = vrot.slane %v5085, %v5106
  %v5109 = vunpack.c.l.s4 1966171168
  %v5110 = vunpack.c.0.s8 %v5109
  %v5111 = vlaneseq
  %v5112 = vshrl.u32 %v5111, 7
  %v5113 = vsub.s32 %v5110, %v5112
  %v5114 = vrot.slane %v5086, %v5113
  %v5115 = vcombine.low %v5093, %v5100
  %v5116 = vcombine.low %v5107, %v5114
  %v5118 = vunpack.c.l.s4 1966171168
  %v5119 = vunpack.c.0.s8 %v5118
  %v5120 = vlaneseq
  %v5121 = vshrl.u32 %v5120, 7
  %v5122 = vsub.s32 %v5119, %v5121
  %v5123 = vrot.slane %v5115, %v5122
  %v5125 = vunpack.c.l.s4 1966171168
  %v5126 = vunpack.c.0.s8 %v5125
  %v5127 = vlaneseq
  %v5128 = vshrl.u32 %v5127, 7
  %v5129 = vsub.s32 %v5126, %v5128
  %v5130 = vrot.slane %v5116, %v5129
  %v5131 = vcombine.low %v5123, %v5130
  %v5132 = vcombine.low %v2987, %v2991
  %v5133 = vcombine.low %v2995, %v2999
  %v5134 = vcombine.low %v3003, %v3007
  %v5135 = vcombine.low %v3011, %v3015
  %v5137 = vunpack.c.l.s4 1966171168
  %v5138 = vunpack.c.0.s8 %v5137
  %v5139 = vlaneseq
  %v5140 = vshrl.u32 %v5139, 7
  %v5141 = vsub.s32 %v5138, %v5140
  %v5142 = vrot.slane %v5132, %v5141
  %v5144 = vunpack.c.l.s4 1966171168
  %v5145 = vunpack.c.0.s8 %v5144
  %v5146 = vlaneseq
  %v5147 = vshrl.u32 %v5146, 7
  %v5148 = vsub.s32 %v5145, %v5147
  %v5149 = vrot.slane %v5133, %v5148
  %v5151 = vunpack.c.l.s4 1966171168
  %v5152 = vunpack.c.0.s8 %v5151
  %v5153 = vlaneseq
  %v5154 = vshrl.u32 %v5153, 7
  %v5155 = vsub.s32 %v5152, %v5154
  %v5156 = vrot.slane %v5134, %v5155
  %v5158 = vunpack.c.l.s4 1966171168
  %v5159 = vunpack.c.0.s8 %v5158
  %v5160 = vlaneseq
  %v5161 = vshrl.u32 %v5160, 7
  %v5162 = vsub.s32 %v5159, %v5161
  %v5163 = vrot.slane %v5135, %v5162
  %v5164 = vcombine.low %v5142, %v5149
  %v5165 = vcombine.low %v5156, %v5163
  %v5167 = vunpack.c.l.s4 1966171168
  %v5168 = vunpack.c.0.s8 %v5167
  %v5169 = vlaneseq
  %v5170 = vshrl.u32 %v5169, 7
  %v5171 = vsub.s32 %v5168, %v5170
  %v5172 = vrot.slane %v5164, %v5171
  %v5174 = vunpack.c.l.s4 1966171168
  %v5175 = vunpack.c.0.s8 %v5174
  %v5176 = vlaneseq
  %v5177 = vshrl.u32 %v5176, 7
  %v5178 = vsub.s32 %v5175, %v5177
  %v5179 = vrot.slane %v5165, %v5178
  %v5180 = vcombine.low %v5172, %v5179
  %v5181 = vcombine.low %v3019, %v3023
  %v5182 = vcombine.low %v3027, %v3031
  %v5183 = vcombine.low %v3035, %v3039
  %v5184 = vcombine.low %v3043, %v3047
  %v5186 = vunpack.c.l.s4 1966171168
  %v5187 = vunpack.c.0.s8 %v5186
  %v5188 = vlaneseq
  %v5189 = vshrl.u32 %v5188, 7
  %v5190 = vsub.s32 %v5187, %v5189
  %v5191 = vrot.slane %v5181, %v5190
  %v5193 = vunpack.c.l.s4 1966171168
  %v5194 = vunpack.c.0.s8 %v5193
  %v5195 = vlaneseq
  %v5196 = vshrl.u32 %v5195, 7
  %v5197 = vsub.s32 %v5194, %v5196
  %v5198 = vrot.slane %v5182, %v5197
  %v5200 = vunpack.c.l.s4 1966171168
  %v5201 = vunpack.c.0.s8 %v5200
  %v5202 = vlaneseq
  %v5203 = vshrl.u32 %v5202, 7
  %v5204 = vsub.s32 %v5201, %v5203
  %v5205 = vrot.slane %v5183, %v5204
  %v5207 = vunpack.c.l.s4 1966171168
  %v5208 = vunpack.c.0.s8 %v5207
  %v5209 = vlaneseq
  %v5210 = vshrl.u32 %v5209, 7
  %v5211 = vsub.s32 %v5208, %v5210
  %v5212 = vrot.slane %v5184, %v5211
  %v5213 = vcombine.low %v5191, %v5198
  %v5214 = vcombine.low %v5205, %v5212
  %v5216 = vunpack.c.l.s4 1966171168
  %v5217 = vunpack.c.0.s8 %v5216
  %v5218 = vlaneseq
  %v5219 = vshrl.u32 %v5218, 7
  %v5220 = vsub.s32 %v5217, %v5219
  %v5221 = vrot.slane %v5213, %v5220
  %v5223 = vunpack.c.l.s4 1966171168
  %v5224 = vunpack.c.0.s8 %v5223
  %v5225 = vlaneseq
  %v5226 = vshrl.u32 %v5225, 7
  %v5227 = vsub.s32 %v5224, %v5226
  %v5228 = vrot.slane %v5214, %v5227
  %v5229 = vcombine.low %v5221, %v5228
  %v5230 = vcombine.low %v3051, %v3055
  %v5231 = vcombine.low %v3059, %v3063
  %v5232 = vcombine.low %v3067, %v3071
  %v5233 = vcombine.low %v3075, %v3079
  %v5235 = vunpack.c.l.s4 1966171168
  %v5236 = vunpack.c.0.s8 %v5235
  %v5237 = vlaneseq
  %v5238 = vshrl.u32 %v5237, 7
  %v5239 = vsub.s32 %v5236, %v5238
  %v5240 = vrot.slane %v5230, %v5239
  %v5242 = vunpack.c.l.s4 1966171168
  %v5243 = vunpack.c.0.s8 %v5242
  %v5244 = vlaneseq
  %v5245 = vshrl.u32 %v5244, 7
  %v5246 = vsub.s32 %v5243, %v5245
  %v5247 = vrot.slane %v5231, %v5246
  %v5249 = vunpack.c.l.s4 1966171168
  %v5250 = vunpack.c.0.s8 %v5249
  %v5251 = vlaneseq
  %v5252 = vshrl.u32 %v5251, 7
  %v5253 = vsub.s32 %v5250, %v5252
  %v5254 = vrot.slane %v5232, %v5253
  %v5256 = vunpack.c.l.s4 1966171168
  %v5257 = vunpack.c.0.s8 %v5256
  %v5258 = vlaneseq
  %v5259 = vshrl.u32 %v5258, 7
  %v5260 = vsub.s32 %v5257, %v5259
  %v5261 = vrot.slane %v5233, %v5260
  %v5262 = vcombine.low %v5240, %v5247
  %v5263 = vcombine.low %v5254, %v5261
  %v5265 = vunpack.c.l.s4 1966171168
  %v5266 = vunpack.c.0.s8 %v5265
  %v5267 = vlaneseq
  %v5268 = vshrl.u32 %v5267, 7
  %v5269 = vsub.s32 %v5266, %v5268
  %v5270 = vrot.slane %v5262, %v5269
  %v5272 = vunpack.c.l.s4 1966171168
  %v5273 = vunpack.c.0.s8 %v5272
  %v5274 = vlaneseq
  %v5275 = vshrl.u32 %v5274, 7
  %v5276 = vsub.s32 %v5273, %v5275
  %v5277 = vrot.slane %v5263, %v5276
  %v5278 = vcombine.low %v5270, %v5277
  %v5279 = vcombine.low %v3083, %v3087
  %v5280 = vcombine.low %v3091, %v3095
  %v5281 = vcombine.low %v3099, %v3103
  %v5282 = vcombine.low %v3107, %v3111
  %v5284 = vunpack.c.l.s4 1966171168
  %v5285 = vunpack.c.0.s8 %v5284
  %v5286 = vlaneseq
  %v5287 = vshrl.u32 %v5286, 7
  %v5288 = vsub.s32 %v5285, %v5287
  %v5289 = vrot.slane %v5279, %v5288
  %v5291 = vunpack.c.l.s4 1966171168
  %v5292 = vunpack.c.0.s8 %v5291
  %v5293 = vlaneseq
  %v5294 = vshrl.u32 %v5293, 7
  %v5295 = vsub.s32 %v5292, %v5294
  %v5296 = vrot.slane %v5280, %v5295
  %v5298 = vunpack.c.l.s4 1966171168
  %v5299 = vunpack.c.0.s8 %v5298
  %v5300 = vlaneseq
  %v5301 = vshrl.u32 %v5300, 7
  %v5302 = vsub.s32 %v5299, %v5301
  %v5303 = vrot.slane %v5281, %v5302
  %v5305 = vunpack.c.l.s4 1966171168
  %v5306 = vunpack.c.0.s8 %v5305
  %v5307 = vlaneseq
  %v5308 = vshrl.u32 %v5307, 7
  %v5309 = vsub.s32 %v5306, %v5308
  %v5310 = vrot.slane %v5282, %v5309
  %v5311 = vcombine.low %v5289, %v5296
  %v5312 = vcombine.low %v5303, %v5310
  %v5314 = vunpack.c.l.s4 1966171168
  %v5315 = vunpack.c.0.s8 %v5314
  %v5316 = vlaneseq
  %v5317 = vshrl.u32 %v5316, 7
  %v5318 = vsub.s32 %v5315, %v5317
  %v5319 = vrot.slane %v5311, %v5318
  %v5321 = vunpack.c.l.s4 1966171168
  %v5322 = vunpack.c.0.s8 %v5321
  %v5323 = vlaneseq
  %v5324 = vshrl.u32 %v5323, 7
  %v5325 = vsub.s32 %v5322, %v5324
  %v5326 = vrot.slane %v5312, %v5325
  %v5327 = vcombine.low %v5319, %v5326
  %v5328 = vcombine.low %v3115, %v3119
  %v5329 = vcombine.low %v3123, %v3127
  %v5330 = vcombine.low %v3131, %v3135
  %v5331 = vcombine.low %v3139, %v3143
  %v5333 = vunpack.c.l.s4 1966171168
  %v5334 = vunpack.c.0.s8 %v5333
  %v5335 = vlaneseq
  %v5336 = vshrl.u32 %v5335, 7
  %v5337 = vsub.s32 %v5334, %v5336
  %v5338 = vrot.slane %v5328, %v5337
  %v5340 = vunpack.c.l.s4 1966171168
  %v5341 = vunpack.c.0.s8 %v5340
  %v5342 = vlaneseq
  %v5343 = vshrl.u32 %v5342, 7
  %v5344 = vsub.s32 %v5341, %v5343
  %v5345 = vrot.slane %v5329, %v5344
  %v5347 = vunpack.c.l.s4 1966171168
  %v5348 = vunpack.c.0.s8 %v5347
  %v5349 = vlaneseq
  %v5350 = vshrl.u32 %v5349, 7
  %v5351 = vsub.s32 %v5348, %v5350
  %v5352 = vrot.slane %v5330, %v5351
  %v5354 = vunpack.c.l.s4 1966171168
  %v5355 = vunpack.c.0.s8 %v5354
  %v5356 = vlaneseq
  %v5357 = vshrl.u32 %v5356, 7
  %v5358 = vsub.s32 %v5355, %v5357
  %v5359 = vrot.slane %v5331, %v5358
  %v5360 = vcombine.low %v5338, %v5345
  %v5361 = vcombine.low %v5352, %v5359
  %v5363 = vunpack.c.l.s4 1966171168
  %v5364 = vunpack.c.0.s8 %v5363
  %v5365 = vlaneseq
  %v5366 = vshrl.u32 %v5365, 7
  %v5367 = vsub.s32 %v5364, %v5366
  %v5368 = vrot.slane %v5360, %v5367
  %v5370 = vunpack.c.l.s4 1966171168
  %v5371 = vunpack.c.0.s8 %v5370
  %v5372 = vlaneseq
  %v5373 = vshrl.u32 %v5372, 7
  %v5374 = vsub.s32 %v5371, %v5373
  %v5375 = vrot.slane %v5361, %v5374
  %v5376 = vcombine.low %v5368, %v5375
  %v5377 = vcombine.low %v3147, %v3151
  %v5378 = vcombine.low %v3155, %v3159
  %v5379 = vcombine.low %v3163, %v3167
  %v5380 = vcombine.low %v3171, %v3175
  %v5382 = vunpack.c.l.s4 1966171168
  %v5383 = vunpack.c.0.s8 %v5382
  %v5384 = vlaneseq
  %v5385 = vshrl.u32 %v5384, 7
  %v5386 = vsub.s32 %v5383, %v5385
  %v5387 = vrot.slane %v5377, %v5386
  %v5389 = vunpack.c.l.s4 1966171168
  %v5390 = vunpack.c.0.s8 %v5389
  %v5391 = vlaneseq
  %v5392 = vshrl.u32 %v5391, 7
  %v5393 = vsub.s32 %v5390, %v5392
  %v5394 = vrot.slane %v5378, %v5393
  %v5396 = vunpack.c.l.s4 1966171168
  %v5397 = vunpack.c.0.s8 %v5396
  %v5398 = vlaneseq
  %v5399 = vshrl.u32 %v5398, 7
  %v5400 = vsub.s32 %v5397, %v5399
  %v5401 = vrot.slane %v5379, %v5400
  %v5403 = vunpack.c.l.s4 1966171168
  %v5404 = vunpack.c.0.s8 %v5403
  %v5405 = vlaneseq
  %v5406 = vshrl.u32 %v5405, 7
  %v5407 = vsub.s32 %v5404, %v5406
  %v5408 = vrot.slane %v5380, %v5407
  %v5409 = vcombine.low %v5387, %v5394
  %v5410 = vcombine.low %v5401, %v5408
  %v5412 = vunpack.c.l.s4 1966171168
  %v5413 = vunpack.c.0.s8 %v5412
  %v5414 = vlaneseq
  %v5415 = vshrl.u32 %v5414, 7
  %v5416 = vsub.s32 %v5413, %v5415
  %v5417 = vrot.slane %v5409, %v5416
  %v5419 = vunpack.c.l.s4 1966171168
  %v5420 = vunpack.c.0.s8 %v5419
  %v5421 = vlaneseq
  %v5422 = vshrl.u32 %v5421, 7
  %v5423 = vsub.s32 %v5420, %v5422
  %v5424 = vrot.slane %v5410, %v5423
  %v5425 = vcombine.low %v5417, %v5424
  %v5426 = vcombine.low %v3179, %v3183
  %v5427 = vcombine.low %v3187, %v3191
  %v5428 = vcombine.low %v3195, %v3199
  %v5429 = vcombine.low %v3203, %v3207
  %v5431 = vunpack.c.l.s4 1966171168
  %v5432 = vunpack.c.0.s8 %v5431
  %v5433 = vlaneseq
  %v5434 = vshrl.u32 %v5433, 7
  %v5435 = vsub.s32 %v5432, %v5434
  %v5436 = vrot.slane %v5426, %v5435
  %v5438 = vunpack.c.l.s4 1966171168
  %v5439 = vunpack.c.0.s8 %v5438
  %v5440 = vlaneseq
  %v5441 = vshrl.u32 %v5440, 7
  %v5442 = vsub.s32 %v5439, %v5441
  %v5443 = vrot.slane %v5427, %v5442
  %v5445 = vunpack.c.l.s4 1966171168
  %v5446 = vunpack.c.0.s8 %v5445
  %v5447 = vlaneseq
  %v5448 = vshrl.u32 %v5447, 7
  %v5449 = vsub.s32 %v5446, %v5448
  %v5450 = vrot.slane %v5428, %v5449
  %v5452 = vunpack.c.l.s4 1966171168
  %v5453 = vunpack.c.0.s8 %v5452
  %v5454 = vlaneseq
  %v5455 = vshrl.u32 %v5454, 7
  %v5456 = vsub.s32 %v5453, %v5455
  %v5457 = vrot.slane %v5429, %v5456
  %v5458 = vcombine.low %v5436, %v5443
  %v5459 = vcombine.low %v5450, %v5457
  %v5461 = vunpack.c.l.s4 1966171168
  %v5462 = vunpack.c.0.s8 %v5461
  %v5463 = vlaneseq
  %v5464 = vshrl.u32 %v5463, 7
  %v5465 = vsub.s32 %v5462, %v5464
  %v5466 = vrot.slane %v5458, %v5465
  %v5468 = vunpack.c.l.s4 1966171168
  %v5469 = vunpack.c.0.s8 %v5468
  %v5470 = vlaneseq
  %v5471 = vshrl.u32 %v5470, 7
  %v5472 = vsub.s32 %v5469, %v5471
  %v5473 = vrot.slane %v5459, %v5472
  %v5474 = vcombine.low %v5466, %v5473
  %v5475 = vcombine.low %v3211, %v3215
  %v5476 = vcombine.low %v3219, %v3223
  %v5477 = vcombine.low %v3227, %v3231
  %v5478 = vcombine.low %v3235, %v3239
  %v5480 = vunpack.c.l.s4 1966171168
  %v5481 = vunpack.c.0.s8 %v5480
  %v5482 = vlaneseq
  %v5483 = vshrl.u32 %v5482, 7
  %v5484 = vsub.s32 %v5481, %v5483
  %v5485 = vrot.slane %v5475, %v5484
  %v5487 = vunpack.c.l.s4 1966171168
  %v5488 = vunpack.c.0.s8 %v5487
  %v5489 = vlaneseq
  %v5490 = vshrl.u32 %v5489, 7
  %v5491 = vsub.s32 %v5488, %v5490
  %v5492 = vrot.slane %v5476, %v5491
  %v5494 = vunpack.c.l.s4 1966171168
  %v5495 = vunpack.c.0.s8 %v5494
  %v5496 = vlaneseq
  %v5497 = vshrl.u32 %v5496, 7
  %v5498 = vsub.s32 %v5495, %v5497
  %v5499 = vrot.slane %v5477, %v5498
  %v5501 = vunpack.c.l.s4 1966171168
  %v5502 = vunpack.c.0.s8 %v5501
  %v5503 = vlaneseq
  %v5504 = vshrl.u32 %v5503, 7
  %v5505 = vsub.s32 %v5502, %v5504
  %v5506 = vrot.slane %v5478, %v5505
  %v5507 = vcombine.low %v5485, %v5492
  %v5508 = vcombine.low %v5499, %v5506
  %v5510 = vunpack.c.l.s4 1966171168
  %v5511 = vunpack.c.0.s8 %v5510
  %v5512 = vlaneseq
  %v5513 = vshrl.u32 %v5512, 7
  %v5514 = vsub.s32 %v5511, %v5513
  %v5515 = vrot.slane %v5507, %v5514
  %v5517 = vunpack.c.l.s4 1966171168
  %v5518 = vunpack.c.0.s8 %v5517
  %v5519 = vlaneseq
  %v5520 = vshrl.u32 %v5519, 7
  %v5521 = vsub.s32 %v5518, %v5520
  %v5522 = vrot.slane %v5508, %v5521
  %v5523 = vcombine.low %v5515, %v5522
  %v5524 = vcombine.low %v3243, %v3247
  %v5525 = vcombine.low %v3251, %v3255
  %v5526 = vcombine.low %v3259, %v3263
  %v5527 = vcombine.low %v3267, %v3271
  %v5529 = vunpack.c.l.s4 1966171168
  %v5530 = vunpack.c.0.s8 %v5529
  %v5531 = vlaneseq
  %v5532 = vshrl.u32 %v5531, 7
  %v5533 = vsub.s32 %v5530, %v5532
  %v5534 = vrot.slane %v5524, %v5533
  %v5536 = vunpack.c.l.s4 1966171168
  %v5537 = vunpack.c.0.s8 %v5536
  %v5538 = vlaneseq
  %v5539 = vshrl.u32 %v5538, 7
  %v5540 = vsub.s32 %v5537, %v5539
  %v5541 = vrot.slane %v5525, %v5540
  %v5543 = vunpack.c.l.s4 1966171168
  %v5544 = vunpack.c.0.s8 %v5543
  %v5545 = vlaneseq
  %v5546 = vshrl.u32 %v5545, 7
  %v5547 = vsub.s32 %v5544, %v5546
  %v5548 = vrot.slane %v5526, %v5547
  %v5550 = vunpack.c.l.s4 1966171168
  %v5551 = vunpack.c.0.s8 %v5550
  %v5552 = vlaneseq
  %v5553 = vshrl.u32 %v5552, 7
  %v5554 = vsub.s32 %v5551, %v5553
  %v5555 = vrot.slane %v5527, %v5554
  %v5556 = vcombine.low %v5534, %v5541
  %v5557 = vcombine.low %v5548, %v5555
  %v5559 = vunpack.c.l.s4 1966171168
  %v5560 = vunpack.c.0.s8 %v5559
  %v5561 = vlaneseq
  %v5562 = vshrl.u32 %v5561, 7
  %v5563 = vsub.s32 %v5560, %v5562
  %v5564 = vrot.slane %v5556, %v5563
  %v5566 = vunpack.c.l.s4 1966171168
  %v5567 = vunpack.c.0.s8 %v5566
  %v5568 = vlaneseq
  %v5569 = vshrl.u32 %v5568, 7
  %v5570 = vsub.s32 %v5567, %v5569
  %v5571 = vrot.slane %v5557, %v5570
  %v5572 = vcombine.low %v5564, %v5571
  %v5573 = vcombine.low %v3275, %v3279
  %v5574 = vcombine.low %v3283, %v3287
  %v5575 = vcombine.low %v3291, %v3295
  %v5576 = vcombine.low %v3299, %v3303
  %v5578 = vunpack.c.l.s4 1966171168
  %v5579 = vunpack.c.0.s8 %v5578
  %v5580 = vlaneseq
  %v5581 = vshrl.u32 %v5580, 7
  %v5582 = vsub.s32 %v5579, %v5581
  %v5583 = vrot.slane %v5573, %v5582
  %v5585 = vunpack.c.l.s4 1966171168
  %v5586 = vunpack.c.0.s8 %v5585
  %v5587 = vlaneseq
  %v5588 = vshrl.u32 %v5587, 7
  %v5589 = vsub.s32 %v5586, %v5588
  %v5590 = vrot.slane %v5574, %v5589
  %v5592 = vunpack.c.l.s4 1966171168
  %v5593 = vunpack.c.0.s8 %v5592
  %v5594 = vlaneseq
  %v5595 = vshrl.u32 %v5594, 7
  %v5596 = vsub.s32 %v5593, %v5595
  %v5597 = vrot.slane %v5575, %v5596
  %v5599 = vunpack.c.l.s4 1966171168
  %v5600 = vunpack.c.0.s8 %v5599
  %v5601 = vlaneseq
  %v5602 = vshrl.u32 %v5601, 7
  %v5603 = vsub.s32 %v5600, %v5602
  %v5604 = vrot.slane %v5576, %v5603
  %v5605 = vcombine.low %v5583, %v5590
  %v5606 = vcombine.low %v5597, %v5604
  %v5608 = vunpack.c.l.s4 1966171168
  %v5609 = vunpack.c.0.s8 %v5608
  %v5610 = vlaneseq
  %v5611 = vshrl.u32 %v5610, 7
  %v5612 = vsub.s32 %v5609, %v5611
  %v5613 = vrot.slane %v5605, %v5612
  %v5615 = vunpack.c.l.s4 1966171168
  %v5616 = vunpack.c.0.s8 %v5615
  %v5617 = vlaneseq
  %v5618 = vshrl.u32 %v5617, 7
  %v5619 = vsub.s32 %v5616, %v5618
  %v5620 = vrot.slane %v5606, %v5619
  %v5621 = vcombine.low %v5613, %v5620
  %v5622 = vcombine.low %v3307, %v3311
  %v5623 = vcombine.low %v3315, %v3319
  %v5624 = vcombine.low %v3323, %v3327
  %v5625 = vcombine.low %v3331, %v3335
  %v5627 = vunpack.c.l.s4 1966171168
  %v5628 = vunpack.c.0.s8 %v5627
  %v5629 = vlaneseq
  %v5630 = vshrl.u32 %v5629, 7
  %v5631 = vsub.s32 %v5628, %v5630
  %v5632 = vrot.slane %v5622, %v5631
  %v5634 = vunpack.c.l.s4 1966171168
  %v5635 = vunpack.c.0.s8 %v5634
  %v5636 = vlaneseq
  %v5637 = vshrl.u32 %v5636, 7
  %v5638 = vsub.s32 %v5635, %v5637
  %v5639 = vrot.slane %v5623, %v5638
  %v5641 = vunpack.c.l.s4 1966171168
  %v5642 = vunpack.c.0.s8 %v5641
  %v5643 = vlaneseq
  %v5644 = vshrl.u32 %v5643, 7
  %v5645 = vsub.s32 %v5642, %v5644
  %v5646 = vrot.slane %v5624, %v5645
  %v5648 = vunpack.c.l.s4 1966171168
  %v5649 = vunpack.c.0.s8 %v5648
  %v5650 = vlaneseq
  %v5651 = vshrl.u32 %v5650, 7
  %v5652 = vsub.s32 %v5649, %v5651
  %v5653 = vrot.slane %v5625, %v5652
  %v5654 = vcombine.low %v5632, %v5639
  %v5655 = vcombine.low %v5646, %v5653
  %v5657 = vunpack.c.l.s4 1966171168
  %v5658 = vunpack.c.0.s8 %v5657
  %v5659 = vlaneseq
  %v5660 = vshrl.u32 %v5659, 7
  %v5661 = vsub.s32 %v5658, %v5660
  %v5662 = vrot.slane %v5654, %v5661
  %v5664 = vunpack.c.l.s4 1966171168
  %v5665 = vunpack.c.0.s8 %v5664
  %v5666 = vlaneseq
  %v5667 = vshrl.u32 %v5666, 7
  %v5668 = vsub.s32 %v5665, %v5667
  %v5669 = vrot.slane %v5655, %v5668
  %v5670 = vcombine.low %v5662, %v5669
  %v5671 = vcombine.low %v3339, %v3343
  %v5672 = vcombine.low %v3347, %v3351
  %v5673 = vcombine.low %v3355, %v3359
  %v5674 = vcombine.low %v3363, %v3367
  %v5676 = vunpack.c.l.s4 1966171168
  %v5677 = vunpack.c.0.s8 %v5676
  %v5678 = vlaneseq
  %v5679 = vshrl.u32 %v5678, 7
  %v5680 = vsub.s32 %v5677, %v5679
  %v5681 = vrot.slane %v5671, %v5680
  %v5683 = vunpack.c.l.s4 1966171168
  %v5684 = vunpack.c.0.s8 %v5683
  %v5685 = vlaneseq
  %v5686 = vshrl.u32 %v5685, 7
  %v5687 = vsub.s32 %v5684, %v5686
  %v5688 = vrot.slane %v5672, %v5687
  %v5690 = vunpack.c.l.s4 1966171168
  %v5691 = vunpack.c.0.s8 %v5690
  %v5692 = vlaneseq
  %v5693 = vshrl.u32 %v5692, 7
  %v5694 = vsub.s32 %v5691, %v5693
  %v5695 = vrot.slane %v5673, %v5694
  %v5697 = vunpack.c.l.s4 1966171168
  %v5698 = vunpack.c.0.s8 %v5697
  %v5699 = vlaneseq
  %v5700 = vshrl.u32 %v5699, 7
  %v5701 = vsub.s32 %v5698, %v5700
  %v5702 = vrot.slane %v5674, %v5701
  %v5703 = vcombine.low %v5681, %v5688
  %v5704 = vcombine.low %v5695, %v5702
  %v5706 = vunpack.c.l.s4 1966171168
  %v5707 = vunpack.c.0.s8 %v5706
  %v5708 = vlaneseq
  %v5709 = vshrl.u32 %v5708, 7
  %v5710 = vsub.s32 %v5707, %v5709
  %v5711 = vrot.slane %v5703, %v5710
  %v5713 = vunpack.c.l.s4 1966171168
  %v5714 = vunpack.c.0.s8 %v5713
  %v5715 = vlaneseq
  %v5716 = vshrl.u32 %v5715, 7
  %v5717 = vsub.s32 %v5714, %v5716
  %v5718 = vrot.slane %v5704, %v5717
  %v5719 = vcombine.low %v5711, %v5718
  %5720 = vset.pattern.permute.xlu0 0
  %5721 = vperm.xlu0 %5720, %v3416
  %v5722 = vpop.permute.xlu0 %5721
  %5723 = vset.pattern.permute.xlu0 0
  %5724 = vperm.xlu0 %5723, %v3465
  %v5725 = vpop.permute.xlu0 %5724
  %5726 = vset.pattern.permute.xlu0 0
  %5727 = vperm.xlu0 %5726, %v3514
  %v5728 = vpop.permute.xlu0 %5727
  %5729 = vset.pattern.permute.xlu0 0
  %5730 = vperm.xlu0 %5729, %v3563
  %v5731 = vpop.permute.xlu0 %5730
  %5732 = vset.pattern.permute.xlu0 0
  %5733 = vperm.xlu0 %5732, %v3612
  %v5734 = vpop.permute.xlu0 %5733
  %5735 = vset.pattern.permute.xlu0 0
  %5736 = vperm.xlu0 %5735, %v3661
  %v5737 = vpop.permute.xlu0 %5736
  %5738 = vset.pattern.permute.xlu0 0
  %5739 = vperm.xlu0 %5738, %v3710
  %v5740 = vpop.permute.xlu0 %5739
  %5741 = vset.pattern.permute.xlu0 0
  %5742 = vperm.xlu0 %5741, %v3759
  %v5743 = vpop.permute.xlu0 %5742
  %5744 = vset.pattern.permute.xlu0 0
  %5745 = vperm.xlu0 %5744, %v3808
  %v5746 = vpop.permute.xlu0 %5745
  %5747 = vset.pattern.permute.xlu0 0
  %5748 = vperm.xlu0 %5747, %v3857
  %v5749 = vpop.permute.xlu0 %5748
  %5750 = vset.pattern.permute.xlu0 0
  %5751 = vperm.xlu0 %5750, %v3906
  %v5752 = vpop.permute.xlu0 %5751
  %5753 = vset.pattern.permute.xlu0 0
  %5754 = vperm.xlu0 %5753, %v3955
  %v5755 = vpop.permute.xlu0 %5754
  %5756 = vset.pattern.permute.xlu0 0
  %5757 = vperm.xlu0 %5756, %v4004
  %v5758 = vpop.permute.xlu0 %5757
  %5759 = vset.pattern.permute.xlu0 0
  %5760 = vperm.xlu0 %5759, %v4053
  %v5761 = vpop.permute.xlu0 %5760
  %5762 = vset.pattern.permute.xlu0 0
  %5763 = vperm.xlu0 %5762, %v4102
  %v5764 = vpop.permute.xlu0 %5763
  %5765 = vset.pattern.permute.xlu0 0
  %5766 = vperm.xlu0 %5765, %v4151
  %v5767 = vpop.permute.xlu0 %5766
  %5768 = vset.pattern.permute.xlu0 0
  %5769 = vperm.xlu0 %5768, %v4200
  %v5770 = vpop.permute.xlu0 %5769
  %5771 = vset.pattern.permute.xlu0 0
  %5772 = vperm.xlu0 %5771, %v4249
  %v5773 = vpop.permute.xlu0 %5772
  %5774 = vset.pattern.permute.xlu0 0
  %5775 = vperm.xlu0 %5774, %v4298
  %v5776 = vpop.permute.xlu0 %5775
  %5777 = vset.pattern.permute.xlu0 0
  %5778 = vperm.xlu0 %5777, %v4347
  %v5779 = vpop.permute.xlu0 %5778
  %5780 = vset.pattern.permute.xlu0 0
  %5781 = vperm.xlu0 %5780, %v4396
  %v5782 = vpop.permute.xlu0 %5781
  %5783 = vset.pattern.permute.xlu0 0
  %5784 = vperm.xlu0 %5783, %v4445
  %v5785 = vpop.permute.xlu0 %5784
  %5786 = vset.pattern.permute.xlu0 0
  %5787 = vperm.xlu0 %5786, %v4494
  %v5788 = vpop.permute.xlu0 %5787
  %5789 = vset.pattern.permute.xlu0 0
  %5790 = vperm.xlu0 %5789, %v4543
  %v5791 = vpop.permute.xlu0 %5790
  %5792 = vset.pattern.permute.xlu0 0
  %5793 = vperm.xlu0 %5792, %v4592
  %v5794 = vpop.permute.xlu0 %5793
  %5795 = vset.pattern.permute.xlu0 0
  %5796 = vperm.xlu0 %5795, %v4641
  %v5797 = vpop.permute.xlu0 %5796
  %5798 = vset.pattern.permute.xlu0 0
  %5799 = vperm.xlu0 %5798, %v4690
  %v5800 = vpop.permute.xlu0 %5799
  %5801 = vset.pattern.permute.xlu0 0
  %5802 = vperm.xlu0 %5801, %v4739
  %v5803 = vpop.permute.xlu0 %5802
  %5804 = vset.pattern.permute.xlu0 0
  %5805 = vperm.xlu0 %5804, %v4788
  %v5806 = vpop.permute.xlu0 %5805
  %5807 = vset.pattern.permute.xlu0 0
  %5808 = vperm.xlu0 %5807, %v4837
  %v5809 = vpop.permute.xlu0 %5808
  %5810 = vset.pattern.permute.xlu0 0
  %5811 = vperm.xlu0 %5810, %v4886
  %v5812 = vpop.permute.xlu0 %5811
  %5813 = vset.pattern.permute.xlu0 0
  %5814 = vperm.xlu0 %5813, %v4935
  %v5815 = vpop.permute.xlu0 %5814
  %5816 = vset.pattern.permute.xlu0 0
  %5817 = vperm.xlu0 %5816, %v4984
  %v5818 = vpop.permute.xlu0 %5817
  %5819 = vset.pattern.permute.xlu0 0
  %5820 = vperm.xlu0 %5819, %v5033
  %v5821 = vpop.permute.xlu0 %5820
  %5822 = vset.pattern.permute.xlu0 0
  %5823 = vperm.xlu0 %5822, %v5082
  %v5824 = vpop.permute.xlu0 %5823
  %5825 = vset.pattern.permute.xlu0 0
  %5826 = vperm.xlu0 %5825, %v5131
  %v5827 = vpop.permute.xlu0 %5826
  %5828 = vset.pattern.permute.xlu0 0
  %5829 = vperm.xlu0 %5828, %v5180
  %v5830 = vpop.permute.xlu0 %5829
  %5831 = vset.pattern.permute.xlu0 0
  %5832 = vperm.xlu0 %5831, %v5229
  %v5833 = vpop.permute.xlu0 %5832
  %5834 = vset.pattern.permute.xlu0 0
  %5835 = vperm.xlu0 %5834, %v5278
  %v5836 = vpop.permute.xlu0 %5835
  %5837 = vset.pattern.permute.xlu0 0
  %5838 = vperm.xlu0 %5837, %v5327
  %v5839 = vpop.permute.xlu0 %5838
  %5840 = vset.pattern.permute.xlu0 0
  %5841 = vperm.xlu0 %5840, %v5376
  %v5842 = vpop.permute.xlu0 %5841
  %5843 = vset.pattern.permute.xlu0 0
  %5844 = vperm.xlu0 %5843, %v5425
  %v5845 = vpop.permute.xlu0 %5844
  %5846 = vset.pattern.permute.xlu0 0
  %5847 = vperm.xlu0 %5846, %v5474
  %v5848 = vpop.permute.xlu0 %5847
  %5849 = vset.pattern.permute.xlu0 0
  %5850 = vperm.xlu0 %5849, %v5523
  %v5851 = vpop.permute.xlu0 %5850
  %5852 = vset.pattern.permute.xlu0 0
  %5853 = vperm.xlu0 %5852, %v5572
  %v5854 = vpop.permute.xlu0 %5853
  %5855 = vset.pattern.permute.xlu0 0
  %5856 = vperm.xlu0 %5855, %v5621
  %v5857 = vpop.permute.xlu0 %5856
  %5858 = vset.pattern.permute.xlu0 0
  %5859 = vperm.xlu0 %5858, %v5670
  %v5860 = vpop.permute.xlu0 %5859
  %5861 = vset.pattern.permute.xlu0 0
  %5862 = vperm.xlu0 %5861, %v5719
  %v5863 = vpop.permute.xlu0 %5862
  %v5864 = vlaneseq
  %v5865 = vand.u32 %v5864, 127
  %v5866 = vlaneseq
  %v5867 = vshrl.u32 %v5866, 7
  %v5868 = vsub.s32 %v5865, %v5867
  %v5869 = vrot.slane %v5722, %v5868
  %v5870 = vadd.s32 %v5865, 4294967288
  %v5871 = vlaneseq
  %v5872 = vshrl.u32 %v5871, 7
  %v5873 = vsub.s32 %v5870, %v5872
  %v5874 = vrot.slane %v5725, %v5873
  %vm5875 = vcmask 130112
  %v5876 = vsel %vm5875, %v5874, %v5869
  %v5877 = vadd.s32 %v5865, 4294967280
  %v5878 = vlaneseq
  %v5879 = vshrl.u32 %v5878, 7
  %v5880 = vsub.s32 %v5877, %v5879
  %v5881 = vrot.slane %v5728, %v5880
  %vm5882 = vcmask 195712
  %v5883 = vsel %vm5882, %v5881, %v5876
  %v5884 = vadd.s32 %v5865, 4294967272
  %v5885 = vlaneseq
  %v5886 = vshrl.u32 %v5885, 7
  %v5887 = vsub.s32 %v5884, %v5886
  %v5888 = vrot.slane %v5731, %v5887
  %vm5889 = vcmask 261312
  %v5890 = vsel %vm5889, %v5888, %v5883
  %v5891 = vadd.s32 %v5865, 4294967264
  %v5892 = vlaneseq
  %v5893 = vshrl.u32 %v5892, 7
  %v5894 = vsub.s32 %v5891, %v5893
  %v5895 = vrot.slane %v5734, %v5894
  %vm5896 = vcmask 326912
  %v5897 = vsel %vm5896, %v5895, %v5890
  %v5898 = vadd.s32 %v5865, 4294967256
  %v5899 = vlaneseq
  %v5900 = vshrl.u32 %v5899, 7
  %v5901 = vsub.s32 %v5898, %v5900
  %v5902 = vrot.slane %v5737, %v5901
  %vm5903 = vcmask 392512
  %v5904 = vsel %vm5903, %v5902, %v5897
  %v5905 = vadd.s32 %v5865, 4294967248
  %v5906 = vlaneseq
  %v5907 = vshrl.u32 %v5906, 7
  %v5908 = vsub.s32 %v5905, %v5907
  %v5909 = vrot.slane %v5740, %v5908
  %vm5910 = vcmask 458112
  %v5911 = vsel %vm5910, %v5909, %v5904
  %v5912 = vadd.s32 %v5865, 4294967240
  %v5913 = vlaneseq
  %v5914 = vshrl.u32 %v5913, 7
  %v5915 = vsub.s32 %v5912, %v5914
  %v5916 = vrot.slane %v5743, %v5915
  %vm5917 = vcmask 523712
  %v5918 = vsel %vm5917, %v5916, %v5911
  %v5919 = vadd.s32 %v5865, 4294967232
  %v5920 = vlaneseq
  %v5921 = vshrl.u32 %v5920, 7
  %v5922 = vsub.s32 %v5919, %v5921
  %v5923 = vrot.slane %v5746, %v5922
  %vm5924 = vcmask 589312
  %v5925 = vsel %vm5924, %v5923, %v5918
  %v5926 = vadd.s32 %v5865, 4294967224
  %v5927 = vlaneseq
  %v5928 = vshrl.u32 %v5927, 7
  %v5929 = vsub.s32 %v5926, %v5928
  %v5930 = vrot.slane %v5749, %v5929
  %vm5931 = vcmask 654912
  %v5932 = vsel %vm5931, %v5930, %v5925
  %v5933 = vadd.s32 %v5865, 4294967216
  %v5934 = vlaneseq
  %v5935 = vshrl.u32 %v5934, 7
  %v5936 = vsub.s32 %v5933, %v5935
  %v5937 = vrot.slane %v5752, %v5936
  %vm5938 = vcmask 720512
  %v5939 = vsel %vm5938, %v5937, %v5932
  %v5940 = vadd.s32 %v5865, 4294967208
  %v5941 = vlaneseq
  %v5942 = vshrl.u32 %v5941, 7
  %v5943 = vsub.s32 %v5940, %v5942
  %v5944 = vrot.slane %v5755, %v5943
  %vm5945 = vcmask 786112
  %v5946 = vsel %vm5945, %v5944, %v5939
  %v5947 = vadd.s32 %v5865, 4294967200
  %v5948 = vlaneseq
  %v5949 = vshrl.u32 %v5948, 7
  %v5950 = vsub.s32 %v5947, %v5949
  %v5951 = vrot.slane %v5758, %v5950
  %vm5952 = vcmask 851712
  %v5953 = vsel %vm5952, %v5951, %v5946
  %v5954 = vadd.s32 %v5865, 4294967192
  %v5955 = vlaneseq
  %v5956 = vshrl.u32 %v5955, 7
  %v5957 = vsub.s32 %v5954, %v5956
  %v5958 = vrot.slane %v5761, %v5957
  %vm5959 = vcmask 917312
  %v5960 = vsel %vm5959, %v5958, %v5953
  %v5961 = vadd.s32 %v5865, 4294967184
  %v5962 = vlaneseq
  %v5963 = vshrl.u32 %v5962, 7
  %v5964 = vsub.s32 %v5961, %v5963
  %v5965 = vrot.slane %v5764, %v5964
  %vm5966 = vcmask 982912
  %v5967 = vsel %vm5966, %v5965, %v5960
  %v5968 = vadd.s32 %v5865, 4294967176
  %v5969 = vlaneseq
  %v5970 = vshrl.u32 %v5969, 7
  %v5971 = vsub.s32 %v5968, %v5970
  %v5972 = vrot.slane %v5767, %v5971
  %vm5973 = vcmask 1048512
  %v5974 = vsel %vm5973, %v5972, %v5967
  %v5975 = vlaneseq
  %v5976 = vshrl.u32 %v5975, 7
  %v5977 = vsub.s32 %v5865, %v5976
  %v5978 = vrot.slane %v5770, %v5977
  %v5979 = vlaneseq
  %v5980 = vshrl.u32 %v5979, 7
  %v5981 = vsub.s32 %v5870, %v5980
  %v5982 = vrot.slane %v5773, %v5981
  %v5983 = vsel %vm5875, %v5982, %v5978
  %v5984 = vlaneseq
  %v5985 = vshrl.u32 %v5984, 7
  %v5986 = vsub.s32 %v5877, %v5985
  %v5987 = vrot.slane %v5776, %v5986
  %v5988 = vsel %vm5882, %v5987, %v5983
  %v5989 = vlaneseq
  %v5990 = vshrl.u32 %v5989, 7
  %v5991 = vsub.s32 %v5884, %v5990
  %v5992 = vrot.slane %v5779, %v5991
  %v5993 = vsel %vm5889, %v5992, %v5988
  %v5994 = vlaneseq
  %v5995 = vshrl.u32 %v5994, 7
  %v5996 = vsub.s32 %v5891, %v5995
  %v5997 = vrot.slane %v5782, %v5996
  %v5998 = vsel %vm5896, %v5997, %v5993
  %v5999 = vlaneseq
  %v6000 = vshrl.u32 %v5999, 7
  %v6001 = vsub.s32 %v5898, %v6000
  %v6002 = vrot.slane %v5785, %v6001
  %v6003 = vsel %vm5903, %v6002, %v5998
  %v6004 = vlaneseq
  %v6005 = vshrl.u32 %v6004, 7
  %v6006 = vsub.s32 %v5905, %v6005
  %v6007 = vrot.slane %v5788, %v6006
  %v6008 = vsel %vm5910, %v6007, %v6003
  %v6009 = vlaneseq
  %v6010 = vshrl.u32 %v6009, 7
  %v6011 = vsub.s32 %v5912, %v6010
  %v6012 = vrot.slane %v5791, %v6011
  %v6013 = vsel %vm5917, %v6012, %v6008
  %v6014 = vlaneseq
  %v6015 = vshrl.u32 %v6014, 7
  %v6016 = vsub.s32 %v5919, %v6015
  %v6017 = vrot.slane %v5794, %v6016
  %v6018 = vsel %vm5924, %v6017, %v6013
  %v6019 = vlaneseq
  %v6020 = vshrl.u32 %v6019, 7
  %v6021 = vsub.s32 %v5926, %v6020
  %v6022 = vrot.slane %v5797, %v6021
  %v6023 = vsel %vm5931, %v6022, %v6018
  %v6024 = vlaneseq
  %v6025 = vshrl.u32 %v6024, 7
  %v6026 = vsub.s32 %v5933, %v6025
  %v6027 = vrot.slane %v5800, %v6026
  %v6028 = vsel %vm5938, %v6027, %v6023
  %v6029 = vlaneseq
  %v6030 = vshrl.u32 %v6029, 7
  %v6031 = vsub.s32 %v5940, %v6030
  %v6032 = vrot.slane %v5803, %v6031
  %v6033 = vsel %vm5945, %v6032, %v6028
  %v6034 = vlaneseq
  %v6035 = vshrl.u32 %v6034, 7
  %v6036 = vsub.s32 %v5947, %v6035
  %v6037 = vrot.slane %v5806, %v6036
  %v6038 = vsel %vm5952, %v6037, %v6033
  %v6039 = vlaneseq
  %v6040 = vshrl.u32 %v6039, 7
  %v6041 = vsub.s32 %v5954, %v6040
  %v6042 = vrot.slane %v5809, %v6041
  %v6043 = vsel %vm5959, %v6042, %v6038
  %v6044 = vlaneseq
  %v6045 = vshrl.u32 %v6044, 7
  %v6046 = vsub.s32 %v5961, %v6045
  %v6047 = vrot.slane %v5812, %v6046
  %v6048 = vsel %vm5966, %v6047, %v6043
  %v6049 = vlaneseq
  %v6050 = vshrl.u32 %v6049, 7
  %v6051 = vsub.s32 %v5968, %v6050
  %v6052 = vrot.slane %v5815, %v6051
  %v6053 = vsel %vm5973, %v6052, %v6048
  %v6054 = vlaneseq
  %v6055 = vshrl.u32 %v6054, 7
  %v6056 = vsub.s32 %v5865, %v6055
  %v6057 = vrot.slane %v5818, %v6056
  %v6058 = vlaneseq
  %v6059 = vshrl.u32 %v6058, 7
  %v6060 = vsub.s32 %v5870, %v6059
  %v6061 = vrot.slane %v5821, %v6060
  %v6062 = vsel %vm5875, %v6061, %v6057
  %v6063 = vlaneseq
  %v6064 = vshrl.u32 %v6063, 7
  %v6065 = vsub.s32 %v5877, %v6064
  %v6066 = vrot.slane %v5824, %v6065
  %v6067 = vsel %vm5882, %v6066, %v6062
  %v6068 = vlaneseq
  %v6069 = vshrl.u32 %v6068, 7
  %v6070 = vsub.s32 %v5884, %v6069
  %v6071 = vrot.slane %v5827, %v6070
  %v6072 = vsel %vm5889, %v6071, %v6067
  %v6073 = vlaneseq
  %v6074 = vshrl.u32 %v6073, 7
  %v6075 = vsub.s32 %v5891, %v6074
  %v6076 = vrot.slane %v5830, %v6075
  %v6077 = vsel %vm5896, %v6076, %v6072
  %v6078 = vlaneseq
  %v6079 = vshrl.u32 %v6078, 7
  %v6080 = vsub.s32 %v5898, %v6079
  %v6081 = vrot.slane %v5833, %v6080
  %v6082 = vsel %vm5903, %v6081, %v6077
  %v6083 = vlaneseq
  %v6084 = vshrl.u32 %v6083, 7
  %v6085 = vsub.s32 %v5905, %v6084
  %v6086 = vrot.slane %v5836, %v6085
  %v6087 = vsel %vm5910, %v6086, %v6082
  %v6088 = vlaneseq
  %v6089 = vshrl.u32 %v6088, 7
  %v6090 = vsub.s32 %v5912, %v6089
  %v6091 = vrot.slane %v5839, %v6090
  %v6092 = vsel %vm5917, %v6091, %v6087
  %v6093 = vlaneseq
  %v6094 = vshrl.u32 %v6093, 7
  %v6095 = vsub.s32 %v5919, %v6094
  %v6096 = vrot.slane %v5842, %v6095
  %v6097 = vsel %vm5924, %v6096, %v6092
  %v6098 = vlaneseq
  %v6099 = vshrl.u32 %v6098, 7
  %v6100 = vsub.s32 %v5926, %v6099
  %v6101 = vrot.slane %v5845, %v6100
  %v6102 = vsel %vm5931, %v6101, %v6097
  %v6103 = vlaneseq
  %v6104 = vshrl.u32 %v6103, 7
  %v6105 = vsub.s32 %v5933, %v6104
  %v6106 = vrot.slane %v5848, %v6105
  %v6107 = vsel %vm5938, %v6106, %v6102
  %v6108 = vlaneseq
  %v6109 = vshrl.u32 %v6108, 7
  %v6110 = vsub.s32 %v5940, %v6109
  %v6111 = vrot.slane %v5851, %v6110
  %v6112 = vsel %vm5945, %v6111, %v6107
  %v6113 = vlaneseq
  %v6114 = vshrl.u32 %v6113, 7
  %v6115 = vsub.s32 %v5947, %v6114
  %v6116 = vrot.slane %v5854, %v6115
  %v6117 = vsel %vm5952, %v6116, %v6112
  %v6118 = vlaneseq
  %v6119 = vshrl.u32 %v6118, 7
  %v6120 = vsub.s32 %v5954, %v6119
  %v6121 = vrot.slane %v5857, %v6120
  %v6122 = vsel %vm5959, %v6121, %v6117
  %v6123 = vlaneseq
  %v6124 = vshrl.u32 %v6123, 7
  %v6125 = vsub.s32 %v5961, %v6124
  %v6126 = vrot.slane %v5860, %v6125
  %v6127 = vsel %vm5966, %v6126, %v6122
  %v6128 = vlaneseq
  %v6129 = vshrl.u32 %v6128, 7
  %v6130 = vsub.s32 %v5968, %v6129
  %v6131 = vrot.slane %v5863, %v6130
  %v6132 = vsel %vm5973, %v6131, %v6127
  %v6133 = vcombine.low %v5974, %v6053
  %v6135 = vunpack.c.l.s4 1966171168
  %v6136 = vunpack.c.0.s8 %v6135
  %v6137 = vlaneseq
  %v6138 = vshrl.u32 %v6137, 7
  %v6139 = vsub.s32 %v6136, %v6138
  %v6140 = vrot.slane %v6133, %v6139
  %v6142 = vunpack.c.l.s4 1966171168
  %v6143 = vunpack.c.0.s8 %v6142
  %v6144 = vlaneseq
  %v6145 = vshrl.u32 %v6144, 7
  %v6146 = vsub.s32 %v6143, %v6145
  %v6147 = vrot.slane %v6132, %v6146
  %v6148 = vcombine.low %v6140, %v6147
  %v6150 = vunpack.c.l.s4 1966171168
  %v6151 = vunpack.c.0.s8 %v6150
  %v6152 = vlaneseq
  %v6153 = vshrl.u32 %v6152, 7
  %v6154 = vsub.s32 %v6151, %v6153
  %v6155 = vrot.slane %v6148, %v6154
  %v6157 = vlaneseq
  %vm6158 = vcmp.ge.s32.totalorder %v6157, 0
  %vm6159 = vcmp.lt.s32.totalorder %v6157, 384
  %vm6160 = vmand %vm6158, %vm6159
  %6161 = vst.msk [vmem:[%s9] sm:$0x7] %vm6160, %v6155
  // Predicated region
  $region38: #{grid_des_forward.1} parent=0 // pred_check
    _
  $region39: #{grid_des_forward.1} parent=0 // pred_check_branch
    %6163 = sbr.rel (0) target = $region41
  $region40: #{grid_des_forward.1} parent=0 // pred_region
    _
  $region41: #{grid_des_forward.1} parent=0 // pred_fallthru
    _
  // Predicated region
  $region42: #{grid_des_forward.1} parent=0 // pred_check
    _
  $region43: #{grid_des_forward.1} parent=0 // pred_check_branch
    %6165 = sbr.rel (0) target = $region45
  $region44: #{grid_des_forward.1} parent=0 // pred_region
    _
  $region45: #{grid_des_forward.1} parent=0 // pred_fallthru
    _

</llo_original>
